<compile_context>
chip_gen: v7x
topology: tpu7x:2x2x1
jax: 0.10.0
libtpu: 0.0.40
codegen_flags: <defaults>
</compile_context>

<pallas_src>
import functools

import jax
import jax.numpy as jnp
from jax.experimental import pallas as pl
from jax.experimental.pallas import tpu as pltpu

_LANES = 128


def _inr_kernel(x_ref, pk_ref, o_ref, *, pfin, pfout, lanes, rw1, rw2, rwf, rb):
    """One grid step: (tile_r, P*Fin) coords -> (tile_r, P*Fout) outputs.

    pk_ref row layout (all offsets static, sublane-aligned):
      [0:pfin]        W0p = kron(I_P, omega0*W0)          (pfin, 128)
      [rw1:rw1+128]   W1p = kron(I_P, omega0*W1)          (128, 128)
      [rw2:rw2+128]   W2p = kron(I_P, omega0*W2)          (128, 128)
      [rwf:rwf+128]   Wfp = kron(I_P, Wf), zero col-pad   (128, 128)
      [rb+0..rb+3]    packed biases b0, b1, b2, bf (omega0 pre-folded)
    """
    f32 = jnp.float32
    x = x_ref[...]
    # First sine layer (is_first=True): sin(x @ (w0*W0) + w0*b0)
    h = jnp.sin(jnp.dot(x, pk_ref[0:pfin, :], preferred_element_type=f32)
                + pk_ref[rb:rb + 1, :])
    # Two hidden sine layers
    h = jnp.sin(jnp.dot(h, pk_ref[rw1:rw1 + lanes, :], preferred_element_type=f32)
                + pk_ref[rb + 1:rb + 2, :])
    h = jnp.sin(jnp.dot(h, pk_ref[rw2:rw2 + lanes, :], preferred_element_type=f32)
                + pk_ref[rb + 2:rb + 3, :])
    # Final (outermost) linear layer — no sine.
    y = (jnp.dot(h, pk_ref[rwf:rwf + lanes, 0:pfout], preferred_element_type=f32)
         + pk_ref[rb + 3:rb + 4, 0:pfout])
    o_ref[...] = y.astype(o_ref.dtype)


def pack_inr_params(params, *, first_omega_0=30.0, hidden_omega_0=30.0,
                    lanes=_LANES):
    """Fold omega_0 into the sine layers and pack everything into one (R, 128)
    f32 array + static metadata.  Call once; reuse across forward calls.

    params: (w0, b0, w1, b1, w2, b2, wf, bf) with W stored (fan_in, fan_out)
            and b stored (1, fan_out), i.e. the math is x @ W + b.
    """
    w0, b0, w1, b1, w2, b2, wf, bf = params
    Fin, hidden = w0.shape
    Fout = wf.shape[1]
    if lanes % hidden:
        raise ValueError(f"hidden_features={hidden} must divide {lanes}")
    P = lanes // hidden                       # points packed per lane-row
    if P * Fin > lanes or P * Fout > lanes:
        raise ValueError("in/out features too wide for lane packing")

    eye = jnp.eye(P, dtype=jnp.float32)
    bdiag = lambda w: jnp.kron(eye, w.astype(jnp.float32))     # block-diagonal
    rep = lambda b: jnp.tile(b.astype(jnp.float32).reshape(1, -1), (1, P))
    pad_c = lambda a: jnp.pad(a, ((0, 0), (0, lanes - a.shape[1])))

    w0p = pad_c(bdiag(w0 * first_omega_0))    # (P*Fin, 128)
    w1p = bdiag(w1 * hidden_omega_0)          # (128, 128)
    w2p = bdiag(w2 * hidden_omega_0)          # (128, 128)
    wfp = pad_c(bdiag(wf))                    # (128, 128); cols >= P*Fout are 0
    biases = jnp.concatenate(
        [rep(b0 * first_omega_0), rep(b1 * hidden_omega_0),
         rep(b2 * hidden_omega_0), pad_c(rep(bf))], axis=0)    # (4, 128)
    biases = jnp.pad(biases, ((0, 4), (0, 0)))                 # (8, 128)

    n0 = ((P * Fin + 7) // 8) * 8             # sublane-align the W1p block
    w0p = jnp.pad(w0p, ((0, n0 - w0p.shape[0]), (0, 0)))
    pk = jnp.concatenate([w0p, w1p, w2p, wfp, biases], axis=0)

    meta = dict(P=P, Fin=Fin, hidden=hidden, Fout=Fout, lanes=lanes,
                rw1=n0, rw2=n0 + lanes, rwf=n0 + 2 * lanes, rb=n0 + 3 * lanes)
    return pk, meta


def inr_forward(coords, packed, *, tile_points=8192):
    """coords: (B, N, in_features) f32 -> (B, N, out_features) f32."""
    pk, meta = packed
    P, Fin, Fout = meta["P"], meta["Fin"], meta["Fout"]
    hidden, lanes = meta["hidden"], meta["lanes"]
    B, N, fin_c = coords.shape
    if fin_c != Fin:
        raise ValueError("coords feature dim does not match packed params")
    M = B * N

    # Tile sizing over rows of the (M/P, P*Fin) view: multiple of 8, capped so
    # one grid step covers ~tile_points points.  No forced >=2-step split
    # (pure overhead on 1-TC v5e/v6e); large M naturally yields many steps.
    rows = pl.cdiv(M, P)
    tile_r = min(max(8, (tile_points // P) // 8 * 8), pl.cdiv(rows, 8) * 8)
    rows_pad = pl.cdiv(rows, tile_r) * tile_r
    Mp = rows_pad * P

    x = coords.reshape(M, Fin)
    if Mp != M:                       # only copies when M isn't aligned
        x = jnp.pad(x, ((0, Mp - M), (0, 0)))
    x = x.reshape(rows_pad, P * Fin)  # free row-major reshape, no transpose

    kernel = functools.partial(
        _inr_kernel, pfin=P * Fin, pfout=P * Fout, lanes=lanes,
        rw1=meta["rw1"], rw2=meta["rw2"], rwf=meta["rwf"], rb=meta["rb"])

    cost = pl.CostEstimate(
        flops=int(2 * Mp * (Fin * hidden + 2 * hidden * hidden + hidden * Fout)),
        transcendentals=int(3 * hidden * Mp),
        bytes_accessed=int(4 * (Mp * (Fin + Fout) + pk.size)),
    )

    out = pl.pallas_call(
        kernel,
        out_shape=jax.ShapeDtypeStruct((rows_pad, P * Fout), jnp.float32),
        grid_spec=pltpu.PrefetchScalarGridSpec(
            num_scalar_prefetch=0,
            grid=(rows_pad // tile_r,),
            in_specs=[
                pl.BlockSpec((tile_r, P * Fin), lambda i: (i, 0)),  # coords tile
                pl.BlockSpec(tuple(pk.shape), lambda i: (0, 0)),    # packed params
            ],
            out_specs=pl.BlockSpec((tile_r, P * Fout), lambda i: (i, 0)),
        ),
        compiler_params=pltpu.CompilerParams(
            dimension_semantics=("parallel",),
            vmem_limit_bytes=32 * 1024 * 1024),
        cost_estimate=cost,
    )(x, pk)

    y = out.reshape(Mp, Fout)         # free row-major reshape, no transpose
    if Mp != M:
        y = y[:M]
    return y.reshape(B, N, Fout)


def init_inr_params(key, in_features, hidden_features, out_features,
                    first_omega_0=30.0, hidden_omega_0=30.0):
    """Deterministic init mirroring the PyTorch INR/SineLayer init schemes.
    Weights stored (fan_in, fan_out) so that the math is x @ W + b."""
    ks = jax.random.split(key, 8)

    def u(k, shape, bound):
        return jax.random.uniform(k, shape, jnp.float32, -bound, bound)

    # SineLayer(is_first=True): weight ~ U(-1/in, 1/in)
    w0 = u(ks[0], (in_features, hidden_features), 1.0 / in_features)
    # nn.Linear default bias init: U(-1/sqrt(fan_in), 1/sqrt(fan_in))
    b0 = u(ks[1], (1, hidden_features), 1.0 / jnp.sqrt(in_features))

    hid_bound = float(jnp.sqrt(6.0 / hidden_features) / hidden_omega_0)
    bias_bound = float(1.0 / jnp.sqrt(hidden_features))
    w1 = u(ks[2], (hidden_features, hidden_features), hid_bound)
    b1 = u(ks[3], (1, hidden_features), bias_bound)
    w2 = u(ks[4], (hidden_features, hidden_features), hid_bound)
    b2 = u(ks[5], (1, hidden_features), bias_bound)

    # Final linear: weight ~ U(-sqrt(6/hidden)/hidden_omega_0, +)
    wf = u(ks[6], (hidden_features, out_features), hid_bound)
    bf = u(ks[7], (1, out_features), bias_bound)
    return (w0, b0, w1, b1, w2, b2, wf, bf)


def inr_reference(coords, params, first_omega_0=30.0, hidden_omega_0=30.0):
    """Pure-JAX reference of the same forward pass (PyTorch semantics)."""
    w0, b0, w1, b1, w2, b2, wf, bf = params
    h = jnp.sin(first_omega_0 * (coords @ w0 + b0))
    h = jnp.sin(hidden_omega_0 * (h @ w1 + b1))
    h = jnp.sin(hidden_omega_0 * (h @ w2 + b2))
    return h @ wf + bf


if __name__ == "__main__":
    key = jax.random.PRNGKey(0)
    k_coords, k_params = jax.random.split(key)

    # Small shapes: batch=2, 256 coordinate samples each, 2-D coords -> 3 ch.
    B, N = 2, 256
    in_features, hidden_features, out_features = 2, 32, 3

    coords = jax.random.uniform(k_coords, (B, N, in_features), jnp.float32,
                                minval=-1.0, maxval=1.0)
    params = init_inr_params(k_params, in_features, hidden_features,
                             out_features)
    packed = pack_inr_params(params)      # one-time omega fold + packing

    out = jax.block_until_ready(inr_forward(coords, packed))

    ref = inr_reference(coords, params)
    assert out.shape == (B, N, out_features)
    # omega_0 is folded into the weights (mathematically exact); allow tiny f32
    # rounding differences between the fused MXU kernel and the XLA reference.
    assert jnp.allclose(out, ref, atol=3e-4, rtol=1e-4), "mismatch vs JAX reference"

    print("KERNEL_OK")
</pallas_src>

<mosaic_0001>
module attributes {stable_mosaic.version = 11 : i64} {
  func.func @_inr_kernel(%arg0: i32, %arg1: memref<128x8xf32, #tpu.memory_space<vmem>>, %arg2: memref<400x128xf32, #tpu.memory_space<vmem>>, %arg3: memref<128x12xf32, #tpu.memory_space<vmem>>) attributes {dimension_semantics = [#tpu.dimension_semantics<parallel>], iteration_bounds = array<i64: 1>, scalar_prefetch = 0 : i64, scratch_operands = 0 : i64, tpu.core_type = #tpu.core_type<tc>, window_params = [{transform_indices = @transform_0, window_bounds = array<i64: 128, 8>}, {pipeline_mode = #tpu.pipeline_mode<synchronous>, transform_indices = @transform_1, window_bounds = array<i64: 400, 128>}, {transform_indices = @transform_2, window_bounds = array<i64: 128, 12>}]} {
    %c0 = arith.constant 0 : index
    %c0_0 = arith.constant 0 : index
    %0 = vector.load %arg1[%c0, %c0_0] : memref<128x8xf32, #tpu.memory_space<vmem>>, vector<128x8xf32>
    %c0_1 = arith.constant 0 : index
    %c0_2 = arith.constant 0 : index
    %1 = vector.load %arg2[%c0_1, %c0_2] : memref<400x128xf32, #tpu.memory_space<vmem>>, vector<8x128xf32>
    %cst = arith.constant dense<0.000000e+00> : vector<128x128xf32>
    %2 = tpu.matmul %0, %1, %cst {dimension_numbers = #tpu.dot_dimension_numbers<[1], [0], [0], [1], [0, 0, 1, 1], [], []>} : vector<128x8xf32>, vector<8x128xf32>, vector<128x128xf32> -> vector<128x128xf32>
    %c392 = arith.constant 392 : index
    %c0_3 = arith.constant 0 : index
    %3 = vector.load %arg2[%c392, %c0_3] : memref<400x128xf32, #tpu.memory_space<vmem>>, vector<1x128xf32>
    %4 = vector.broadcast %3 : vector<1x128xf32> to vector<128x128xf32>
    %5 = arith.addf %2, %4 : vector<128x128xf32>
    %6 = math.sin %5 : vector<128x128xf32>
    %c8 = arith.constant 8 : index
    %c0_4 = arith.constant 0 : index
    %7 = vector.load %arg2[%c8, %c0_4] : memref<400x128xf32, #tpu.memory_space<vmem>>, vector<128x128xf32>
    %cst_5 = arith.constant dense<0.000000e+00> : vector<128x128xf32>
    %8 = tpu.matmul %6, %7, %cst_5 {dimension_numbers = #tpu.dot_dimension_numbers<[1], [0], [0], [1], [0, 0, 1, 1], [], []>} : vector<128x128xf32>, vector<128x128xf32>, vector<128x128xf32> -> vector<128x128xf32>
    %c393 = arith.constant 393 : index
    %c0_6 = arith.constant 0 : index
    %9 = vector.load %arg2[%c393, %c0_6] : memref<400x128xf32, #tpu.memory_space<vmem>>, vector<1x128xf32>
    %10 = vector.broadcast %9 : vector<1x128xf32> to vector<128x128xf32>
    %11 = arith.addf %8, %10 : vector<128x128xf32>
    %12 = math.sin %11 : vector<128x128xf32>
    %c136 = arith.constant 136 : index
    %c0_7 = arith.constant 0 : index
    %13 = vector.load %arg2[%c136, %c0_7] : memref<400x128xf32, #tpu.memory_space<vmem>>, vector<128x128xf32>
    %cst_8 = arith.constant dense<0.000000e+00> : vector<128x128xf32>
    %14 = tpu.matmul %12, %13, %cst_8 {dimension_numbers = #tpu.dot_dimension_numbers<[1], [0], [0], [1], [0, 0, 1, 1], [], []>} : vector<128x128xf32>, vector<128x128xf32>, vector<128x128xf32> -> vector<128x128xf32>
    %c394 = arith.constant 394 : index
    %c0_9 = arith.constant 0 : index
    %15 = vector.load %arg2[%c394, %c0_9] : memref<400x128xf32, #tpu.memory_space<vmem>>, vector<1x128xf32>
    %16 = vector.broadcast %15 : vector<1x128xf32> to vector<128x128xf32>
    %17 = arith.addf %14, %16 : vector<128x128xf32>
    %18 = math.sin %17 : vector<128x128xf32>
    %c264 = arith.constant 264 : index
    %c0_10 = arith.constant 0 : index
    %19 = vector.load %arg2[%c264, %c0_10] : memref<400x128xf32, #tpu.memory_space<vmem>>, vector<128x12xf32>
    %cst_11 = arith.constant dense<0.000000e+00> : vector<128x12xf32>
    %20 = tpu.matmul %18, %19, %cst_11 {dimension_numbers = #tpu.dot_dimension_numbers<[1], [0], [0], [1], [0, 0, 1, 1], [], []>} : vector<128x128xf32>, vector<128x12xf32>, vector<128x12xf32> -> vector<128x12xf32>
    %c395 = arith.constant 395 : index
    %c0_12 = arith.constant 0 : index
    %21 = vector.load %arg2[%c395, %c0_12] : memref<400x128xf32, #tpu.memory_space<vmem>>, vector<1x12xf32>
    %22 = vector.broadcast %21 : vector<1x12xf32> to vector<128x12xf32>
    %23 = arith.addf %20, %22 : vector<128x12xf32>
    %c0_13 = arith.constant 0 : index
    %c0_14 = arith.constant 0 : index
    %24 = vector.load %arg3[%c0_13, %c0_14] : memref<128x12xf32, #tpu.memory_space<vmem>>, vector<128x12xf32>
    tpu.vector_store %arg3[%c0_13, %c0_14], %23 {strides = array<i32>} : memref<128x12xf32, #tpu.memory_space<vmem>>, vector<128x12xf32>,
    return
  }
  func.func @transform_0(%arg0: i32) -> (i32, i32) {
    %c0_i32 = arith.constant 0 : i32
    %c0_i32_0 = arith.constant 0 : i32
    return %arg0, %c0_i32 : i32, i32
  }
  func.func @transform_1(%arg0: i32) -> (i32, i32) {
    %c0_i32 = arith.constant 0 : i32
    %c0_i32_0 = arith.constant 0 : i32
    %c0_i32_1 = arith.constant 0 : i32
    return %c0_i32, %c0_i32_0 : i32, i32
  }
  func.func @transform_2(%arg0: i32) -> (i32, i32) {
    %c0_i32 = arith.constant 0 : i32
    %c0_i32_0 = arith.constant 0 : i32
    return %arg0, %c0_i32 : i32, i32
  }
}

</mosaic_0001>

<llo_original>
// kernel: tpu_custom_call.1
$region0: #{tpu_custom_call.1}
  #allocation0 [shape = 'u32[]', space=smem, size = 0x4, offset = 0x4, fixed_abs, tag = 'smem constant byte address 0x4 - core index']
  #allocation1 [shape = 'u32[144,128]{1,0:T(1,128)}', space=vmem, size = 0x12000, scoped, tag = 'internal scratch']
  %s0 = inlined_call_operand.vmem [shape: f32[128,8], index: 0, kind: input, shape index: {}]
  %s1 = inlined_call_operand.hbm [shape: f32[400,128], index: 1, kind: input, shape index: {}]
  %s2 = inlined_call_operand.vmem [shape: f32[128,12], index: 2, kind: output, shape index: {}]
  %s3 = sld [smem:[#allocation0]]
  $region22: #{tpu_custom_call.1} parent=0
    _
  %s5 = ssub.s32 1, %s3
  %s6 = scalar_select 0, %s5, %s3
  $region1: #{tpu_custom_call.1} parent=0
    #allocation2 [shape = 'u8[204800]{0}', space=vmem, size = 0x32000, scoped, tag = 'input window, operand 1, single buffered']
    #allocation3 [shape = 's32[1]{0}', space=sflag, size = 0x4, scoped, tag = 'scoped memory for tpu_custom_call.1']
    %7 = vsyncpa [#allocation3], 0
    // Predicated region
    $region2: #{tpu_custom_call.1} parent=1 // pred_check
      _
    $region3: #{tpu_custom_call.1} parent=1 // pred_check_branch
      %9 = sbr.rel (0) target = $region5
    $region4: #{tpu_custom_call.1} parent=1 // pred_region
      _
    $region5: #{tpu_custom_call.1} parent=1 // pred_fallthru
      _
    // Predicated region
    $region6: #{tpu_custom_call.1} parent=1 // pred_check
      _
    $region7: #{tpu_custom_call.1} parent=1 // pred_check_branch
      %11 = sbr.rel (0) target = $region9
    $region8: #{tpu_custom_call.1} parent=1 // pred_region
      %s13 = ssub.s32 6400, 6400
      %14 = vsyncadd [#allocation3], %s13
      %s15 = sshll.u32 [#allocation2], 4
      %s16 = int_to_ptr.vmem [resolvable:$true] %s15
      %21 = dma.hbm_to_vmem [thread:$0]  %s1, 6400, %s16, [#allocation3], 128, 128, 8
    $region9: #{tpu_custom_call.1} parent=1 // pred_fallthru
      _
    // Predicated region
    $region10: #{tpu_custom_call.1} parent=1 // pred_check
      _
    $region11: #{tpu_custom_call.1} parent=1 // pred_check_branch
      %23 = sbr.rel (0) target = $region13
    $region12: #{tpu_custom_call.1} parent=1 // pred_region
      %24 = dma.done [#allocation3], 6400
    $region13: #{tpu_custom_call.1} parent=1 // pred_fallthru
      _
    %v25 = vld [vmem:[%s0] sm:$0xff]
    %v26 = vld [vmem:[%s0 + $0x8] sm:$0xff]
    %v27 = vld [vmem:[%s0 + $0x10] sm:$0xff]
    %v28 = vld [vmem:[%s0 + $0x18] sm:$0xff]
    %v29 = vld [vmem:[%s0 + $0x20] sm:$0xff]
    %v30 = vld [vmem:[%s0 + $0x28] sm:$0xff]
    %v31 = vld [vmem:[%s0 + $0x30] sm:$0xff]
    %v32 = vld [vmem:[%s0 + $0x38] sm:$0xff]
    %v33 = vld [vmem:[%s0 + $0x40] sm:$0xff]
    %v34 = vld [vmem:[%s0 + $0x48] sm:$0xff]
    %v35 = vld [vmem:[%s0 + $0x50] sm:$0xff]
    %v36 = vld [vmem:[%s0 + $0x58] sm:$0xff]
    %v37 = vld [vmem:[%s0 + $0x60] sm:$0xff]
    %v38 = vld [vmem:[%s0 + $0x68] sm:$0xff]
    %v39 = vld [vmem:[%s0 + $0x70] sm:$0xff]
    %v40 = vld [vmem:[%s0 + $0x78] sm:$0xff]
    %v41 = vld [vmem:[#allocation2] sm:$0xff]
    %v42 = vld [vmem:[#allocation2 + $0x188] sm:$0x1]
    %v43 = vlaneseq
    %v44 = vshrl.u32 %v43, 7
    %v45 = vsub.s32 0, %v44
    %v46 = vrot.slane %v42, %v45
    %vm47 = vcmask 64512
    %v49 = vsel %vm47, %v25, 0
    %v52 = vsel %vm47, %v26, 0
    %v55 = vsel %vm47, %v27, 0
    %v58 = vsel %vm47, %v28, 0
    %v61 = vsel %vm47, %v29, 0
    %v64 = vsel %vm47, %v30, 0
    %v67 = vsel %vm47, %v31, 0
    %v70 = vsel %vm47, %v32, 0
    %v73 = vsel %vm47, %v33, 0
    %v76 = vsel %vm47, %v34, 0
    %v79 = vsel %vm47, %v35, 0
    %v82 = vsel %vm47, %v36, 0
    %v85 = vsel %vm47, %v37, 0
    %v88 = vsel %vm47, %v38, 0
    %v91 = vsel %vm47, %v39, 0
    %v94 = vsel %vm47, %v40, 0
    %96 = vmatprep.subr.mxu0 0.0
    %97 = vmatpush1.msra.mxu0 %v41
    %98 = vmatprep.subr.mxu0 0.0
    %99 = vmatpush1.msra.mxu0 0.0
    %100 = vmatprep.subr.mxu0 0.0
    %101 = vmatpush1.msra.mxu0 0.0
    %102 = vmatprep.subr.mxu0 0.0
    %103 = vmatpush1.msra.mxu0 0.0
    %104 = vmatprep.subr.mxu0 0.0
    %105 = vmatpush1.msra.mxu0 0.0
    %106 = vmatprep.subr.mxu0 0.0
    %107 = vmatpush1.msra.mxu0 0.0
    %108 = vmatprep.subr.mxu0 0.0
    %109 = vmatpush1.msra.mxu0 0.0
    %110 = vmatprep.subr.mxu0 0.0
    %111 = vmatpush1.msra.mxu0 0.0
    %112 = vmatprep.subr.mxu0 0.0
    %113 = vmatpush1.msra.mxu0 0.0
    %114 = vmatprep.subr.mxu0 0.0
    %115 = vmatpush1.msra.mxu0 0.0
    %116 = vmatprep.subr.mxu0 0.0
    %117 = vmatpush1.msra.mxu0 0.0
    %118 = vmatprep.subr.mxu0 0.0
    %119 = vmatpush1.msra.mxu0 0.0
    %120 = vmatprep.subr.mxu0 0.0
    %121 = vmatpush1.msra.mxu0 0.0
    %122 = vmatprep.subr.mxu0 0.0
    %123 = vmatpush1.msra.mxu0 0.0
    %124 = vmatprep.subr.mxu0 0.0
    %125 = vmatpush1.msra.mxu0 0.0
    %126 = vmatprep.subr.mxu0 0.0
    %127 = vmatpush1.msra.mxu0 0.0
    %128 = vmatprep.subr.mxu0 0.0
    %129 = vmatpush1.msra.mxu0 0.0
    %130 = vmatprep.subr.mxu0 0.0
    %131 = vmatpush1.msra.mxu0 0.0
    %132 = vmatprep.subr.mxu0 0.0
    %133 = vmatpush1.msra.mxu0 0.0
    %134 = vmatprep.subr.mxu0 0.0
    %135 = vmatpush1.msra.mxu0 0.0
    %136 = vmatprep.subr.mxu0 0.0
    %137 = vmatpush1.msra.mxu0 0.0
    %138 = vmatprep.subr.mxu0 0.0
    %139 = vmatpush1.msra.mxu0 0.0
    %140 = vmatprep.subr.mxu0 0.0
    %141 = vmatpush1.msra.mxu0 0.0
    %142 = vmatprep.subr.mxu0 0.0
    %143 = vmatpush1.msra.mxu0 0.0
    %144 = vmatprep.subr.mxu0 0.0
    %145 = vmatpush1.msra.mxu0 0.0
    %146 = vmatprep.subr.mxu0 0.0
    %147 = vmatpush1.msra.mxu0 0.0
    %148 = vmatprep.subr.mxu0 0.0
    %149 = vmatpush1.msra.mxu0 0.0
    %150 = vmatprep.subr.mxu0 0.0
    %151 = vmatpush1.msra.mxu0 0.0
    %152 = vmatprep.subr.mxu0 0.0
    %153 = vmatpush1.msra.mxu0 0.0
    %154 = vmatprep.subr.mxu0 0.0
    %155 = vmatpush1.msra.mxu0 0.0
    %156 = vmatprep.subr.mxu0 0.0
    %157 = vmatpush1.msra.mxu0 0.0
    %158 = vmatprep.subr.mxu0 0.0
    %159 = vmatpush1.msra.mxu0 0.0
    %160 = vmatprep.mubr.f32.mxu0 0.0
    %161 = vmatmul.mubr.f32.gmra.mrb[0].mxu0 %v49
    %v162 = vpop.f32.mrb[0].mxu0
    %v163 = vadd.f32 %v46, %v162
    %v164 = vpop.f32.mrb[0].mxu0
    %165 = vmatprep.mubr.f32.mxu0 0.0
    %166 = vmatmul.mubr.f32.gmra.mrb[0].mxu0 %v52
    %v167 = vpop.f32.mrb[0].mxu0
    %v168 = vadd.f32 %v46, %v167
    %v169 = vpop.f32.mrb[0].mxu0
    %170 = vmatprep.mubr.f32.mxu0 0.0
    %171 = vmatmul.mubr.f32.gmra.mrb[0].mxu0 %v55
    %v172 = vpop.f32.mrb[0].mxu0
    %v173 = vadd.f32 %v46, %v172
    %v174 = vpop.f32.mrb[0].mxu0
    %175 = vmatprep.mubr.f32.mxu0 0.0
    %176 = vmatmul.mubr.f32.gmra.mrb[0].mxu0 %v58
    %v177 = vpop.f32.mrb[0].mxu0
    %v178 = vadd.f32 %v46, %v177
    %v179 = vpop.f32.mrb[0].mxu0
    %180 = vmatprep.mubr.f32.mxu0 0.0
    %181 = vmatmul.mubr.f32.gmra.mrb[0].mxu0 %v61
    %v182 = vpop.f32.mrb[0].mxu0
    %v183 = vadd.f32 %v46, %v182
    %v184 = vpop.f32.mrb[0].mxu0
    %185 = vmatprep.mubr.f32.mxu0 0.0
    %186 = vmatmul.mubr.f32.gmra.mrb[0].mxu0 %v64
    %v187 = vpop.f32.mrb[0].mxu0
    %v188 = vadd.f32 %v46, %v187
    %v189 = vpop.f32.mrb[0].mxu0
    %190 = vmatprep.mubr.f32.mxu0 0.0
    %191 = vmatmul.mubr.f32.gmra.mrb[0].mxu0 %v67
    %v192 = vpop.f32.mrb[0].mxu0
    %v193 = vadd.f32 %v46, %v192
    %v194 = vpop.f32.mrb[0].mxu0
    %195 = vmatprep.mubr.f32.mxu0 0.0
    %196 = vmatmul.mubr.f32.gmra.mrb[0].mxu0 %v70
    %v197 = vpop.f32.mrb[0].mxu0
    %v198 = vadd.f32 %v46, %v197
    %v199 = vpop.f32.mrb[0].mxu0
    %200 = vmatprep.mubr.f32.mxu0 0.0
    %201 = vmatmul.mubr.f32.gmra.mrb[0].mxu0 %v73
    %v202 = vpop.f32.mrb[0].mxu0
    %v203 = vadd.f32 %v46, %v202
    %v204 = vpop.f32.mrb[0].mxu0
    %205 = vmatprep.mubr.f32.mxu0 0.0
    %206 = vmatmul.mubr.f32.gmra.mrb[0].mxu0 %v76
    %v207 = vpop.f32.mrb[0].mxu0
    %v208 = vadd.f32 %v46, %v207
    %v209 = vpop.f32.mrb[0].mxu0
    %210 = vmatprep.mubr.f32.mxu0 0.0
    %211 = vmatmul.mubr.f32.gmra.mrb[0].mxu0 %v79
    %v212 = vpop.f32.mrb[0].mxu0
    %v213 = vadd.f32 %v46, %v212
    %v214 = vpop.f32.mrb[0].mxu0
    %215 = vmatprep.mubr.f32.mxu0 0.0
    %216 = vmatmul.mubr.f32.gmra.mrb[0].mxu0 %v82
    %v217 = vpop.f32.mrb[0].mxu0
    %v218 = vadd.f32 %v46, %v217
    %v219 = vpop.f32.mrb[0].mxu0
    %220 = vmatprep.mubr.f32.mxu0 0.0
    %221 = vmatmul.mubr.f32.gmra.mrb[0].mxu0 %v85
    %v222 = vpop.f32.mrb[0].mxu0
    %v223 = vadd.f32 %v46, %v222
    %v224 = vpop.f32.mrb[0].mxu0
    %225 = vmatprep.mubr.f32.mxu0 0.0
    %226 = vmatmul.mubr.f32.gmra.mrb[0].mxu0 %v88
    %v227 = vpop.f32.mrb[0].mxu0
    %v228 = vadd.f32 %v46, %v227
    %v229 = vpop.f32.mrb[0].mxu0
    %230 = vmatprep.mubr.f32.mxu0 0.0
    %231 = vmatmul.mubr.f32.gmra.mrb[0].mxu0 %v91
    %v232 = vpop.f32.mrb[0].mxu0
    %v233 = vadd.f32 %v46, %v232
    %v234 = vpop.f32.mrb[0].mxu0
    %235 = vmatprep.mubr.f32.mxu0 0.0
    %236 = vmatmul.mubr.f32.gmra.mrb[0].mxu0 %v94
    %v237 = vpop.f32.mrb[0].mxu0
    %v238 = vadd.f32 %v46, %v237
    %v239 = vpop.f32.mrb[0].mxu0
    %240 = vdwg.mxu0
    %v241 = vand.u32 2147483647, %v163
    %vm242 = vcmp.le.f32.partialorder %v241, 0.7853982
    %vm243 = vcmp.lt.s32.totalorder %v163, 0
    %v244 = vand.u32 %v163, 2139095040
    %v245 = vshrl.u32 %v244, 23
    %v246 = vsub.s32 %v245, 127
    %v247 = vand.u32 2147483647, %v163
    %v248 = vand.u32 %v247, 8388607
    %v249 = vor.u32 %v248, 8388608
    %v250 = vsub.s32 0, %v249
    %v251 = vadd.s32 %v246, 1
    %vm252 = vcmp.gt.s32.totalorder %v251, 0
    %v253 = vsel %vm252, %v251, 0
    %v254 = vshrl.u32 %v253, 5
    %v255 = vand.u32 %v253, 31
    %v256 = vsub.s32 32, %v255
    %v257 = vshrl.u32 683565275, %v256
    %v258 = vshll.u32 683565275, %v255
    %v259 = vshrl.u32 2475754826, %v256
    %v260 = vor.u32 %v258, %v259
    %v261 = vshll.u32 2475754826, %v255
    %v262 = vshrl.u32 2131351028, %v256
    %v263 = vor.u32 %v261, %v262
    %v264 = vshll.u32 2131351028, %v255
    %v265 = vshrl.u32 2102212464, %v256
    %v266 = vor.u32 %v264, %v265
    %v267 = vshll.u32 2102212464, %v255
    %v268 = vshrl.u32 920167782, %v256
    %v269 = vor.u32 %v267, %v268
    %v270 = vshll.u32 920167782, %v255
    %v271 = vshrl.u32 1326507024, %v256
    %v272 = vor.u32 %v270, %v271
    %vm273 = vcmp.lt.s32.totalorder %v254, 1
    %vm274 = vcmp.lt.s32.totalorder %v254, 2
    %vm275 = vcmp.lt.s32.totalorder %v254, 3
    %vm276 = vcmp.lt.s32.totalorder %v254, 4
    %v277 = vsel %vm273, %v257, %v260
    %v278 = vsel %vm276, %v266, 2102212464
    %v279 = vsel %vm275, %v263, %v278
    %v280 = vsel %vm274, %v277, %v279
    %v281 = vsel %vm273, %v260, %v263
    %v282 = vsel %vm276, %v269, 920167782
    %v283 = vsel %vm275, %v266, %v282
    %v284 = vsel %vm274, %v281, %v283
    %v285 = vsel %vm273, %v263, %v266
    %v286 = vsel %vm276, %v272, 1326507024
    %v287 = vsel %vm275, %v269, %v286
    %v288 = vsel %vm274, %v285, %v287
    %v289 = vshll.u32 %v249, 8
    %v290 = vmul.u32.u64.compose %v289, %v288
    %v291 = vextract.low.u32 %v290
    %v292 = vextract.high.u32 %v290
    %v293 = vmul.u32.u64.compose %v289, %v284
    %v294 = vextract.low.u32 %v293
    %v295 = vextract.high.u32 %v293
    %v296 = vmul.u32 %v289, %v280
    %v297 = vadd.s32 %v292, %v294
    %vm298 = vc.u32 %v292, %v294
    %v299 = vadd.s32 %v295, 1
    %v300 = vsel %vm298, %v299, %v295
    %v301 = vadd.s32 %v296, %v300
    %v302 = vadd.s32 %v301, 536870912
    %v303 = vshrl.u32 %v302, 30
    %v304 = vshll.u32 %v303, 30
    %v305 = vsub.s32 %v301, %v304
    %vm306 = vcmp.lt.s32.totalorder %v305, 0
    %v307 = vsub.s32 0, %v305
    %v308 = vsel %vm306, %v307, %v305
    %v309 = vclz %v308
    %v310 = vsub.s32 %v309, 2
    %vm311 = vcmp.gt.s32.totalorder 0, %v310
    %v312 = vsel %vm311, 0, %v310
    %v313 = vsub.s32 32, %v312
    %v314 = vshll.u32 %v305, %v312
    %v315 = vshrl.u32 %v297, %v313
    %v316 = vor.u32 %v314, %v315
    %v317 = vsub.s32 4294967266, %v312
    %v318 = vadd.s32 %v317, 127
    %v319 = vshll.u32 %v318, 23
    %v320 = vor.u32 4788187, %v319
    %v321 = vand.u32 2147483647, %v320
    %v323 = vcvt.s32.f32 %v316
    %v324 = vmul.f32 %v323, %v321
    %v325 = vxor.u32 %v324, 2147483648
    %v326 = vsel %vm243, %v325, %v324
    %v327 = vsub.s32 4, %v303
    %v328 = vsel %vm243, %v327, %v303
    %v329 = vsel %vm242, %v163, %v326
    %v330 = vsel %vm242, 0, %v328
    %v331 = vcosq.f32.pop %v329
    %v332 = vsinq.f32.pop %v329
    %vm333 = vweird.f32 %v163
    %v334 = vadd.s32 %v330, 3
    %v335 = vand.u32 %v334, 3
    %vm336 = vcmp.lt.s32.totalorder %v335, 2
    %vm337 = vcmp.eq.s32.totalorder %v335, 0
    %v338 = vxor.u32 %v332, 2147483648
    %v339 = vsel %vm337, %v331, %v338
    %vm340 = vcmp.eq.s32.totalorder %v335, 2
    %v341 = vxor.u32 %v331, 2147483648
    %v342 = vsel %vm340, %v341, %v332
    %v343 = vsel %vm336, %v339, %v342
    %v344 = vsel %vm333, nan, %v343
    %v345 = vand.u32 2147483647, %v168
    %vm346 = vcmp.le.f32.partialorder %v345, 0.7853982
    %vm347 = vcmp.lt.s32.totalorder %v168, 0
    %v348 = vand.u32 %v168, 2139095040
    %v349 = vshrl.u32 %v348, 23
    %v350 = vsub.s32 %v349, 127
    %v351 = vand.u32 2147483647, %v168
    %v352 = vand.u32 %v351, 8388607
    %v353 = vor.u32 %v352, 8388608
    %v354 = vsub.s32 0, %v353
    %v355 = vadd.s32 %v350, 1
    %vm356 = vcmp.gt.s32.totalorder %v355, 0
    %v357 = vsel %vm356, %v355, 0
    %v358 = vshrl.u32 %v357, 5
    %v359 = vand.u32 %v357, 31
    %v360 = vsub.s32 32, %v359
    %v361 = vshrl.u32 683565275, %v360
    %v362 = vshll.u32 683565275, %v359
    %v363 = vshrl.u32 2475754826, %v360
    %v364 = vor.u32 %v362, %v363
    %v365 = vshll.u32 2475754826, %v359
    %v366 = vshrl.u32 2131351028, %v360
    %v367 = vor.u32 %v365, %v366
    %v368 = vshll.u32 2131351028, %v359
    %v369 = vshrl.u32 2102212464, %v360
    %v370 = vor.u32 %v368, %v369
    %v371 = vshll.u32 2102212464, %v359
    %v372 = vshrl.u32 920167782, %v360
    %v373 = vor.u32 %v371, %v372
    %v374 = vshll.u32 920167782, %v359
    %v375 = vshrl.u32 1326507024, %v360
    %v376 = vor.u32 %v374, %v375
    %vm377 = vcmp.lt.s32.totalorder %v358, 1
    %vm378 = vcmp.lt.s32.totalorder %v358, 2
    %vm379 = vcmp.lt.s32.totalorder %v358, 3
    %vm380 = vcmp.lt.s32.totalorder %v358, 4
    %v381 = vsel %vm377, %v361, %v364
    %v382 = vsel %vm380, %v370, 2102212464
    %v383 = vsel %vm379, %v367, %v382
    %v384 = vsel %vm378, %v381, %v383
    %v385 = vsel %vm377, %v364, %v367
    %v386 = vsel %vm380, %v373, 920167782
    %v387 = vsel %vm379, %v370, %v386
    %v388 = vsel %vm378, %v385, %v387
    %v389 = vsel %vm377, %v367, %v370
    %v390 = vsel %vm380, %v376, 1326507024
    %v391 = vsel %vm379, %v373, %v390
    %v392 = vsel %vm378, %v389, %v391
    %v393 = vshll.u32 %v353, 8
    %v394 = vmul.u32.u64.compose %v393, %v392
    %v395 = vextract.low.u32 %v394
    %v396 = vextract.high.u32 %v394
    %v397 = vmul.u32.u64.compose %v393, %v388
    %v398 = vextract.low.u32 %v397
    %v399 = vextract.high.u32 %v397
    %v400 = vmul.u32 %v393, %v384
    %v401 = vadd.s32 %v396, %v398
    %vm402 = vc.u32 %v396, %v398
    %v403 = vadd.s32 %v399, 1
    %v404 = vsel %vm402, %v403, %v399
    %v405 = vadd.s32 %v400, %v404
    %v406 = vadd.s32 %v405, 536870912
    %v407 = vshrl.u32 %v406, 30
    %v408 = vshll.u32 %v407, 30
    %v409 = vsub.s32 %v405, %v408
    %vm410 = vcmp.lt.s32.totalorder %v409, 0
    %v411 = vsub.s32 0, %v409
    %v412 = vsel %vm410, %v411, %v409
    %v413 = vclz %v412
    %v414 = vsub.s32 %v413, 2
    %vm415 = vcmp.gt.s32.totalorder 0, %v414
    %v416 = vsel %vm415, 0, %v414
    %v417 = vsub.s32 32, %v416
    %v418 = vshll.u32 %v409, %v416
    %v419 = vshrl.u32 %v401, %v417
    %v420 = vor.u32 %v418, %v419
    %v421 = vsub.s32 4294967266, %v416
    %v422 = vadd.s32 %v421, 127
    %v423 = vshll.u32 %v422, 23
    %v424 = vor.u32 4788187, %v423
    %v425 = vand.u32 2147483647, %v424
    %v427 = vcvt.s32.f32 %v420
    %v428 = vmul.f32 %v427, %v425
    %v429 = vxor.u32 %v428, 2147483648
    %v430 = vsel %vm347, %v429, %v428
    %v431 = vsub.s32 4, %v407
    %v432 = vsel %vm347, %v431, %v407
    %v433 = vsel %vm346, %v168, %v430
    %v434 = vsel %vm346, 0, %v432
    %v435 = vcosq.f32.pop %v433
    %v436 = vsinq.f32.pop %v433
    %vm437 = vweird.f32 %v168
    %v438 = vadd.s32 %v434, 3
    %v439 = vand.u32 %v438, 3
    %vm440 = vcmp.lt.s32.totalorder %v439, 2
    %vm441 = vcmp.eq.s32.totalorder %v439, 0
    %v442 = vxor.u32 %v436, 2147483648
    %v443 = vsel %vm441, %v435, %v442
    %vm444 = vcmp.eq.s32.totalorder %v439, 2
    %v445 = vxor.u32 %v435, 2147483648
    %v446 = vsel %vm444, %v445, %v436
    %v447 = vsel %vm440, %v443, %v446
    %v448 = vsel %vm437, nan, %v447
    %v449 = vand.u32 2147483647, %v173
    %vm450 = vcmp.le.f32.partialorder %v449, 0.7853982
    %vm451 = vcmp.lt.s32.totalorder %v173, 0
    %v452 = vand.u32 %v173, 2139095040
    %v453 = vshrl.u32 %v452, 23
    %v454 = vsub.s32 %v453, 127
    %v455 = vand.u32 2147483647, %v173
    %v456 = vand.u32 %v455, 8388607
    %v457 = vor.u32 %v456, 8388608
    %v458 = vsub.s32 0, %v457
    %v459 = vadd.s32 %v454, 1
    %vm460 = vcmp.gt.s32.totalorder %v459, 0
    %v461 = vsel %vm460, %v459, 0
    %v462 = vshrl.u32 %v461, 5
    %v463 = vand.u32 %v461, 31
    %v464 = vsub.s32 32, %v463
    %v465 = vshrl.u32 683565275, %v464
    %v466 = vshll.u32 683565275, %v463
    %v467 = vshrl.u32 2475754826, %v464
    %v468 = vor.u32 %v466, %v467
    %v469 = vshll.u32 2475754826, %v463
    %v470 = vshrl.u32 2131351028, %v464
    %v471 = vor.u32 %v469, %v470
    %v472 = vshll.u32 2131351028, %v463
    %v473 = vshrl.u32 2102212464, %v464
    %v474 = vor.u32 %v472, %v473
    %v475 = vshll.u32 2102212464, %v463
    %v476 = vshrl.u32 920167782, %v464
    %v477 = vor.u32 %v475, %v476
    %v478 = vshll.u32 920167782, %v463
    %v479 = vshrl.u32 1326507024, %v464
    %v480 = vor.u32 %v478, %v479
    %vm481 = vcmp.lt.s32.totalorder %v462, 1
    %vm482 = vcmp.lt.s32.totalorder %v462, 2
    %vm483 = vcmp.lt.s32.totalorder %v462, 3
    %vm484 = vcmp.lt.s32.totalorder %v462, 4
    %v485 = vsel %vm481, %v465, %v468
    %v486 = vsel %vm484, %v474, 2102212464
    %v487 = vsel %vm483, %v471, %v486
    %v488 = vsel %vm482, %v485, %v487
    %v489 = vsel %vm481, %v468, %v471
    %v490 = vsel %vm484, %v477, 920167782
    %v491 = vsel %vm483, %v474, %v490
    %v492 = vsel %vm482, %v489, %v491
    %v493 = vsel %vm481, %v471, %v474
    %v494 = vsel %vm484, %v480, 1326507024
    %v495 = vsel %vm483, %v477, %v494
    %v496 = vsel %vm482, %v493, %v495
    %v497 = vshll.u32 %v457, 8
    %v498 = vmul.u32.u64.compose %v497, %v496
    %v499 = vextract.low.u32 %v498
    %v500 = vextract.high.u32 %v498
    %v501 = vmul.u32.u64.compose %v497, %v492
    %v502 = vextract.low.u32 %v501
    %v503 = vextract.high.u32 %v501
    %v504 = vmul.u32 %v497, %v488
    %v505 = vadd.s32 %v500, %v502
    %vm506 = vc.u32 %v500, %v502
    %v507 = vadd.s32 %v503, 1
    %v508 = vsel %vm506, %v507, %v503
    %v509 = vadd.s32 %v504, %v508
    %v510 = vadd.s32 %v509, 536870912
    %v511 = vshrl.u32 %v510, 30
    %v512 = vshll.u32 %v511, 30
    %v513 = vsub.s32 %v509, %v512
    %vm514 = vcmp.lt.s32.totalorder %v513, 0
    %v515 = vsub.s32 0, %v513
    %v516 = vsel %vm514, %v515, %v513
    %v517 = vclz %v516
    %v518 = vsub.s32 %v517, 2
    %vm519 = vcmp.gt.s32.totalorder 0, %v518
    %v520 = vsel %vm519, 0, %v518
    %v521 = vsub.s32 32, %v520
    %v522 = vshll.u32 %v513, %v520
    %v523 = vshrl.u32 %v505, %v521
    %v524 = vor.u32 %v522, %v523
    %v525 = vsub.s32 4294967266, %v520
    %v526 = vadd.s32 %v525, 127
    %v527 = vshll.u32 %v526, 23
    %v528 = vor.u32 4788187, %v527
    %v529 = vand.u32 2147483647, %v528
    %v531 = vcvt.s32.f32 %v524
    %v532 = vmul.f32 %v531, %v529
    %v533 = vxor.u32 %v532, 2147483648
    %v534 = vsel %vm451, %v533, %v532
    %v535 = vsub.s32 4, %v511
    %v536 = vsel %vm451, %v535, %v511
    %v537 = vsel %vm450, %v173, %v534
    %v538 = vsel %vm450, 0, %v536
    %v539 = vcosq.f32.pop %v537
    %v540 = vsinq.f32.pop %v537
    %vm541 = vweird.f32 %v173
    %v542 = vadd.s32 %v538, 3
    %v543 = vand.u32 %v542, 3
    %vm544 = vcmp.lt.s32.totalorder %v543, 2
    %vm545 = vcmp.eq.s32.totalorder %v543, 0
    %v546 = vxor.u32 %v540, 2147483648
    %v547 = vsel %vm545, %v539, %v546
    %vm548 = vcmp.eq.s32.totalorder %v543, 2
    %v549 = vxor.u32 %v539, 2147483648
    %v550 = vsel %vm548, %v549, %v540
    %v551 = vsel %vm544, %v547, %v550
    %v552 = vsel %vm541, nan, %v551
    %v553 = vand.u32 2147483647, %v178
    %vm554 = vcmp.le.f32.partialorder %v553, 0.7853982
    %vm555 = vcmp.lt.s32.totalorder %v178, 0
    %v556 = vand.u32 %v178, 2139095040
    %v557 = vshrl.u32 %v556, 23
    %v558 = vsub.s32 %v557, 127
    %v559 = vand.u32 2147483647, %v178
    %v560 = vand.u32 %v559, 8388607
    %v561 = vor.u32 %v560, 8388608
    %v562 = vsub.s32 0, %v561
    %v563 = vadd.s32 %v558, 1
    %vm564 = vcmp.gt.s32.totalorder %v563, 0
    %v565 = vsel %vm564, %v563, 0
    %v566 = vshrl.u32 %v565, 5
    %v567 = vand.u32 %v565, 31
    %v568 = vsub.s32 32, %v567
    %v569 = vshrl.u32 683565275, %v568
    %v570 = vshll.u32 683565275, %v567
    %v571 = vshrl.u32 2475754826, %v568
    %v572 = vor.u32 %v570, %v571
    %v573 = vshll.u32 2475754826, %v567
    %v574 = vshrl.u32 2131351028, %v568
    %v575 = vor.u32 %v573, %v574
    %v576 = vshll.u32 2131351028, %v567
    %v577 = vshrl.u32 2102212464, %v568
    %v578 = vor.u32 %v576, %v577
    %v579 = vshll.u32 2102212464, %v567
    %v580 = vshrl.u32 920167782, %v568
    %v581 = vor.u32 %v579, %v580
    %v582 = vshll.u32 920167782, %v567
    %v583 = vshrl.u32 1326507024, %v568
    %v584 = vor.u32 %v582, %v583
    %vm585 = vcmp.lt.s32.totalorder %v566, 1
    %vm586 = vcmp.lt.s32.totalorder %v566, 2
    %vm587 = vcmp.lt.s32.totalorder %v566, 3
    %vm588 = vcmp.lt.s32.totalorder %v566, 4
    %v589 = vsel %vm585, %v569, %v572
    %v590 = vsel %vm588, %v578, 2102212464
    %v591 = vsel %vm587, %v575, %v590
    %v592 = vsel %vm586, %v589, %v591
    %v593 = vsel %vm585, %v572, %v575
    %v594 = vsel %vm588, %v581, 920167782
    %v595 = vsel %vm587, %v578, %v594
    %v596 = vsel %vm586, %v593, %v595
    %v597 = vsel %vm585, %v575, %v578
    %v598 = vsel %vm588, %v584, 1326507024
    %v599 = vsel %vm587, %v581, %v598
    %v600 = vsel %vm586, %v597, %v599
    %v601 = vshll.u32 %v561, 8
    %v602 = vmul.u32.u64.compose %v601, %v600
    %v603 = vextract.low.u32 %v602
    %v604 = vextract.high.u32 %v602
    %v605 = vmul.u32.u64.compose %v601, %v596
    %v606 = vextract.low.u32 %v605
    %v607 = vextract.high.u32 %v605
    %v608 = vmul.u32 %v601, %v592
    %v609 = vadd.s32 %v604, %v606
    %vm610 = vc.u32 %v604, %v606
    %v611 = vadd.s32 %v607, 1
    %v612 = vsel %vm610, %v611, %v607
    %v613 = vadd.s32 %v608, %v612
    %v614 = vadd.s32 %v613, 536870912
    %v615 = vshrl.u32 %v614, 30
    %v616 = vshll.u32 %v615, 30
    %v617 = vsub.s32 %v613, %v616
    %vm618 = vcmp.lt.s32.totalorder %v617, 0
    %v619 = vsub.s32 0, %v617
    %v620 = vsel %vm618, %v619, %v617
    %v621 = vclz %v620
    %v622 = vsub.s32 %v621, 2
    %vm623 = vcmp.gt.s32.totalorder 0, %v622
    %v624 = vsel %vm623, 0, %v622
    %v625 = vsub.s32 32, %v624
    %v626 = vshll.u32 %v617, %v624
    %v627 = vshrl.u32 %v609, %v625
    %v628 = vor.u32 %v626, %v627
    %v629 = vsub.s32 4294967266, %v624
    %v630 = vadd.s32 %v629, 127
    %v631 = vshll.u32 %v630, 23
    %v632 = vor.u32 4788187, %v631
    %v633 = vand.u32 2147483647, %v632
    %v635 = vcvt.s32.f32 %v628
    %v636 = vmul.f32 %v635, %v633
    %v637 = vxor.u32 %v636, 2147483648
    %v638 = vsel %vm555, %v637, %v636
    %v639 = vsub.s32 4, %v615
    %v640 = vsel %vm555, %v639, %v615
    %v641 = vsel %vm554, %v178, %v638
    %v642 = vsel %vm554, 0, %v640
    %v643 = vcosq.f32.pop %v641
    %v644 = vsinq.f32.pop %v641
    %vm645 = vweird.f32 %v178
    %v646 = vadd.s32 %v642, 3
    %v647 = vand.u32 %v646, 3
    %vm648 = vcmp.lt.s32.totalorder %v647, 2
    %vm649 = vcmp.eq.s32.totalorder %v647, 0
    %v650 = vxor.u32 %v644, 2147483648
    %v651 = vsel %vm649, %v643, %v650
    %vm652 = vcmp.eq.s32.totalorder %v647, 2
    %v653 = vxor.u32 %v643, 2147483648
    %v654 = vsel %vm652, %v653, %v644
    %v655 = vsel %vm648, %v651, %v654
    %v656 = vsel %vm645, nan, %v655
    %v657 = vand.u32 2147483647, %v183
    %vm658 = vcmp.le.f32.partialorder %v657, 0.7853982
    %vm659 = vcmp.lt.s32.totalorder %v183, 0
    %v660 = vand.u32 %v183, 2139095040
    %v661 = vshrl.u32 %v660, 23
    %v662 = vsub.s32 %v661, 127
    %v663 = vand.u32 2147483647, %v183
    %v664 = vand.u32 %v663, 8388607
    %v665 = vor.u32 %v664, 8388608
    %v666 = vsub.s32 0, %v665
    %v667 = vadd.s32 %v662, 1
    %vm668 = vcmp.gt.s32.totalorder %v667, 0
    %v669 = vsel %vm668, %v667, 0
    %v670 = vshrl.u32 %v669, 5
    %v671 = vand.u32 %v669, 31
    %v672 = vsub.s32 32, %v671
    %v673 = vshrl.u32 683565275, %v672
    %v674 = vshll.u32 683565275, %v671
    %v675 = vshrl.u32 2475754826, %v672
    %v676 = vor.u32 %v674, %v675
    %v677 = vshll.u32 2475754826, %v671
    %v678 = vshrl.u32 2131351028, %v672
    %v679 = vor.u32 %v677, %v678
    %v680 = vshll.u32 2131351028, %v671
    %v681 = vshrl.u32 2102212464, %v672
    %v682 = vor.u32 %v680, %v681
    %v683 = vshll.u32 2102212464, %v671
    %v684 = vshrl.u32 920167782, %v672
    %v685 = vor.u32 %v683, %v684
    %v686 = vshll.u32 920167782, %v671
    %v687 = vshrl.u32 1326507024, %v672
    %v688 = vor.u32 %v686, %v687
    %vm689 = vcmp.lt.s32.totalorder %v670, 1
    %vm690 = vcmp.lt.s32.totalorder %v670, 2
    %vm691 = vcmp.lt.s32.totalorder %v670, 3
    %vm692 = vcmp.lt.s32.totalorder %v670, 4
    %v693 = vsel %vm689, %v673, %v676
    %v694 = vsel %vm692, %v682, 2102212464
    %v695 = vsel %vm691, %v679, %v694
    %v696 = vsel %vm690, %v693, %v695
    %v697 = vsel %vm689, %v676, %v679
    %v698 = vsel %vm692, %v685, 920167782
    %v699 = vsel %vm691, %v682, %v698
    %v700 = vsel %vm690, %v697, %v699
    %v701 = vsel %vm689, %v679, %v682
    %v702 = vsel %vm692, %v688, 1326507024
    %v703 = vsel %vm691, %v685, %v702
    %v704 = vsel %vm690, %v701, %v703
    %v705 = vshll.u32 %v665, 8
    %v706 = vmul.u32.u64.compose %v705, %v704
    %v707 = vextract.low.u32 %v706
    %v708 = vextract.high.u32 %v706
    %v709 = vmul.u32.u64.compose %v705, %v700
    %v710 = vextract.low.u32 %v709
    %v711 = vextract.high.u32 %v709
    %v712 = vmul.u32 %v705, %v696
    %v713 = vadd.s32 %v708, %v710
    %vm714 = vc.u32 %v708, %v710
    %v715 = vadd.s32 %v711, 1
    %v716 = vsel %vm714, %v715, %v711
    %v717 = vadd.s32 %v712, %v716
    %v718 = vadd.s32 %v717, 536870912
    %v719 = vshrl.u32 %v718, 30
    %v720 = vshll.u32 %v719, 30
    %v721 = vsub.s32 %v717, %v720
    %vm722 = vcmp.lt.s32.totalorder %v721, 0
    %v723 = vsub.s32 0, %v721
    %v724 = vsel %vm722, %v723, %v721
    %v725 = vclz %v724
    %v726 = vsub.s32 %v725, 2
    %vm727 = vcmp.gt.s32.totalorder 0, %v726
    %v728 = vsel %vm727, 0, %v726
    %v729 = vsub.s32 32, %v728
    %v730 = vshll.u32 %v721, %v728
    %v731 = vshrl.u32 %v713, %v729
    %v732 = vor.u32 %v730, %v731
    %v733 = vsub.s32 4294967266, %v728
    %v734 = vadd.s32 %v733, 127
    %v735 = vshll.u32 %v734, 23
    %v736 = vor.u32 4788187, %v735
    %v737 = vand.u32 2147483647, %v736
    %v739 = vcvt.s32.f32 %v732
    %v740 = vmul.f32 %v739, %v737
    %v741 = vxor.u32 %v740, 2147483648
    %v742 = vsel %vm659, %v741, %v740
    %v743 = vsub.s32 4, %v719
    %v744 = vsel %vm659, %v743, %v719
    %v745 = vsel %vm658, %v183, %v742
    %v746 = vsel %vm658, 0, %v744
    %v747 = vcosq.f32.pop %v745
    %v748 = vsinq.f32.pop %v745
    %vm749 = vweird.f32 %v183
    %v750 = vadd.s32 %v746, 3
    %v751 = vand.u32 %v750, 3
    %vm752 = vcmp.lt.s32.totalorder %v751, 2
    %vm753 = vcmp.eq.s32.totalorder %v751, 0
    %v754 = vxor.u32 %v748, 2147483648
    %v755 = vsel %vm753, %v747, %v754
    %vm756 = vcmp.eq.s32.totalorder %v751, 2
    %v757 = vxor.u32 %v747, 2147483648
    %v758 = vsel %vm756, %v757, %v748
    %v759 = vsel %vm752, %v755, %v758
    %v760 = vsel %vm749, nan, %v759
    %v761 = vand.u32 2147483647, %v188
    %vm762 = vcmp.le.f32.partialorder %v761, 0.7853982
    %vm763 = vcmp.lt.s32.totalorder %v188, 0
    %v764 = vand.u32 %v188, 2139095040
    %v765 = vshrl.u32 %v764, 23
    %v766 = vsub.s32 %v765, 127
    %v767 = vand.u32 2147483647, %v188
    %v768 = vand.u32 %v767, 8388607
    %v769 = vor.u32 %v768, 8388608
    %v770 = vsub.s32 0, %v769
    %v771 = vadd.s32 %v766, 1
    %vm772 = vcmp.gt.s32.totalorder %v771, 0
    %v773 = vsel %vm772, %v771, 0
    %v774 = vshrl.u32 %v773, 5
    %v775 = vand.u32 %v773, 31
    %v776 = vsub.s32 32, %v775
    %v777 = vshrl.u32 683565275, %v776
    %v778 = vshll.u32 683565275, %v775
    %v779 = vshrl.u32 2475754826, %v776
    %v780 = vor.u32 %v778, %v779
    %v781 = vshll.u32 2475754826, %v775
    %v782 = vshrl.u32 2131351028, %v776
    %v783 = vor.u32 %v781, %v782
    %v784 = vshll.u32 2131351028, %v775
    %v785 = vshrl.u32 2102212464, %v776
    %v786 = vor.u32 %v784, %v785
    %v787 = vshll.u32 2102212464, %v775
    %v788 = vshrl.u32 920167782, %v776
    %v789 = vor.u32 %v787, %v788
    %v790 = vshll.u32 920167782, %v775
    %v791 = vshrl.u32 1326507024, %v776
    %v792 = vor.u32 %v790, %v791
    %vm793 = vcmp.lt.s32.totalorder %v774, 1
    %vm794 = vcmp.lt.s32.totalorder %v774, 2
    %vm795 = vcmp.lt.s32.totalorder %v774, 3
    %vm796 = vcmp.lt.s32.totalorder %v774, 4
    %v797 = vsel %vm793, %v777, %v780
    %v798 = vsel %vm796, %v786, 2102212464
    %v799 = vsel %vm795, %v783, %v798
    %v800 = vsel %vm794, %v797, %v799
    %v801 = vsel %vm793, %v780, %v783
    %v802 = vsel %vm796, %v789, 920167782
    %v803 = vsel %vm795, %v786, %v802
    %v804 = vsel %vm794, %v801, %v803
    %v805 = vsel %vm793, %v783, %v786
    %v806 = vsel %vm796, %v792, 1326507024
    %v807 = vsel %vm795, %v789, %v806
    %v808 = vsel %vm794, %v805, %v807
    %v809 = vshll.u32 %v769, 8
    %v810 = vmul.u32.u64.compose %v809, %v808
    %v811 = vextract.low.u32 %v810
    %v812 = vextract.high.u32 %v810
    %v813 = vmul.u32.u64.compose %v809, %v804
    %v814 = vextract.low.u32 %v813
    %v815 = vextract.high.u32 %v813
    %v816 = vmul.u32 %v809, %v800
    %v817 = vadd.s32 %v812, %v814
    %vm818 = vc.u32 %v812, %v814
    %v819 = vadd.s32 %v815, 1
    %v820 = vsel %vm818, %v819, %v815
    %v821 = vadd.s32 %v816, %v820
    %v822 = vadd.s32 %v821, 536870912
    %v823 = vshrl.u32 %v822, 30
    %v824 = vshll.u32 %v823, 30
    %v825 = vsub.s32 %v821, %v824
    %vm826 = vcmp.lt.s32.totalorder %v825, 0
    %v827 = vsub.s32 0, %v825
    %v828 = vsel %vm826, %v827, %v825
    %v829 = vclz %v828
    %v830 = vsub.s32 %v829, 2
    %vm831 = vcmp.gt.s32.totalorder 0, %v830
    %v832 = vsel %vm831, 0, %v830
    %v833 = vsub.s32 32, %v832
    %v834 = vshll.u32 %v825, %v832
    %v835 = vshrl.u32 %v817, %v833
    %v836 = vor.u32 %v834, %v835
    %v837 = vsub.s32 4294967266, %v832
    %v838 = vadd.s32 %v837, 127
    %v839 = vshll.u32 %v838, 23
    %v840 = vor.u32 4788187, %v839
    %v841 = vand.u32 2147483647, %v840
    %v843 = vcvt.s32.f32 %v836
    %v844 = vmul.f32 %v843, %v841
    %v845 = vxor.u32 %v844, 2147483648
    %v846 = vsel %vm763, %v845, %v844
    %v847 = vsub.s32 4, %v823
    %v848 = vsel %vm763, %v847, %v823
    %v849 = vsel %vm762, %v188, %v846
    %v850 = vsel %vm762, 0, %v848
    %v851 = vcosq.f32.pop %v849
    %v852 = vsinq.f32.pop %v849
    %vm853 = vweird.f32 %v188
    %v854 = vadd.s32 %v850, 3
    %v855 = vand.u32 %v854, 3
    %vm856 = vcmp.lt.s32.totalorder %v855, 2
    %vm857 = vcmp.eq.s32.totalorder %v855, 0
    %v858 = vxor.u32 %v852, 2147483648
    %v859 = vsel %vm857, %v851, %v858
    %vm860 = vcmp.eq.s32.totalorder %v855, 2
    %v861 = vxor.u32 %v851, 2147483648
    %v862 = vsel %vm860, %v861, %v852
    %v863 = vsel %vm856, %v859, %v862
    %v864 = vsel %vm853, nan, %v863
    %v865 = vand.u32 2147483647, %v193
    %vm866 = vcmp.le.f32.partialorder %v865, 0.7853982
    %vm867 = vcmp.lt.s32.totalorder %v193, 0
    %v868 = vand.u32 %v193, 2139095040
    %v869 = vshrl.u32 %v868, 23
    %v870 = vsub.s32 %v869, 127
    %v871 = vand.u32 2147483647, %v193
    %v872 = vand.u32 %v871, 8388607
    %v873 = vor.u32 %v872, 8388608
    %v874 = vsub.s32 0, %v873
    %v875 = vadd.s32 %v870, 1
    %vm876 = vcmp.gt.s32.totalorder %v875, 0
    %v877 = vsel %vm876, %v875, 0
    %v878 = vshrl.u32 %v877, 5
    %v879 = vand.u32 %v877, 31
    %v880 = vsub.s32 32, %v879
    %v881 = vshrl.u32 683565275, %v880
    %v882 = vshll.u32 683565275, %v879
    %v883 = vshrl.u32 2475754826, %v880
    %v884 = vor.u32 %v882, %v883
    %v885 = vshll.u32 2475754826, %v879
    %v886 = vshrl.u32 2131351028, %v880
    %v887 = vor.u32 %v885, %v886
    %v888 = vshll.u32 2131351028, %v879
    %v889 = vshrl.u32 2102212464, %v880
    %v890 = vor.u32 %v888, %v889
    %v891 = vshll.u32 2102212464, %v879
    %v892 = vshrl.u32 920167782, %v880
    %v893 = vor.u32 %v891, %v892
    %v894 = vshll.u32 920167782, %v879
    %v895 = vshrl.u32 1326507024, %v880
    %v896 = vor.u32 %v894, %v895
    %vm897 = vcmp.lt.s32.totalorder %v878, 1
    %vm898 = vcmp.lt.s32.totalorder %v878, 2
    %vm899 = vcmp.lt.s32.totalorder %v878, 3
    %vm900 = vcmp.lt.s32.totalorder %v878, 4
    %v901 = vsel %vm897, %v881, %v884
    %v902 = vsel %vm900, %v890, 2102212464
    %v903 = vsel %vm899, %v887, %v902
    %v904 = vsel %vm898, %v901, %v903
    %v905 = vsel %vm897, %v884, %v887
    %v906 = vsel %vm900, %v893, 920167782
    %v907 = vsel %vm899, %v890, %v906
    %v908 = vsel %vm898, %v905, %v907
    %v909 = vsel %vm897, %v887, %v890
    %v910 = vsel %vm900, %v896, 1326507024
    %v911 = vsel %vm899, %v893, %v910
    %v912 = vsel %vm898, %v909, %v911
    %v913 = vshll.u32 %v873, 8
    %v914 = vmul.u32.u64.compose %v913, %v912
    %v915 = vextract.low.u32 %v914
    %v916 = vextract.high.u32 %v914
    %v917 = vmul.u32.u64.compose %v913, %v908
    %v918 = vextract.low.u32 %v917
    %v919 = vextract.high.u32 %v917
    %v920 = vmul.u32 %v913, %v904
    %v921 = vadd.s32 %v916, %v918
    %vm922 = vc.u32 %v916, %v918
    %v923 = vadd.s32 %v919, 1
    %v924 = vsel %vm922, %v923, %v919
    %v925 = vadd.s32 %v920, %v924
    %v926 = vadd.s32 %v925, 536870912
    %v927 = vshrl.u32 %v926, 30
    %v928 = vshll.u32 %v927, 30
    %v929 = vsub.s32 %v925, %v928
    %vm930 = vcmp.lt.s32.totalorder %v929, 0
    %v931 = vsub.s32 0, %v929
    %v932 = vsel %vm930, %v931, %v929
    %v933 = vclz %v932
    %v934 = vsub.s32 %v933, 2
    %vm935 = vcmp.gt.s32.totalorder 0, %v934
    %v936 = vsel %vm935, 0, %v934
    %v937 = vsub.s32 32, %v936
    %v938 = vshll.u32 %v929, %v936
    %v939 = vshrl.u32 %v921, %v937
    %v940 = vor.u32 %v938, %v939
    %v941 = vsub.s32 4294967266, %v936
    %v942 = vadd.s32 %v941, 127
    %v943 = vshll.u32 %v942, 23
    %v944 = vor.u32 4788187, %v943
    %v945 = vand.u32 2147483647, %v944
    %v947 = vcvt.s32.f32 %v940
    %v948 = vmul.f32 %v947, %v945
    %v949 = vxor.u32 %v948, 2147483648
    %v950 = vsel %vm867, %v949, %v948
    %v951 = vsub.s32 4, %v927
    %v952 = vsel %vm867, %v951, %v927
    %v953 = vsel %vm866, %v193, %v950
    %v954 = vsel %vm866, 0, %v952
    %v955 = vcosq.f32.pop %v953
    %v956 = vsinq.f32.pop %v953
    %vm957 = vweird.f32 %v193
    %v958 = vadd.s32 %v954, 3
    %v959 = vand.u32 %v958, 3
    %vm960 = vcmp.lt.s32.totalorder %v959, 2
    %vm961 = vcmp.eq.s32.totalorder %v959, 0
    %v962 = vxor.u32 %v956, 2147483648
    %v963 = vsel %vm961, %v955, %v962
    %vm964 = vcmp.eq.s32.totalorder %v959, 2
    %v965 = vxor.u32 %v955, 2147483648
    %v966 = vsel %vm964, %v965, %v956
    %v967 = vsel %vm960, %v963, %v966
    %v968 = vsel %vm957, nan, %v967
    %v969 = vand.u32 2147483647, %v198
    %vm970 = vcmp.le.f32.partialorder %v969, 0.7853982
    %vm971 = vcmp.lt.s32.totalorder %v198, 0
    %v972 = vand.u32 %v198, 2139095040
    %v973 = vshrl.u32 %v972, 23
    %v974 = vsub.s32 %v973, 127
    %v975 = vand.u32 2147483647, %v198
    %v976 = vand.u32 %v975, 8388607
    %v977 = vor.u32 %v976, 8388608
    %v978 = vsub.s32 0, %v977
    %v979 = vadd.s32 %v974, 1
    %vm980 = vcmp.gt.s32.totalorder %v979, 0
    %v981 = vsel %vm980, %v979, 0
    %v982 = vshrl.u32 %v981, 5
    %v983 = vand.u32 %v981, 31
    %v984 = vsub.s32 32, %v983
    %v985 = vshrl.u32 683565275, %v984
    %v986 = vshll.u32 683565275, %v983
    %v987 = vshrl.u32 2475754826, %v984
    %v988 = vor.u32 %v986, %v987
    %v989 = vshll.u32 2475754826, %v983
    %v990 = vshrl.u32 2131351028, %v984
    %v991 = vor.u32 %v989, %v990
    %v992 = vshll.u32 2131351028, %v983
    %v993 = vshrl.u32 2102212464, %v984
    %v994 = vor.u32 %v992, %v993
    %v995 = vshll.u32 2102212464, %v983
    %v996 = vshrl.u32 920167782, %v984
    %v997 = vor.u32 %v995, %v996
    %v998 = vshll.u32 920167782, %v983
    %v999 = vshrl.u32 1326507024, %v984
    %v1000 = vor.u32 %v998, %v999
    %vm1001 = vcmp.lt.s32.totalorder %v982, 1
    %vm1002 = vcmp.lt.s32.totalorder %v982, 2
    %vm1003 = vcmp.lt.s32.totalorder %v982, 3
    %vm1004 = vcmp.lt.s32.totalorder %v982, 4
    %v1005 = vsel %vm1001, %v985, %v988
    %v1006 = vsel %vm1004, %v994, 2102212464
    %v1007 = vsel %vm1003, %v991, %v1006
    %v1008 = vsel %vm1002, %v1005, %v1007
    %v1009 = vsel %vm1001, %v988, %v991
    %v1010 = vsel %vm1004, %v997, 920167782
    %v1011 = vsel %vm1003, %v994, %v1010
    %v1012 = vsel %vm1002, %v1009, %v1011
    %v1013 = vsel %vm1001, %v991, %v994
    %v1014 = vsel %vm1004, %v1000, 1326507024
    %v1015 = vsel %vm1003, %v997, %v1014
    %v1016 = vsel %vm1002, %v1013, %v1015
    %v1017 = vshll.u32 %v977, 8
    %v1018 = vmul.u32.u64.compose %v1017, %v1016
    %v1019 = vextract.low.u32 %v1018
    %v1020 = vextract.high.u32 %v1018
    %v1021 = vmul.u32.u64.compose %v1017, %v1012
    %v1022 = vextract.low.u32 %v1021
    %v1023 = vextract.high.u32 %v1021
    %v1024 = vmul.u32 %v1017, %v1008
    %v1025 = vadd.s32 %v1020, %v1022
    %vm1026 = vc.u32 %v1020, %v1022
    %v1027 = vadd.s32 %v1023, 1
    %v1028 = vsel %vm1026, %v1027, %v1023
    %v1029 = vadd.s32 %v1024, %v1028
    %v1030 = vadd.s32 %v1029, 536870912
    %v1031 = vshrl.u32 %v1030, 30
    %v1032 = vshll.u32 %v1031, 30
    %v1033 = vsub.s32 %v1029, %v1032
    %vm1034 = vcmp.lt.s32.totalorder %v1033, 0
    %v1035 = vsub.s32 0, %v1033
    %v1036 = vsel %vm1034, %v1035, %v1033
    %v1037 = vclz %v1036
    %v1038 = vsub.s32 %v1037, 2
    %vm1039 = vcmp.gt.s32.totalorder 0, %v1038
    %v1040 = vsel %vm1039, 0, %v1038
    %v1041 = vsub.s32 32, %v1040
    %v1042 = vshll.u32 %v1033, %v1040
    %v1043 = vshrl.u32 %v1025, %v1041
    %v1044 = vor.u32 %v1042, %v1043
    %v1045 = vsub.s32 4294967266, %v1040
    %v1046 = vadd.s32 %v1045, 127
    %v1047 = vshll.u32 %v1046, 23
    %v1048 = vor.u32 4788187, %v1047
    %v1049 = vand.u32 2147483647, %v1048
    %v1051 = vcvt.s32.f32 %v1044
    %v1052 = vmul.f32 %v1051, %v1049
    %v1053 = vxor.u32 %v1052, 2147483648
    %v1054 = vsel %vm971, %v1053, %v1052
    %v1055 = vsub.s32 4, %v1031
    %v1056 = vsel %vm971, %v1055, %v1031
    %v1057 = vsel %vm970, %v198, %v1054
    %v1058 = vsel %vm970, 0, %v1056
    %v1059 = vcosq.f32.pop %v1057
    %v1060 = vsinq.f32.pop %v1057
    %vm1061 = vweird.f32 %v198
    %v1062 = vadd.s32 %v1058, 3
    %v1063 = vand.u32 %v1062, 3
    %vm1064 = vcmp.lt.s32.totalorder %v1063, 2
    %vm1065 = vcmp.eq.s32.totalorder %v1063, 0
    %v1066 = vxor.u32 %v1060, 2147483648
    %v1067 = vsel %vm1065, %v1059, %v1066
    %vm1068 = vcmp.eq.s32.totalorder %v1063, 2
    %v1069 = vxor.u32 %v1059, 2147483648
    %v1070 = vsel %vm1068, %v1069, %v1060
    %v1071 = vsel %vm1064, %v1067, %v1070
    %v1072 = vsel %vm1061, nan, %v1071
    %v1073 = vand.u32 2147483647, %v203
    %vm1074 = vcmp.le.f32.partialorder %v1073, 0.7853982
    %vm1075 = vcmp.lt.s32.totalorder %v203, 0
    %v1076 = vand.u32 %v203, 2139095040
    %v1077 = vshrl.u32 %v1076, 23
    %v1078 = vsub.s32 %v1077, 127
    %v1079 = vand.u32 2147483647, %v203
    %v1080 = vand.u32 %v1079, 8388607
    %v1081 = vor.u32 %v1080, 8388608
    %v1082 = vsub.s32 0, %v1081
    %v1083 = vadd.s32 %v1078, 1
    %vm1084 = vcmp.gt.s32.totalorder %v1083, 0
    %v1085 = vsel %vm1084, %v1083, 0
    %v1086 = vshrl.u32 %v1085, 5
    %v1087 = vand.u32 %v1085, 31
    %v1088 = vsub.s32 32, %v1087
    %v1089 = vshrl.u32 683565275, %v1088
    %v1090 = vshll.u32 683565275, %v1087
    %v1091 = vshrl.u32 2475754826, %v1088
    %v1092 = vor.u32 %v1090, %v1091
    %v1093 = vshll.u32 2475754826, %v1087
    %v1094 = vshrl.u32 2131351028, %v1088
    %v1095 = vor.u32 %v1093, %v1094
    %v1096 = vshll.u32 2131351028, %v1087
    %v1097 = vshrl.u32 2102212464, %v1088
    %v1098 = vor.u32 %v1096, %v1097
    %v1099 = vshll.u32 2102212464, %v1087
    %v1100 = vshrl.u32 920167782, %v1088
    %v1101 = vor.u32 %v1099, %v1100
    %v1102 = vshll.u32 920167782, %v1087
    %v1103 = vshrl.u32 1326507024, %v1088
    %v1104 = vor.u32 %v1102, %v1103
    %vm1105 = vcmp.lt.s32.totalorder %v1086, 1
    %vm1106 = vcmp.lt.s32.totalorder %v1086, 2
    %vm1107 = vcmp.lt.s32.totalorder %v1086, 3
    %vm1108 = vcmp.lt.s32.totalorder %v1086, 4
    %v1109 = vsel %vm1105, %v1089, %v1092
    %v1110 = vsel %vm1108, %v1098, 2102212464
    %v1111 = vsel %vm1107, %v1095, %v1110
    %v1112 = vsel %vm1106, %v1109, %v1111
    %v1113 = vsel %vm1105, %v1092, %v1095
    %v1114 = vsel %vm1108, %v1101, 920167782
    %v1115 = vsel %vm1107, %v1098, %v1114
    %v1116 = vsel %vm1106, %v1113, %v1115
    %v1117 = vsel %vm1105, %v1095, %v1098
    %v1118 = vsel %vm1108, %v1104, 1326507024
    %v1119 = vsel %vm1107, %v1101, %v1118
    %v1120 = vsel %vm1106, %v1117, %v1119
    %v1121 = vshll.u32 %v1081, 8
    %v1122 = vmul.u32.u64.compose %v1121, %v1120
    %v1123 = vextract.low.u32 %v1122
    %v1124 = vextract.high.u32 %v1122
    %v1125 = vmul.u32.u64.compose %v1121, %v1116
    %v1126 = vextract.low.u32 %v1125
    %v1127 = vextract.high.u32 %v1125
    %v1128 = vmul.u32 %v1121, %v1112
    %v1129 = vadd.s32 %v1124, %v1126
    %vm1130 = vc.u32 %v1124, %v1126
    %v1131 = vadd.s32 %v1127, 1
    %v1132 = vsel %vm1130, %v1131, %v1127
    %v1133 = vadd.s32 %v1128, %v1132
    %v1134 = vadd.s32 %v1133, 536870912
    %v1135 = vshrl.u32 %v1134, 30
    %v1136 = vshll.u32 %v1135, 30
    %v1137 = vsub.s32 %v1133, %v1136
    %vm1138 = vcmp.lt.s32.totalorder %v1137, 0
    %v1139 = vsub.s32 0, %v1137
    %v1140 = vsel %vm1138, %v1139, %v1137
    %v1141 = vclz %v1140
    %v1142 = vsub.s32 %v1141, 2
    %vm1143 = vcmp.gt.s32.totalorder 0, %v1142
    %v1144 = vsel %vm1143, 0, %v1142
    %v1145 = vsub.s32 32, %v1144
    %v1146 = vshll.u32 %v1137, %v1144
    %v1147 = vshrl.u32 %v1129, %v1145
    %v1148 = vor.u32 %v1146, %v1147
    %v1149 = vsub.s32 4294967266, %v1144
    %v1150 = vadd.s32 %v1149, 127
    %v1151 = vshll.u32 %v1150, 23
    %v1152 = vor.u32 4788187, %v1151
    %v1153 = vand.u32 2147483647, %v1152
    %v1155 = vcvt.s32.f32 %v1148
    %v1156 = vmul.f32 %v1155, %v1153
    %v1157 = vxor.u32 %v1156, 2147483648
    %v1158 = vsel %vm1075, %v1157, %v1156
    %v1159 = vsub.s32 4, %v1135
    %v1160 = vsel %vm1075, %v1159, %v1135
    %v1161 = vsel %vm1074, %v203, %v1158
    %v1162 = vsel %vm1074, 0, %v1160
    %v1163 = vcosq.f32.pop %v1161
    %v1164 = vsinq.f32.pop %v1161
    %vm1165 = vweird.f32 %v203
    %v1166 = vadd.s32 %v1162, 3
    %v1167 = vand.u32 %v1166, 3
    %vm1168 = vcmp.lt.s32.totalorder %v1167, 2
    %vm1169 = vcmp.eq.s32.totalorder %v1167, 0
    %v1170 = vxor.u32 %v1164, 2147483648
    %v1171 = vsel %vm1169, %v1163, %v1170
    %vm1172 = vcmp.eq.s32.totalorder %v1167, 2
    %v1173 = vxor.u32 %v1163, 2147483648
    %v1174 = vsel %vm1172, %v1173, %v1164
    %v1175 = vsel %vm1168, %v1171, %v1174
    %v1176 = vsel %vm1165, nan, %v1175
    %v1177 = vand.u32 2147483647, %v208
    %vm1178 = vcmp.le.f32.partialorder %v1177, 0.7853982
    %vm1179 = vcmp.lt.s32.totalorder %v208, 0
    %v1180 = vand.u32 %v208, 2139095040
    %v1181 = vshrl.u32 %v1180, 23
    %v1182 = vsub.s32 %v1181, 127
    %v1183 = vand.u32 2147483647, %v208
    %v1184 = vand.u32 %v1183, 8388607
    %v1185 = vor.u32 %v1184, 8388608
    %v1186 = vsub.s32 0, %v1185
    %v1187 = vadd.s32 %v1182, 1
    %vm1188 = vcmp.gt.s32.totalorder %v1187, 0
    %v1189 = vsel %vm1188, %v1187, 0
    %v1190 = vshrl.u32 %v1189, 5
    %v1191 = vand.u32 %v1189, 31
    %v1192 = vsub.s32 32, %v1191
    %v1193 = vshrl.u32 683565275, %v1192
    %v1194 = vshll.u32 683565275, %v1191
    %v1195 = vshrl.u32 2475754826, %v1192
    %v1196 = vor.u32 %v1194, %v1195
    %v1197 = vshll.u32 2475754826, %v1191
    %v1198 = vshrl.u32 2131351028, %v1192
    %v1199 = vor.u32 %v1197, %v1198
    %v1200 = vshll.u32 2131351028, %v1191
    %v1201 = vshrl.u32 2102212464, %v1192
    %v1202 = vor.u32 %v1200, %v1201
    %v1203 = vshll.u32 2102212464, %v1191
    %v1204 = vshrl.u32 920167782, %v1192
    %v1205 = vor.u32 %v1203, %v1204
    %v1206 = vshll.u32 920167782, %v1191
    %v1207 = vshrl.u32 1326507024, %v1192
    %v1208 = vor.u32 %v1206, %v1207
    %vm1209 = vcmp.lt.s32.totalorder %v1190, 1
    %vm1210 = vcmp.lt.s32.totalorder %v1190, 2
    %vm1211 = vcmp.lt.s32.totalorder %v1190, 3
    %vm1212 = vcmp.lt.s32.totalorder %v1190, 4
    %v1213 = vsel %vm1209, %v1193, %v1196
    %v1214 = vsel %vm1212, %v1202, 2102212464
    %v1215 = vsel %vm1211, %v1199, %v1214
    %v1216 = vsel %vm1210, %v1213, %v1215
    %v1217 = vsel %vm1209, %v1196, %v1199
    %v1218 = vsel %vm1212, %v1205, 920167782
    %v1219 = vsel %vm1211, %v1202, %v1218
    %v1220 = vsel %vm1210, %v1217, %v1219
    %v1221 = vsel %vm1209, %v1199, %v1202
    %v1222 = vsel %vm1212, %v1208, 1326507024
    %v1223 = vsel %vm1211, %v1205, %v1222
    %v1224 = vsel %vm1210, %v1221, %v1223
    %v1225 = vshll.u32 %v1185, 8
    %v1226 = vmul.u32.u64.compose %v1225, %v1224
    %v1227 = vextract.low.u32 %v1226
    %v1228 = vextract.high.u32 %v1226
    %v1229 = vmul.u32.u64.compose %v1225, %v1220
    %v1230 = vextract.low.u32 %v1229
    %v1231 = vextract.high.u32 %v1229
    %v1232 = vmul.u32 %v1225, %v1216
    %v1233 = vadd.s32 %v1228, %v1230
    %vm1234 = vc.u32 %v1228, %v1230
    %v1235 = vadd.s32 %v1231, 1
    %v1236 = vsel %vm1234, %v1235, %v1231
    %v1237 = vadd.s32 %v1232, %v1236
    %v1238 = vadd.s32 %v1237, 536870912
    %v1239 = vshrl.u32 %v1238, 30
    %v1240 = vshll.u32 %v1239, 30
    %v1241 = vsub.s32 %v1237, %v1240
    %vm1242 = vcmp.lt.s32.totalorder %v1241, 0
    %v1243 = vsub.s32 0, %v1241
    %v1244 = vsel %vm1242, %v1243, %v1241
    %v1245 = vclz %v1244
    %v1246 = vsub.s32 %v1245, 2
    %vm1247 = vcmp.gt.s32.totalorder 0, %v1246
    %v1248 = vsel %vm1247, 0, %v1246
    %v1249 = vsub.s32 32, %v1248
    %v1250 = vshll.u32 %v1241, %v1248
    %v1251 = vshrl.u32 %v1233, %v1249
    %v1252 = vor.u32 %v1250, %v1251
    %v1253 = vsub.s32 4294967266, %v1248
    %v1254 = vadd.s32 %v1253, 127
    %v1255 = vshll.u32 %v1254, 23
    %v1256 = vor.u32 4788187, %v1255
    %v1257 = vand.u32 2147483647, %v1256
    %v1259 = vcvt.s32.f32 %v1252
    %v1260 = vmul.f32 %v1259, %v1257
    %v1261 = vxor.u32 %v1260, 2147483648
    %v1262 = vsel %vm1179, %v1261, %v1260
    %v1263 = vsub.s32 4, %v1239
    %v1264 = vsel %vm1179, %v1263, %v1239
    %v1265 = vsel %vm1178, %v208, %v1262
    %v1266 = vsel %vm1178, 0, %v1264
    %v1267 = vcosq.f32.pop %v1265
    %v1268 = vsinq.f32.pop %v1265
    %vm1269 = vweird.f32 %v208
    %v1270 = vadd.s32 %v1266, 3
    %v1271 = vand.u32 %v1270, 3
    %vm1272 = vcmp.lt.s32.totalorder %v1271, 2
    %vm1273 = vcmp.eq.s32.totalorder %v1271, 0
    %v1274 = vxor.u32 %v1268, 2147483648
    %v1275 = vsel %vm1273, %v1267, %v1274
    %vm1276 = vcmp.eq.s32.totalorder %v1271, 2
    %v1277 = vxor.u32 %v1267, 2147483648
    %v1278 = vsel %vm1276, %v1277, %v1268
    %v1279 = vsel %vm1272, %v1275, %v1278
    %v1280 = vsel %vm1269, nan, %v1279
    %v1281 = vand.u32 2147483647, %v213
    %vm1282 = vcmp.le.f32.partialorder %v1281, 0.7853982
    %vm1283 = vcmp.lt.s32.totalorder %v213, 0
    %v1284 = vand.u32 %v213, 2139095040
    %v1285 = vshrl.u32 %v1284, 23
    %v1286 = vsub.s32 %v1285, 127
    %v1287 = vand.u32 2147483647, %v213
    %v1288 = vand.u32 %v1287, 8388607
    %v1289 = vor.u32 %v1288, 8388608
    %v1290 = vsub.s32 0, %v1289
    %v1291 = vadd.s32 %v1286, 1
    %vm1292 = vcmp.gt.s32.totalorder %v1291, 0
    %v1293 = vsel %vm1292, %v1291, 0
    %v1294 = vshrl.u32 %v1293, 5
    %v1295 = vand.u32 %v1293, 31
    %v1296 = vsub.s32 32, %v1295
    %v1297 = vshrl.u32 683565275, %v1296
    %v1298 = vshll.u32 683565275, %v1295
    %v1299 = vshrl.u32 2475754826, %v1296
    %v1300 = vor.u32 %v1298, %v1299
    %v1301 = vshll.u32 2475754826, %v1295
    %v1302 = vshrl.u32 2131351028, %v1296
    %v1303 = vor.u32 %v1301, %v1302
    %v1304 = vshll.u32 2131351028, %v1295
    %v1305 = vshrl.u32 2102212464, %v1296
    %v1306 = vor.u32 %v1304, %v1305
    %v1307 = vshll.u32 2102212464, %v1295
    %v1308 = vshrl.u32 920167782, %v1296
    %v1309 = vor.u32 %v1307, %v1308
    %v1310 = vshll.u32 920167782, %v1295
    %v1311 = vshrl.u32 1326507024, %v1296
    %v1312 = vor.u32 %v1310, %v1311
    %vm1313 = vcmp.lt.s32.totalorder %v1294, 1
    %vm1314 = vcmp.lt.s32.totalorder %v1294, 2
    %vm1315 = vcmp.lt.s32.totalorder %v1294, 3
    %vm1316 = vcmp.lt.s32.totalorder %v1294, 4
    %v1317 = vsel %vm1313, %v1297, %v1300
    %v1318 = vsel %vm1316, %v1306, 2102212464
    %v1319 = vsel %vm1315, %v1303, %v1318
    %v1320 = vsel %vm1314, %v1317, %v1319
    %v1321 = vsel %vm1313, %v1300, %v1303
    %v1322 = vsel %vm1316, %v1309, 920167782
    %v1323 = vsel %vm1315, %v1306, %v1322
    %v1324 = vsel %vm1314, %v1321, %v1323
    %v1325 = vsel %vm1313, %v1303, %v1306
    %v1326 = vsel %vm1316, %v1312, 1326507024
    %v1327 = vsel %vm1315, %v1309, %v1326
    %v1328 = vsel %vm1314, %v1325, %v1327
    %v1329 = vshll.u32 %v1289, 8
    %v1330 = vmul.u32.u64.compose %v1329, %v1328
    %v1331 = vextract.low.u32 %v1330
    %v1332 = vextract.high.u32 %v1330
    %v1333 = vmul.u32.u64.compose %v1329, %v1324
    %v1334 = vextract.low.u32 %v1333
    %v1335 = vextract.high.u32 %v1333
    %v1336 = vmul.u32 %v1329, %v1320
    %v1337 = vadd.s32 %v1332, %v1334
    %vm1338 = vc.u32 %v1332, %v1334
    %v1339 = vadd.s32 %v1335, 1
    %v1340 = vsel %vm1338, %v1339, %v1335
    %v1341 = vadd.s32 %v1336, %v1340
    %v1342 = vadd.s32 %v1341, 536870912
    %v1343 = vshrl.u32 %v1342, 30
    %v1344 = vshll.u32 %v1343, 30
    %v1345 = vsub.s32 %v1341, %v1344
    %vm1346 = vcmp.lt.s32.totalorder %v1345, 0
    %v1347 = vsub.s32 0, %v1345
    %v1348 = vsel %vm1346, %v1347, %v1345
    %v1349 = vclz %v1348
    %v1350 = vsub.s32 %v1349, 2
    %vm1351 = vcmp.gt.s32.totalorder 0, %v1350
    %v1352 = vsel %vm1351, 0, %v1350
    %v1353 = vsub.s32 32, %v1352
    %v1354 = vshll.u32 %v1345, %v1352
    %v1355 = vshrl.u32 %v1337, %v1353
    %v1356 = vor.u32 %v1354, %v1355
    %v1357 = vsub.s32 4294967266, %v1352
    %v1358 = vadd.s32 %v1357, 127
    %v1359 = vshll.u32 %v1358, 23
    %v1360 = vor.u32 4788187, %v1359
    %v1361 = vand.u32 2147483647, %v1360
    %v1363 = vcvt.s32.f32 %v1356
    %v1364 = vmul.f32 %v1363, %v1361
    %v1365 = vxor.u32 %v1364, 2147483648
    %v1366 = vsel %vm1283, %v1365, %v1364
    %v1367 = vsub.s32 4, %v1343
    %v1368 = vsel %vm1283, %v1367, %v1343
    %v1369 = vsel %vm1282, %v213, %v1366
    %v1370 = vsel %vm1282, 0, %v1368
    %v1371 = vcosq.f32.pop %v1369
    %v1372 = vsinq.f32.pop %v1369
    %vm1373 = vweird.f32 %v213
    %v1374 = vadd.s32 %v1370, 3
    %v1375 = vand.u32 %v1374, 3
    %vm1376 = vcmp.lt.s32.totalorder %v1375, 2
    %vm1377 = vcmp.eq.s32.totalorder %v1375, 0
    %v1378 = vxor.u32 %v1372, 2147483648
    %v1379 = vsel %vm1377, %v1371, %v1378
    %vm1380 = vcmp.eq.s32.totalorder %v1375, 2
    %v1381 = vxor.u32 %v1371, 2147483648
    %v1382 = vsel %vm1380, %v1381, %v1372
    %v1383 = vsel %vm1376, %v1379, %v1382
    %v1384 = vsel %vm1373, nan, %v1383
    %v1385 = vand.u32 2147483647, %v218
    %vm1386 = vcmp.le.f32.partialorder %v1385, 0.7853982
    %vm1387 = vcmp.lt.s32.totalorder %v218, 0
    %v1388 = vand.u32 %v218, 2139095040
    %v1389 = vshrl.u32 %v1388, 23
    %v1390 = vsub.s32 %v1389, 127
    %v1391 = vand.u32 2147483647, %v218
    %v1392 = vand.u32 %v1391, 8388607
    %v1393 = vor.u32 %v1392, 8388608
    %v1394 = vsub.s32 0, %v1393
    %v1395 = vadd.s32 %v1390, 1
    %vm1396 = vcmp.gt.s32.totalorder %v1395, 0
    %v1397 = vsel %vm1396, %v1395, 0
    %v1398 = vshrl.u32 %v1397, 5
    %v1399 = vand.u32 %v1397, 31
    %v1400 = vsub.s32 32, %v1399
    %v1401 = vshrl.u32 683565275, %v1400
    %v1402 = vshll.u32 683565275, %v1399
    %v1403 = vshrl.u32 2475754826, %v1400
    %v1404 = vor.u32 %v1402, %v1403
    %v1405 = vshll.u32 2475754826, %v1399
    %v1406 = vshrl.u32 2131351028, %v1400
    %v1407 = vor.u32 %v1405, %v1406
    %v1408 = vshll.u32 2131351028, %v1399
    %v1409 = vshrl.u32 2102212464, %v1400
    %v1410 = vor.u32 %v1408, %v1409
    %v1411 = vshll.u32 2102212464, %v1399
    %v1412 = vshrl.u32 920167782, %v1400
    %v1413 = vor.u32 %v1411, %v1412
    %v1414 = vshll.u32 920167782, %v1399
    %v1415 = vshrl.u32 1326507024, %v1400
    %v1416 = vor.u32 %v1414, %v1415
    %vm1417 = vcmp.lt.s32.totalorder %v1398, 1
    %vm1418 = vcmp.lt.s32.totalorder %v1398, 2
    %vm1419 = vcmp.lt.s32.totalorder %v1398, 3
    %vm1420 = vcmp.lt.s32.totalorder %v1398, 4
    %v1421 = vsel %vm1417, %v1401, %v1404
    %v1422 = vsel %vm1420, %v1410, 2102212464
    %v1423 = vsel %vm1419, %v1407, %v1422
    %v1424 = vsel %vm1418, %v1421, %v1423
    %v1425 = vsel %vm1417, %v1404, %v1407
    %v1426 = vsel %vm1420, %v1413, 920167782
    %v1427 = vsel %vm1419, %v1410, %v1426
    %v1428 = vsel %vm1418, %v1425, %v1427
    %v1429 = vsel %vm1417, %v1407, %v1410
    %v1430 = vsel %vm1420, %v1416, 1326507024
    %v1431 = vsel %vm1419, %v1413, %v1430
    %v1432 = vsel %vm1418, %v1429, %v1431
    %v1433 = vshll.u32 %v1393, 8
    %v1434 = vmul.u32.u64.compose %v1433, %v1432
    %v1435 = vextract.low.u32 %v1434
    %v1436 = vextract.high.u32 %v1434
    %v1437 = vmul.u32.u64.compose %v1433, %v1428
    %v1438 = vextract.low.u32 %v1437
    %v1439 = vextract.high.u32 %v1437
    %v1440 = vmul.u32 %v1433, %v1424
    %v1441 = vadd.s32 %v1436, %v1438
    %vm1442 = vc.u32 %v1436, %v1438
    %v1443 = vadd.s32 %v1439, 1
    %v1444 = vsel %vm1442, %v1443, %v1439
    %v1445 = vadd.s32 %v1440, %v1444
    %v1446 = vadd.s32 %v1445, 536870912
    %v1447 = vshrl.u32 %v1446, 30
    %v1448 = vshll.u32 %v1447, 30
    %v1449 = vsub.s32 %v1445, %v1448
    %vm1450 = vcmp.lt.s32.totalorder %v1449, 0
    %v1451 = vsub.s32 0, %v1449
    %v1452 = vsel %vm1450, %v1451, %v1449
    %v1453 = vclz %v1452
    %v1454 = vsub.s32 %v1453, 2
    %vm1455 = vcmp.gt.s32.totalorder 0, %v1454
    %v1456 = vsel %vm1455, 0, %v1454
    %v1457 = vsub.s32 32, %v1456
    %v1458 = vshll.u32 %v1449, %v1456
    %v1459 = vshrl.u32 %v1441, %v1457
    %v1460 = vor.u32 %v1458, %v1459
    %v1461 = vsub.s32 4294967266, %v1456
    %v1462 = vadd.s32 %v1461, 127
    %v1463 = vshll.u32 %v1462, 23
    %v1464 = vor.u32 4788187, %v1463
    %v1465 = vand.u32 2147483647, %v1464
    %v1467 = vcvt.s32.f32 %v1460
    %v1468 = vmul.f32 %v1467, %v1465
    %v1469 = vxor.u32 %v1468, 2147483648
    %v1470 = vsel %vm1387, %v1469, %v1468
    %v1471 = vsub.s32 4, %v1447
    %v1472 = vsel %vm1387, %v1471, %v1447
    %v1473 = vsel %vm1386, %v218, %v1470
    %v1474 = vsel %vm1386, 0, %v1472
    %v1475 = vcosq.f32.pop %v1473
    %v1476 = vsinq.f32.pop %v1473
    %vm1477 = vweird.f32 %v218
    %v1478 = vadd.s32 %v1474, 3
    %v1479 = vand.u32 %v1478, 3
    %vm1480 = vcmp.lt.s32.totalorder %v1479, 2
    %vm1481 = vcmp.eq.s32.totalorder %v1479, 0
    %v1482 = vxor.u32 %v1476, 2147483648
    %v1483 = vsel %vm1481, %v1475, %v1482
    %vm1484 = vcmp.eq.s32.totalorder %v1479, 2
    %v1485 = vxor.u32 %v1475, 2147483648
    %v1486 = vsel %vm1484, %v1485, %v1476
    %v1487 = vsel %vm1480, %v1483, %v1486
    %v1488 = vsel %vm1477, nan, %v1487
    %v1489 = vand.u32 2147483647, %v223
    %vm1490 = vcmp.le.f32.partialorder %v1489, 0.7853982
    %vm1491 = vcmp.lt.s32.totalorder %v223, 0
    %v1492 = vand.u32 %v223, 2139095040
    %v1493 = vshrl.u32 %v1492, 23
    %v1494 = vsub.s32 %v1493, 127
    %v1495 = vand.u32 2147483647, %v223
    %v1496 = vand.u32 %v1495, 8388607
    %v1497 = vor.u32 %v1496, 8388608
    %v1498 = vsub.s32 0, %v1497
    %v1499 = vadd.s32 %v1494, 1
    %vm1500 = vcmp.gt.s32.totalorder %v1499, 0
    %v1501 = vsel %vm1500, %v1499, 0
    %v1502 = vshrl.u32 %v1501, 5
    %v1503 = vand.u32 %v1501, 31
    %v1504 = vsub.s32 32, %v1503
    %v1505 = vshrl.u32 683565275, %v1504
    %v1506 = vshll.u32 683565275, %v1503
    %v1507 = vshrl.u32 2475754826, %v1504
    %v1508 = vor.u32 %v1506, %v1507
    %v1509 = vshll.u32 2475754826, %v1503
    %v1510 = vshrl.u32 2131351028, %v1504
    %v1511 = vor.u32 %v1509, %v1510
    %v1512 = vshll.u32 2131351028, %v1503
    %v1513 = vshrl.u32 2102212464, %v1504
    %v1514 = vor.u32 %v1512, %v1513
    %v1515 = vshll.u32 2102212464, %v1503
    %v1516 = vshrl.u32 920167782, %v1504
    %v1517 = vor.u32 %v1515, %v1516
    %v1518 = vshll.u32 920167782, %v1503
    %v1519 = vshrl.u32 1326507024, %v1504
    %v1520 = vor.u32 %v1518, %v1519
    %vm1521 = vcmp.lt.s32.totalorder %v1502, 1
    %vm1522 = vcmp.lt.s32.totalorder %v1502, 2
    %vm1523 = vcmp.lt.s32.totalorder %v1502, 3
    %vm1524 = vcmp.lt.s32.totalorder %v1502, 4
    %v1525 = vsel %vm1521, %v1505, %v1508
    %v1526 = vsel %vm1524, %v1514, 2102212464
    %v1527 = vsel %vm1523, %v1511, %v1526
    %v1528 = vsel %vm1522, %v1525, %v1527
    %v1529 = vsel %vm1521, %v1508, %v1511
    %v1530 = vsel %vm1524, %v1517, 920167782
    %v1531 = vsel %vm1523, %v1514, %v1530
    %v1532 = vsel %vm1522, %v1529, %v1531
    %v1533 = vsel %vm1521, %v1511, %v1514
    %v1534 = vsel %vm1524, %v1520, 1326507024
    %v1535 = vsel %vm1523, %v1517, %v1534
    %v1536 = vsel %vm1522, %v1533, %v1535
    %v1537 = vshll.u32 %v1497, 8
    %v1538 = vmul.u32.u64.compose %v1537, %v1536
    %v1539 = vextract.low.u32 %v1538
    %v1540 = vextract.high.u32 %v1538
    %v1541 = vmul.u32.u64.compose %v1537, %v1532
    %v1542 = vextract.low.u32 %v1541
    %v1543 = vextract.high.u32 %v1541
    %v1544 = vmul.u32 %v1537, %v1528
    %v1545 = vadd.s32 %v1540, %v1542
    %vm1546 = vc.u32 %v1540, %v1542
    %v1547 = vadd.s32 %v1543, 1
    %v1548 = vsel %vm1546, %v1547, %v1543
    %v1549 = vadd.s32 %v1544, %v1548
    %v1550 = vadd.s32 %v1549, 536870912
    %v1551 = vshrl.u32 %v1550, 30
    %v1552 = vshll.u32 %v1551, 30
    %v1553 = vsub.s32 %v1549, %v1552
    %vm1554 = vcmp.lt.s32.totalorder %v1553, 0
    %v1555 = vsub.s32 0, %v1553
    %v1556 = vsel %vm1554, %v1555, %v1553
    %v1557 = vclz %v1556
    %v1558 = vsub.s32 %v1557, 2
    %vm1559 = vcmp.gt.s32.totalorder 0, %v1558
    %v1560 = vsel %vm1559, 0, %v1558
    %v1561 = vsub.s32 32, %v1560
    %v1562 = vshll.u32 %v1553, %v1560
    %v1563 = vshrl.u32 %v1545, %v1561
    %v1564 = vor.u32 %v1562, %v1563
    %v1565 = vsub.s32 4294967266, %v1560
    %v1566 = vadd.s32 %v1565, 127
    %v1567 = vshll.u32 %v1566, 23
    %v1568 = vor.u32 4788187, %v1567
    %v1569 = vand.u32 2147483647, %v1568
    %v1571 = vcvt.s32.f32 %v1564
    %v1572 = vmul.f32 %v1571, %v1569
    %v1573 = vxor.u32 %v1572, 2147483648
    %v1574 = vsel %vm1491, %v1573, %v1572
    %v1575 = vsub.s32 4, %v1551
    %v1576 = vsel %vm1491, %v1575, %v1551
    %v1577 = vsel %vm1490, %v223, %v1574
    %v1578 = vsel %vm1490, 0, %v1576
    %v1579 = vcosq.f32.pop %v1577
    %v1580 = vsinq.f32.pop %v1577
    %vm1581 = vweird.f32 %v223
    %v1582 = vadd.s32 %v1578, 3
    %v1583 = vand.u32 %v1582, 3
    %vm1584 = vcmp.lt.s32.totalorder %v1583, 2
    %vm1585 = vcmp.eq.s32.totalorder %v1583, 0
    %v1586 = vxor.u32 %v1580, 2147483648
    %v1587 = vsel %vm1585, %v1579, %v1586
    %vm1588 = vcmp.eq.s32.totalorder %v1583, 2
    %v1589 = vxor.u32 %v1579, 2147483648
    %v1590 = vsel %vm1588, %v1589, %v1580
    %v1591 = vsel %vm1584, %v1587, %v1590
    %v1592 = vsel %vm1581, nan, %v1591
    %v1593 = vand.u32 2147483647, %v228
    %vm1594 = vcmp.le.f32.partialorder %v1593, 0.7853982
    %vm1595 = vcmp.lt.s32.totalorder %v228, 0
    %v1596 = vand.u32 %v228, 2139095040
    %v1597 = vshrl.u32 %v1596, 23
    %v1598 = vsub.s32 %v1597, 127
    %v1599 = vand.u32 2147483647, %v228
    %v1600 = vand.u32 %v1599, 8388607
    %v1601 = vor.u32 %v1600, 8388608
    %v1602 = vsub.s32 0, %v1601
    %v1603 = vadd.s32 %v1598, 1
    %vm1604 = vcmp.gt.s32.totalorder %v1603, 0
    %v1605 = vsel %vm1604, %v1603, 0
    %v1606 = vshrl.u32 %v1605, 5
    %v1607 = vand.u32 %v1605, 31
    %v1608 = vsub.s32 32, %v1607
    %v1609 = vshrl.u32 683565275, %v1608
    %v1610 = vshll.u32 683565275, %v1607
    %v1611 = vshrl.u32 2475754826, %v1608
    %v1612 = vor.u32 %v1610, %v1611
    %v1613 = vshll.u32 2475754826, %v1607
    %v1614 = vshrl.u32 2131351028, %v1608
    %v1615 = vor.u32 %v1613, %v1614
    %v1616 = vshll.u32 2131351028, %v1607
    %v1617 = vshrl.u32 2102212464, %v1608
    %v1618 = vor.u32 %v1616, %v1617
    %v1619 = vshll.u32 2102212464, %v1607
    %v1620 = vshrl.u32 920167782, %v1608
    %v1621 = vor.u32 %v1619, %v1620
    %v1622 = vshll.u32 920167782, %v1607
    %v1623 = vshrl.u32 1326507024, %v1608
    %v1624 = vor.u32 %v1622, %v1623
    %vm1625 = vcmp.lt.s32.totalorder %v1606, 1
    %vm1626 = vcmp.lt.s32.totalorder %v1606, 2
    %vm1627 = vcmp.lt.s32.totalorder %v1606, 3
    %vm1628 = vcmp.lt.s32.totalorder %v1606, 4
    %v1629 = vsel %vm1625, %v1609, %v1612
    %v1630 = vsel %vm1628, %v1618, 2102212464
    %v1631 = vsel %vm1627, %v1615, %v1630
    %v1632 = vsel %vm1626, %v1629, %v1631
    %v1633 = vsel %vm1625, %v1612, %v1615
    %v1634 = vsel %vm1628, %v1621, 920167782
    %v1635 = vsel %vm1627, %v1618, %v1634
    %v1636 = vsel %vm1626, %v1633, %v1635
    %v1637 = vsel %vm1625, %v1615, %v1618
    %v1638 = vsel %vm1628, %v1624, 1326507024
    %v1639 = vsel %vm1627, %v1621, %v1638
    %v1640 = vsel %vm1626, %v1637, %v1639
    %v1641 = vshll.u32 %v1601, 8
    %v1642 = vmul.u32.u64.compose %v1641, %v1640
    %v1643 = vextract.low.u32 %v1642
    %v1644 = vextract.high.u32 %v1642
    %v1645 = vmul.u32.u64.compose %v1641, %v1636
    %v1646 = vextract.low.u32 %v1645
    %v1647 = vextract.high.u32 %v1645
    %v1648 = vmul.u32 %v1641, %v1632
    %v1649 = vadd.s32 %v1644, %v1646
    %vm1650 = vc.u32 %v1644, %v1646
    %v1651 = vadd.s32 %v1647, 1
    %v1652 = vsel %vm1650, %v1651, %v1647
    %v1653 = vadd.s32 %v1648, %v1652
    %v1654 = vadd.s32 %v1653, 536870912
    %v1655 = vshrl.u32 %v1654, 30
    %v1656 = vshll.u32 %v1655, 30
    %v1657 = vsub.s32 %v1653, %v1656
    %vm1658 = vcmp.lt.s32.totalorder %v1657, 0
    %v1659 = vsub.s32 0, %v1657
    %v1660 = vsel %vm1658, %v1659, %v1657
    %v1661 = vclz %v1660
    %v1662 = vsub.s32 %v1661, 2
    %vm1663 = vcmp.gt.s32.totalorder 0, %v1662
    %v1664 = vsel %vm1663, 0, %v1662
    %v1665 = vsub.s32 32, %v1664
    %v1666 = vshll.u32 %v1657, %v1664
    %v1667 = vshrl.u32 %v1649, %v1665
    %v1668 = vor.u32 %v1666, %v1667
    %v1669 = vsub.s32 4294967266, %v1664
    %v1670 = vadd.s32 %v1669, 127
    %v1671 = vshll.u32 %v1670, 23
    %v1672 = vor.u32 4788187, %v1671
    %v1673 = vand.u32 2147483647, %v1672
    %v1675 = vcvt.s32.f32 %v1668
    %v1676 = vmul.f32 %v1675, %v1673
    %v1677 = vxor.u32 %v1676, 2147483648
    %v1678 = vsel %vm1595, %v1677, %v1676
    %v1679 = vsub.s32 4, %v1655
    %v1680 = vsel %vm1595, %v1679, %v1655
    %v1681 = vsel %vm1594, %v228, %v1678
    %v1682 = vsel %vm1594, 0, %v1680
    %v1683 = vcosq.f32.pop %v1681
    %v1684 = vsinq.f32.pop %v1681
    %vm1685 = vweird.f32 %v228
    %v1686 = vadd.s32 %v1682, 3
    %v1687 = vand.u32 %v1686, 3
    %vm1688 = vcmp.lt.s32.totalorder %v1687, 2
    %vm1689 = vcmp.eq.s32.totalorder %v1687, 0
    %v1690 = vxor.u32 %v1684, 2147483648
    %v1691 = vsel %vm1689, %v1683, %v1690
    %vm1692 = vcmp.eq.s32.totalorder %v1687, 2
    %v1693 = vxor.u32 %v1683, 2147483648
    %v1694 = vsel %vm1692, %v1693, %v1684
    %v1695 = vsel %vm1688, %v1691, %v1694
    %v1696 = vsel %vm1685, nan, %v1695
    %v1697 = vand.u32 2147483647, %v233
    %vm1698 = vcmp.le.f32.partialorder %v1697, 0.7853982
    %vm1699 = vcmp.lt.s32.totalorder %v233, 0
    %v1700 = vand.u32 %v233, 2139095040
    %v1701 = vshrl.u32 %v1700, 23
    %v1702 = vsub.s32 %v1701, 127
    %v1703 = vand.u32 2147483647, %v233
    %v1704 = vand.u32 %v1703, 8388607
    %v1705 = vor.u32 %v1704, 8388608
    %v1706 = vsub.s32 0, %v1705
    %v1707 = vadd.s32 %v1702, 1
    %vm1708 = vcmp.gt.s32.totalorder %v1707, 0
    %v1709 = vsel %vm1708, %v1707, 0
    %v1710 = vshrl.u32 %v1709, 5
    %v1711 = vand.u32 %v1709, 31
    %v1712 = vsub.s32 32, %v1711
    %v1713 = vshrl.u32 683565275, %v1712
    %v1714 = vshll.u32 683565275, %v1711
    %v1715 = vshrl.u32 2475754826, %v1712
    %v1716 = vor.u32 %v1714, %v1715
    %v1717 = vshll.u32 2475754826, %v1711
    %v1718 = vshrl.u32 2131351028, %v1712
    %v1719 = vor.u32 %v1717, %v1718
    %v1720 = vshll.u32 2131351028, %v1711
    %v1721 = vshrl.u32 2102212464, %v1712
    %v1722 = vor.u32 %v1720, %v1721
    %v1723 = vshll.u32 2102212464, %v1711
    %v1724 = vshrl.u32 920167782, %v1712
    %v1725 = vor.u32 %v1723, %v1724
    %v1726 = vshll.u32 920167782, %v1711
    %v1727 = vshrl.u32 1326507024, %v1712
    %v1728 = vor.u32 %v1726, %v1727
    %vm1729 = vcmp.lt.s32.totalorder %v1710, 1
    %vm1730 = vcmp.lt.s32.totalorder %v1710, 2
    %vm1731 = vcmp.lt.s32.totalorder %v1710, 3
    %vm1732 = vcmp.lt.s32.totalorder %v1710, 4
    %v1733 = vsel %vm1729, %v1713, %v1716
    %v1734 = vsel %vm1732, %v1722, 2102212464
    %v1735 = vsel %vm1731, %v1719, %v1734
    %v1736 = vsel %vm1730, %v1733, %v1735
    %v1737 = vsel %vm1729, %v1716, %v1719
    %v1738 = vsel %vm1732, %v1725, 920167782
    %v1739 = vsel %vm1731, %v1722, %v1738
    %v1740 = vsel %vm1730, %v1737, %v1739
    %v1741 = vsel %vm1729, %v1719, %v1722
    %v1742 = vsel %vm1732, %v1728, 1326507024
    %v1743 = vsel %vm1731, %v1725, %v1742
    %v1744 = vsel %vm1730, %v1741, %v1743
    %v1745 = vshll.u32 %v1705, 8
    %v1746 = vmul.u32.u64.compose %v1745, %v1744
    %v1747 = vextract.low.u32 %v1746
    %v1748 = vextract.high.u32 %v1746
    %v1749 = vmul.u32.u64.compose %v1745, %v1740
    %v1750 = vextract.low.u32 %v1749
    %v1751 = vextract.high.u32 %v1749
    %v1752 = vmul.u32 %v1745, %v1736
    %v1753 = vadd.s32 %v1748, %v1750
    %vm1754 = vc.u32 %v1748, %v1750
    %v1755 = vadd.s32 %v1751, 1
    %v1756 = vsel %vm1754, %v1755, %v1751
    %v1757 = vadd.s32 %v1752, %v1756
    %v1758 = vadd.s32 %v1757, 536870912
    %v1759 = vshrl.u32 %v1758, 30
    %v1760 = vshll.u32 %v1759, 30
    %v1761 = vsub.s32 %v1757, %v1760
    %vm1762 = vcmp.lt.s32.totalorder %v1761, 0
    %v1763 = vsub.s32 0, %v1761
    %v1764 = vsel %vm1762, %v1763, %v1761
    %v1765 = vclz %v1764
    %v1766 = vsub.s32 %v1765, 2
    %vm1767 = vcmp.gt.s32.totalorder 0, %v1766
    %v1768 = vsel %vm1767, 0, %v1766
    %v1769 = vsub.s32 32, %v1768
    %v1770 = vshll.u32 %v1761, %v1768
    %v1771 = vshrl.u32 %v1753, %v1769
    %v1772 = vor.u32 %v1770, %v1771
    %v1773 = vsub.s32 4294967266, %v1768
    %v1774 = vadd.s32 %v1773, 127
    %v1775 = vshll.u32 %v1774, 23
    %v1776 = vor.u32 4788187, %v1775
    %v1777 = vand.u32 2147483647, %v1776
    %v1779 = vcvt.s32.f32 %v1772
    %v1780 = vmul.f32 %v1779, %v1777
    %v1781 = vxor.u32 %v1780, 2147483648
    %v1782 = vsel %vm1699, %v1781, %v1780
    %v1783 = vsub.s32 4, %v1759
    %v1784 = vsel %vm1699, %v1783, %v1759
    %v1785 = vsel %vm1698, %v233, %v1782
    %v1786 = vsel %vm1698, 0, %v1784
    %v1787 = vcosq.f32.pop %v1785
    %v1788 = vsinq.f32.pop %v1785
    %vm1789 = vweird.f32 %v233
    %v1790 = vadd.s32 %v1786, 3
    %v1791 = vand.u32 %v1790, 3
    %vm1792 = vcmp.lt.s32.totalorder %v1791, 2
    %vm1793 = vcmp.eq.s32.totalorder %v1791, 0
    %v1794 = vxor.u32 %v1788, 2147483648
    %v1795 = vsel %vm1793, %v1787, %v1794
    %vm1796 = vcmp.eq.s32.totalorder %v1791, 2
    %v1797 = vxor.u32 %v1787, 2147483648
    %v1798 = vsel %vm1796, %v1797, %v1788
    %v1799 = vsel %vm1792, %v1795, %v1798
    %v1800 = vsel %vm1789, nan, %v1799
    %v1801 = vand.u32 2147483647, %v238
    %vm1802 = vcmp.le.f32.partialorder %v1801, 0.7853982
    %vm1803 = vcmp.lt.s32.totalorder %v238, 0
    %v1804 = vand.u32 %v238, 2139095040
    %v1805 = vshrl.u32 %v1804, 23
    %v1806 = vsub.s32 %v1805, 127
    %v1807 = vand.u32 2147483647, %v238
    %v1808 = vand.u32 %v1807, 8388607
    %v1809 = vor.u32 %v1808, 8388608
    %v1810 = vsub.s32 0, %v1809
    %v1811 = vadd.s32 %v1806, 1
    %vm1812 = vcmp.gt.s32.totalorder %v1811, 0
    %v1813 = vsel %vm1812, %v1811, 0
    %v1814 = vshrl.u32 %v1813, 5
    %v1815 = vand.u32 %v1813, 31
    %v1816 = vsub.s32 32, %v1815
    %v1817 = vshrl.u32 683565275, %v1816
    %v1818 = vshll.u32 683565275, %v1815
    %v1819 = vshrl.u32 2475754826, %v1816
    %v1820 = vor.u32 %v1818, %v1819
    %v1821 = vshll.u32 2475754826, %v1815
    %v1822 = vshrl.u32 2131351028, %v1816
    %v1823 = vor.u32 %v1821, %v1822
    %v1824 = vshll.u32 2131351028, %v1815
    %v1825 = vshrl.u32 2102212464, %v1816
    %v1826 = vor.u32 %v1824, %v1825
    %v1827 = vshll.u32 2102212464, %v1815
    %v1828 = vshrl.u32 920167782, %v1816
    %v1829 = vor.u32 %v1827, %v1828
    %v1830 = vshll.u32 920167782, %v1815
    %v1831 = vshrl.u32 1326507024, %v1816
    %v1832 = vor.u32 %v1830, %v1831
    %vm1833 = vcmp.lt.s32.totalorder %v1814, 1
    %vm1834 = vcmp.lt.s32.totalorder %v1814, 2
    %vm1835 = vcmp.lt.s32.totalorder %v1814, 3
    %vm1836 = vcmp.lt.s32.totalorder %v1814, 4
    %v1837 = vsel %vm1833, %v1817, %v1820
    %v1838 = vsel %vm1836, %v1826, 2102212464
    %v1839 = vsel %vm1835, %v1823, %v1838
    %v1840 = vsel %vm1834, %v1837, %v1839
    %v1841 = vsel %vm1833, %v1820, %v1823
    %v1842 = vsel %vm1836, %v1829, 920167782
    %v1843 = vsel %vm1835, %v1826, %v1842
    %v1844 = vsel %vm1834, %v1841, %v1843
    %v1845 = vsel %vm1833, %v1823, %v1826
    %v1846 = vsel %vm1836, %v1832, 1326507024
    %v1847 = vsel %vm1835, %v1829, %v1846
    %v1848 = vsel %vm1834, %v1845, %v1847
    %v1849 = vshll.u32 %v1809, 8
    %v1850 = vmul.u32.u64.compose %v1849, %v1848
    %v1851 = vextract.low.u32 %v1850
    %v1852 = vextract.high.u32 %v1850
    %v1853 = vmul.u32.u64.compose %v1849, %v1844
    %v1854 = vextract.low.u32 %v1853
    %v1855 = vextract.high.u32 %v1853
    %v1856 = vmul.u32 %v1849, %v1840
    %v1857 = vadd.s32 %v1852, %v1854
    %vm1858 = vc.u32 %v1852, %v1854
    %v1859 = vadd.s32 %v1855, 1
    %v1860 = vsel %vm1858, %v1859, %v1855
    %v1861 = vadd.s32 %v1856, %v1860
    %v1862 = vadd.s32 %v1861, 536870912
    %v1863 = vshrl.u32 %v1862, 30
    %v1864 = vshll.u32 %v1863, 30
    %v1865 = vsub.s32 %v1861, %v1864
    %vm1866 = vcmp.lt.s32.totalorder %v1865, 0
    %v1867 = vsub.s32 0, %v1865
    %v1868 = vsel %vm1866, %v1867, %v1865
    %v1869 = vclz %v1868
    %v1870 = vsub.s32 %v1869, 2
    %vm1871 = vcmp.gt.s32.totalorder 0, %v1870
    %v1872 = vsel %vm1871, 0, %v1870
    %v1873 = vsub.s32 32, %v1872
    %v1874 = vshll.u32 %v1865, %v1872
    %v1875 = vshrl.u32 %v1857, %v1873
    %v1876 = vor.u32 %v1874, %v1875
    %v1877 = vsub.s32 4294967266, %v1872
    %v1878 = vadd.s32 %v1877, 127
    %v1879 = vshll.u32 %v1878, 23
    %v1880 = vor.u32 4788187, %v1879
    %v1881 = vand.u32 2147483647, %v1880
    %v1883 = vcvt.s32.f32 %v1876
    %v1884 = vmul.f32 %v1883, %v1881
    %v1885 = vxor.u32 %v1884, 2147483648
    %v1886 = vsel %vm1803, %v1885, %v1884
    %v1887 = vsub.s32 4, %v1863
    %v1888 = vsel %vm1803, %v1887, %v1863
    %v1889 = vsel %vm1802, %v238, %v1886
    %v1890 = vsel %vm1802, 0, %v1888
    %v1891 = vcosq.f32.pop %v1889
    %v1892 = vsinq.f32.pop %v1889
    %vm1893 = vweird.f32 %v238
    %v1894 = vadd.s32 %v1890, 3
    %v1895 = vand.u32 %v1894, 3
    %vm1896 = vcmp.lt.s32.totalorder %v1895, 2
    %vm1897 = vcmp.eq.s32.totalorder %v1895, 0
    %v1898 = vxor.u32 %v1892, 2147483648
    %v1899 = vsel %vm1897, %v1891, %v1898
    %vm1900 = vcmp.eq.s32.totalorder %v1895, 2
    %v1901 = vxor.u32 %v1891, 2147483648
    %v1902 = vsel %vm1900, %v1901, %v1892
    %v1903 = vsel %vm1896, %v1899, %v1902
    %v1904 = vsel %vm1893, nan, %v1903
    %v1905 = vld [vmem:[#allocation2 + $0x8] sm:$0xff]
    %v1906 = vld [vmem:[#allocation2 + $0x10] sm:$0xff]
    %v1907 = vld [vmem:[#allocation2 + $0x18] sm:$0xff]
    %v1908 = vld [vmem:[#allocation2 + $0x20] sm:$0xff]
    %v1909 = vld [vmem:[#allocation2 + $0x28] sm:$0xff]
    %v1910 = vld [vmem:[#allocation2 + $0x30] sm:$0xff]
    %v1911 = vld [vmem:[#allocation2 + $0x38] sm:$0xff]
    %v1912 = vld [vmem:[#allocation2 + $0x40] sm:$0xff]
    %v1913 = vld [vmem:[#allocation2 + $0x48] sm:$0xff]
    %v1914 = vld [vmem:[#allocation2 + $0x50] sm:$0xff]
    %v1915 = vld [vmem:[#allocation2 + $0x58] sm:$0xff]
    %v1916 = vld [vmem:[#allocation2 + $0x60] sm:$0xff]
    %v1917 = vld [vmem:[#allocation2 + $0x68] sm:$0xff]
    %v1918 = vld [vmem:[#allocation2 + $0x70] sm:$0xff]
    %v1919 = vld [vmem:[#allocation2 + $0x78] sm:$0xff]
    %v1920 = vld [vmem:[#allocation2 + $0x80] sm:$0xff]
    %v1921 = vld [vmem:[#allocation2 + $0x189] sm:$0x1]
    %v1922 = vlaneseq
    %v1923 = vshrl.u32 %v1922, 7
    %v1924 = vsub.s32 0, %v1923
    %v1925 = vrot.slane %v1921, %v1924
    %1926 = vmatprep.subr.mxu0 0.0
    %1927 = vmatpush1.msra.mxu0 %v1905
    %1928 = vmatprep.subr.mxu0 0.0
    %1929 = vmatpush1.msra.mxu0 %v1906
    %1930 = vmatprep.subr.mxu0 0.0
    %1931 = vmatpush1.msra.mxu0 %v1907
    %1932 = vmatprep.subr.mxu0 0.0
    %1933 = vmatpush1.msra.mxu0 %v1908
    %1934 = vmatprep.subr.mxu0 0.0
    %1935 = vmatpush1.msra.mxu0 %v1909
    %1936 = vmatprep.subr.mxu0 0.0
    %1937 = vmatpush1.msra.mxu0 %v1910
    %1938 = vmatprep.subr.mxu0 0.0
    %1939 = vmatpush1.msra.mxu0 %v1911
    %1940 = vmatprep.subr.mxu0 0.0
    %1941 = vmatpush1.msra.mxu0 %v1912
    %1942 = vmatprep.subr.mxu0 0.0
    %1943 = vmatpush1.msra.mxu0 %v1913
    %1944 = vmatprep.subr.mxu0 0.0
    %1945 = vmatpush1.msra.mxu0 %v1914
    %1946 = vmatprep.subr.mxu0 0.0
    %1947 = vmatpush1.msra.mxu0 %v1915
    %1948 = vmatprep.subr.mxu0 0.0
    %1949 = vmatpush1.msra.mxu0 %v1916
    %1950 = vmatprep.subr.mxu0 0.0
    %1951 = vmatpush1.msra.mxu0 %v1917
    %1952 = vmatprep.subr.mxu0 0.0
    %1953 = vmatpush1.msra.mxu0 %v1918
    %1954 = vmatprep.subr.mxu0 0.0
    %1955 = vmatpush1.msra.mxu0 %v1919
    %1956 = vmatprep.subr.mxu0 0.0
    %1957 = vmatpush1.msra.mxu0 %v1920
    %1958 = vmatprep.subr.mxu0 0.0
    %1959 = vmatpush1.msra.mxu0 0.0
    %1960 = vmatprep.subr.mxu0 0.0
    %1961 = vmatpush1.msra.mxu0 0.0
    %1962 = vmatprep.subr.mxu0 0.0
    %1963 = vmatpush1.msra.mxu0 0.0
    %1964 = vmatprep.subr.mxu0 0.0
    %1965 = vmatpush1.msra.mxu0 0.0
    %1966 = vmatprep.subr.mxu0 0.0
    %1967 = vmatpush1.msra.mxu0 0.0
    %1968 = vmatprep.subr.mxu0 0.0
    %1969 = vmatpush1.msra.mxu0 0.0
    %1970 = vmatprep.subr.mxu0 0.0
    %1971 = vmatpush1.msra.mxu0 0.0
    %1972 = vmatprep.subr.mxu0 0.0
    %1973 = vmatpush1.msra.mxu0 0.0
    %1974 = vmatprep.subr.mxu0 0.0
    %1975 = vmatpush1.msra.mxu0 0.0
    %1976 = vmatprep.subr.mxu0 0.0
    %1977 = vmatpush1.msra.mxu0 0.0
    %1978 = vmatprep.subr.mxu0 0.0
    %1979 = vmatpush1.msra.mxu0 0.0
    %1980 = vmatprep.subr.mxu0 0.0
    %1981 = vmatpush1.msra.mxu0 0.0
    %1982 = vmatprep.subr.mxu0 0.0
    %1983 = vmatpush1.msra.mxu0 0.0
    %1984 = vmatprep.subr.mxu0 0.0
    %1985 = vmatpush1.msra.mxu0 0.0
    %1986 = vmatprep.subr.mxu0 0.0
    %1987 = vmatpush1.msra.mxu0 0.0
    %1988 = vmatprep.subr.mxu0 0.0
    %1989 = vmatpush1.msra.mxu0 0.0
    %1990 = vmatprep.mubr.f32.mxu0 0.0
    %1991 = vmatmul.mubr.f32.gmra.mrb[0].mxu0 %v344
    %v1992 = vpop.f32.mrb[0].mxu0
    %v1993 = vadd.f32 %v1925, %v1992
    %v1994 = vpop.f32.mrb[0].mxu0
    %1995 = vmatprep.mubr.f32.mxu0 0.0
    %1996 = vmatmul.mubr.f32.gmra.mrb[0].mxu0 %v448
    %v1997 = vpop.f32.mrb[0].mxu0
    %v1998 = vadd.f32 %v1925, %v1997
    %v1999 = vpop.f32.mrb[0].mxu0
    %2000 = vmatprep.mubr.f32.mxu0 0.0
    %2001 = vmatmul.mubr.f32.gmra.mrb[0].mxu0 %v552
    %v2002 = vpop.f32.mrb[0].mxu0
    %v2003 = vadd.f32 %v1925, %v2002
    %v2004 = vpop.f32.mrb[0].mxu0
    %2005 = vmatprep.mubr.f32.mxu0 0.0
    %2006 = vmatmul.mubr.f32.gmra.mrb[0].mxu0 %v656
    %v2007 = vpop.f32.mrb[0].mxu0
    %v2008 = vadd.f32 %v1925, %v2007
    %v2009 = vpop.f32.mrb[0].mxu0
    %2010 = vmatprep.mubr.f32.mxu0 0.0
    %2011 = vmatmul.mubr.f32.gmra.mrb[0].mxu0 %v760
    %v2012 = vpop.f32.mrb[0].mxu0
    %v2013 = vadd.f32 %v1925, %v2012
    %v2014 = vpop.f32.mrb[0].mxu0
    %2015 = vmatprep.mubr.f32.mxu0 0.0
    %2016 = vmatmul.mubr.f32.gmra.mrb[0].mxu0 %v864
    %v2017 = vpop.f32.mrb[0].mxu0
    %v2018 = vadd.f32 %v1925, %v2017
    %v2019 = vpop.f32.mrb[0].mxu0
    %2020 = vmatprep.mubr.f32.mxu0 0.0
    %2021 = vmatmul.mubr.f32.gmra.mrb[0].mxu0 %v968
    %v2022 = vpop.f32.mrb[0].mxu0
    %v2023 = vadd.f32 %v1925, %v2022
    %v2024 = vpop.f32.mrb[0].mxu0
    %2025 = vmatprep.mubr.f32.mxu0 0.0
    %2026 = vmatmul.mubr.f32.gmra.mrb[0].mxu0 %v1072
    %v2027 = vpop.f32.mrb[0].mxu0
    %v2028 = vadd.f32 %v1925, %v2027
    %v2029 = vpop.f32.mrb[0].mxu0
    %2030 = vmatprep.mubr.f32.mxu0 0.0
    %2031 = vmatmul.mubr.f32.gmra.mrb[0].mxu0 %v1176
    %v2032 = vpop.f32.mrb[0].mxu0
    %v2033 = vadd.f32 %v1925, %v2032
    %v2034 = vpop.f32.mrb[0].mxu0
    %2035 = vmatprep.mubr.f32.mxu0 0.0
    %2036 = vmatmul.mubr.f32.gmra.mrb[0].mxu0 %v1280
    %v2037 = vpop.f32.mrb[0].mxu0
    %v2038 = vadd.f32 %v1925, %v2037
    %v2039 = vpop.f32.mrb[0].mxu0
    %2040 = vmatprep.mubr.f32.mxu0 0.0
    %2041 = vmatmul.mubr.f32.gmra.mrb[0].mxu0 %v1384
    %v2042 = vpop.f32.mrb[0].mxu0
    %v2043 = vadd.f32 %v1925, %v2042
    %v2044 = vpop.f32.mrb[0].mxu0
    %2045 = vmatprep.mubr.f32.mxu0 0.0
    %2046 = vmatmul.mubr.f32.gmra.mrb[0].mxu0 %v1488
    %v2047 = vpop.f32.mrb[0].mxu0
    %v2048 = vadd.f32 %v1925, %v2047
    %v2049 = vpop.f32.mrb[0].mxu0
    %2050 = vmatprep.mubr.f32.mxu0 0.0
    %2051 = vmatmul.mubr.f32.gmra.mrb[0].mxu0 %v1592
    %v2052 = vpop.f32.mrb[0].mxu0
    %v2053 = vadd.f32 %v1925, %v2052
    %v2054 = vpop.f32.mrb[0].mxu0
    %2055 = vmatprep.mubr.f32.mxu0 0.0
    %2056 = vmatmul.mubr.f32.gmra.mrb[0].mxu0 %v1696
    %v2057 = vpop.f32.mrb[0].mxu0
    %v2058 = vadd.f32 %v1925, %v2057
    %v2059 = vpop.f32.mrb[0].mxu0
    %2060 = vmatprep.mubr.f32.mxu0 0.0
    %2061 = vmatmul.mubr.f32.gmra.mrb[0].mxu0 %v1800
    %v2062 = vpop.f32.mrb[0].mxu0
    %v2063 = vadd.f32 %v1925, %v2062
    %v2064 = vpop.f32.mrb[0].mxu0
    %2065 = vmatprep.mubr.f32.mxu0 0.0
    %2066 = vmatmul.mubr.f32.gmra.mrb[0].mxu0 %v1904
    %v2067 = vpop.f32.mrb[0].mxu0
    %v2068 = vadd.f32 %v1925, %v2067
    %v2069 = vpop.f32.mrb[0].mxu0
    %2070 = vdwg.mxu0
    %v2071 = vand.u32 2147483647, %v1993
    %vm2072 = vcmp.le.f32.partialorder %v2071, 0.7853982
    %vm2073 = vcmp.lt.s32.totalorder %v1993, 0
    %v2074 = vand.u32 %v1993, 2139095040
    %v2075 = vshrl.u32 %v2074, 23
    %v2076 = vsub.s32 %v2075, 127
    %v2077 = vand.u32 2147483647, %v1993
    %v2078 = vand.u32 %v2077, 8388607
    %v2079 = vor.u32 %v2078, 8388608
    %v2080 = vsub.s32 0, %v2079
    %v2081 = vadd.s32 %v2076, 1
    %vm2082 = vcmp.gt.s32.totalorder %v2081, 0
    %v2083 = vsel %vm2082, %v2081, 0
    %v2084 = vshrl.u32 %v2083, 5
    %v2085 = vand.u32 %v2083, 31
    %v2086 = vsub.s32 32, %v2085
    %v2087 = vshrl.u32 683565275, %v2086
    %v2088 = vshll.u32 683565275, %v2085
    %v2089 = vshrl.u32 2475754826, %v2086
    %v2090 = vor.u32 %v2088, %v2089
    %v2091 = vshll.u32 2475754826, %v2085
    %v2092 = vshrl.u32 2131351028, %v2086
    %v2093 = vor.u32 %v2091, %v2092
    %v2094 = vshll.u32 2131351028, %v2085
    %v2095 = vshrl.u32 2102212464, %v2086
    %v2096 = vor.u32 %v2094, %v2095
    %v2097 = vshll.u32 2102212464, %v2085
    %v2098 = vshrl.u32 920167782, %v2086
    %v2099 = vor.u32 %v2097, %v2098
    %v2100 = vshll.u32 920167782, %v2085
    %v2101 = vshrl.u32 1326507024, %v2086
    %v2102 = vor.u32 %v2100, %v2101
    %vm2103 = vcmp.lt.s32.totalorder %v2084, 1
    %vm2104 = vcmp.lt.s32.totalorder %v2084, 2
    %vm2105 = vcmp.lt.s32.totalorder %v2084, 3
    %vm2106 = vcmp.lt.s32.totalorder %v2084, 4
    %v2107 = vsel %vm2103, %v2087, %v2090
    %v2108 = vsel %vm2106, %v2096, 2102212464
    %v2109 = vsel %vm2105, %v2093, %v2108
    %v2110 = vsel %vm2104, %v2107, %v2109
    %v2111 = vsel %vm2103, %v2090, %v2093
    %v2112 = vsel %vm2106, %v2099, 920167782
    %v2113 = vsel %vm2105, %v2096, %v2112
    %v2114 = vsel %vm2104, %v2111, %v2113
    %v2115 = vsel %vm2103, %v2093, %v2096
    %v2116 = vsel %vm2106, %v2102, 1326507024
    %v2117 = vsel %vm2105, %v2099, %v2116
    %v2118 = vsel %vm2104, %v2115, %v2117
    %v2119 = vshll.u32 %v2079, 8
    %v2120 = vmul.u32.u64.compose %v2119, %v2118
    %v2121 = vextract.low.u32 %v2120
    %v2122 = vextract.high.u32 %v2120
    %v2123 = vmul.u32.u64.compose %v2119, %v2114
    %v2124 = vextract.low.u32 %v2123
    %v2125 = vextract.high.u32 %v2123
    %v2126 = vmul.u32 %v2119, %v2110
    %v2127 = vadd.s32 %v2122, %v2124
    %vm2128 = vc.u32 %v2122, %v2124
    %v2129 = vadd.s32 %v2125, 1
    %v2130 = vsel %vm2128, %v2129, %v2125
    %v2131 = vadd.s32 %v2126, %v2130
    %v2132 = vadd.s32 %v2131, 536870912
    %v2133 = vshrl.u32 %v2132, 30
    %v2134 = vshll.u32 %v2133, 30
    %v2135 = vsub.s32 %v2131, %v2134
    %vm2136 = vcmp.lt.s32.totalorder %v2135, 0
    %v2137 = vsub.s32 0, %v2135
    %v2138 = vsel %vm2136, %v2137, %v2135
    %v2139 = vclz %v2138
    %v2140 = vsub.s32 %v2139, 2
    %vm2141 = vcmp.gt.s32.totalorder 0, %v2140
    %v2142 = vsel %vm2141, 0, %v2140
    %v2143 = vsub.s32 32, %v2142
    %v2144 = vshll.u32 %v2135, %v2142
    %v2145 = vshrl.u32 %v2127, %v2143
    %v2146 = vor.u32 %v2144, %v2145
    %v2147 = vsub.s32 4294967266, %v2142
    %v2148 = vadd.s32 %v2147, 127
    %v2149 = vshll.u32 %v2148, 23
    %v2150 = vor.u32 4788187, %v2149
    %v2151 = vand.u32 2147483647, %v2150
    %v2153 = vcvt.s32.f32 %v2146
    %v2154 = vmul.f32 %v2153, %v2151
    %v2155 = vxor.u32 %v2154, 2147483648
    %v2156 = vsel %vm2073, %v2155, %v2154
    %v2157 = vsub.s32 4, %v2133
    %v2158 = vsel %vm2073, %v2157, %v2133
    %v2159 = vsel %vm2072, %v1993, %v2156
    %v2160 = vsel %vm2072, 0, %v2158
    %v2161 = vcosq.f32.pop %v2159
    %v2162 = vsinq.f32.pop %v2159
    %vm2163 = vweird.f32 %v1993
    %v2164 = vadd.s32 %v2160, 3
    %v2165 = vand.u32 %v2164, 3
    %vm2166 = vcmp.lt.s32.totalorder %v2165, 2
    %vm2167 = vcmp.eq.s32.totalorder %v2165, 0
    %v2168 = vxor.u32 %v2162, 2147483648
    %v2169 = vsel %vm2167, %v2161, %v2168
    %vm2170 = vcmp.eq.s32.totalorder %v2165, 2
    %v2171 = vxor.u32 %v2161, 2147483648
    %v2172 = vsel %vm2170, %v2171, %v2162
    %v2173 = vsel %vm2166, %v2169, %v2172
    %v2174 = vsel %vm2163, nan, %v2173
    %v2175 = vand.u32 2147483647, %v1998
    %vm2176 = vcmp.le.f32.partialorder %v2175, 0.7853982
    %vm2177 = vcmp.lt.s32.totalorder %v1998, 0
    %v2178 = vand.u32 %v1998, 2139095040
    %v2179 = vshrl.u32 %v2178, 23
    %v2180 = vsub.s32 %v2179, 127
    %v2181 = vand.u32 2147483647, %v1998
    %v2182 = vand.u32 %v2181, 8388607
    %v2183 = vor.u32 %v2182, 8388608
    %v2184 = vsub.s32 0, %v2183
    %v2185 = vadd.s32 %v2180, 1
    %vm2186 = vcmp.gt.s32.totalorder %v2185, 0
    %v2187 = vsel %vm2186, %v2185, 0
    %v2188 = vshrl.u32 %v2187, 5
    %v2189 = vand.u32 %v2187, 31
    %v2190 = vsub.s32 32, %v2189
    %v2191 = vshrl.u32 683565275, %v2190
    %v2192 = vshll.u32 683565275, %v2189
    %v2193 = vshrl.u32 2475754826, %v2190
    %v2194 = vor.u32 %v2192, %v2193
    %v2195 = vshll.u32 2475754826, %v2189
    %v2196 = vshrl.u32 2131351028, %v2190
    %v2197 = vor.u32 %v2195, %v2196
    %v2198 = vshll.u32 2131351028, %v2189
    %v2199 = vshrl.u32 2102212464, %v2190
    %v2200 = vor.u32 %v2198, %v2199
    %v2201 = vshll.u32 2102212464, %v2189
    %v2202 = vshrl.u32 920167782, %v2190
    %v2203 = vor.u32 %v2201, %v2202
    %v2204 = vshll.u32 920167782, %v2189
    %v2205 = vshrl.u32 1326507024, %v2190
    %v2206 = vor.u32 %v2204, %v2205
    %vm2207 = vcmp.lt.s32.totalorder %v2188, 1
    %vm2208 = vcmp.lt.s32.totalorder %v2188, 2
    %vm2209 = vcmp.lt.s32.totalorder %v2188, 3
    %vm2210 = vcmp.lt.s32.totalorder %v2188, 4
    %v2211 = vsel %vm2207, %v2191, %v2194
    %v2212 = vsel %vm2210, %v2200, 2102212464
    %v2213 = vsel %vm2209, %v2197, %v2212
    %v2214 = vsel %vm2208, %v2211, %v2213
    %v2215 = vsel %vm2207, %v2194, %v2197
    %v2216 = vsel %vm2210, %v2203, 920167782
    %v2217 = vsel %vm2209, %v2200, %v2216
    %v2218 = vsel %vm2208, %v2215, %v2217
    %v2219 = vsel %vm2207, %v2197, %v2200
    %v2220 = vsel %vm2210, %v2206, 1326507024
    %v2221 = vsel %vm2209, %v2203, %v2220
    %v2222 = vsel %vm2208, %v2219, %v2221
    %v2223 = vshll.u32 %v2183, 8
    %v2224 = vmul.u32.u64.compose %v2223, %v2222
    %v2225 = vextract.low.u32 %v2224
    %v2226 = vextract.high.u32 %v2224
    %v2227 = vmul.u32.u64.compose %v2223, %v2218
    %v2228 = vextract.low.u32 %v2227
    %v2229 = vextract.high.u32 %v2227
    %v2230 = vmul.u32 %v2223, %v2214
    %v2231 = vadd.s32 %v2226, %v2228
    %vm2232 = vc.u32 %v2226, %v2228
    %v2233 = vadd.s32 %v2229, 1
    %v2234 = vsel %vm2232, %v2233, %v2229
    %v2235 = vadd.s32 %v2230, %v2234
    %v2236 = vadd.s32 %v2235, 536870912
    %v2237 = vshrl.u32 %v2236, 30
    %v2238 = vshll.u32 %v2237, 30
    %v2239 = vsub.s32 %v2235, %v2238
    %vm2240 = vcmp.lt.s32.totalorder %v2239, 0
    %v2241 = vsub.s32 0, %v2239
    %v2242 = vsel %vm2240, %v2241, %v2239
    %v2243 = vclz %v2242
    %v2244 = vsub.s32 %v2243, 2
    %vm2245 = vcmp.gt.s32.totalorder 0, %v2244
    %v2246 = vsel %vm2245, 0, %v2244
    %v2247 = vsub.s32 32, %v2246
    %v2248 = vshll.u32 %v2239, %v2246
    %v2249 = vshrl.u32 %v2231, %v2247
    %v2250 = vor.u32 %v2248, %v2249
    %v2251 = vsub.s32 4294967266, %v2246
    %v2252 = vadd.s32 %v2251, 127
    %v2253 = vshll.u32 %v2252, 23
    %v2254 = vor.u32 4788187, %v2253
    %v2255 = vand.u32 2147483647, %v2254
    %v2257 = vcvt.s32.f32 %v2250
    %v2258 = vmul.f32 %v2257, %v2255
    %v2259 = vxor.u32 %v2258, 2147483648
    %v2260 = vsel %vm2177, %v2259, %v2258
    %v2261 = vsub.s32 4, %v2237
    %v2262 = vsel %vm2177, %v2261, %v2237
    %v2263 = vsel %vm2176, %v1998, %v2260
    %v2264 = vsel %vm2176, 0, %v2262
    %v2265 = vcosq.f32.pop %v2263
    %v2266 = vsinq.f32.pop %v2263
    %vm2267 = vweird.f32 %v1998
    %v2268 = vadd.s32 %v2264, 3
    %v2269 = vand.u32 %v2268, 3
    %vm2270 = vcmp.lt.s32.totalorder %v2269, 2
    %vm2271 = vcmp.eq.s32.totalorder %v2269, 0
    %v2272 = vxor.u32 %v2266, 2147483648
    %v2273 = vsel %vm2271, %v2265, %v2272
    %vm2274 = vcmp.eq.s32.totalorder %v2269, 2
    %v2275 = vxor.u32 %v2265, 2147483648
    %v2276 = vsel %vm2274, %v2275, %v2266
    %v2277 = vsel %vm2270, %v2273, %v2276
    %v2278 = vsel %vm2267, nan, %v2277
    %v2279 = vand.u32 2147483647, %v2003
    %vm2280 = vcmp.le.f32.partialorder %v2279, 0.7853982
    %vm2281 = vcmp.lt.s32.totalorder %v2003, 0
    %v2282 = vand.u32 %v2003, 2139095040
    %v2283 = vshrl.u32 %v2282, 23
    %v2284 = vsub.s32 %v2283, 127
    %v2285 = vand.u32 2147483647, %v2003
    %v2286 = vand.u32 %v2285, 8388607
    %v2287 = vor.u32 %v2286, 8388608
    %v2288 = vsub.s32 0, %v2287
    %v2289 = vadd.s32 %v2284, 1
    %vm2290 = vcmp.gt.s32.totalorder %v2289, 0
    %v2291 = vsel %vm2290, %v2289, 0
    %v2292 = vshrl.u32 %v2291, 5
    %v2293 = vand.u32 %v2291, 31
    %v2294 = vsub.s32 32, %v2293
    %v2295 = vshrl.u32 683565275, %v2294
    %v2296 = vshll.u32 683565275, %v2293
    %v2297 = vshrl.u32 2475754826, %v2294
    %v2298 = vor.u32 %v2296, %v2297
    %v2299 = vshll.u32 2475754826, %v2293
    %v2300 = vshrl.u32 2131351028, %v2294
    %v2301 = vor.u32 %v2299, %v2300
    %v2302 = vshll.u32 2131351028, %v2293
    %v2303 = vshrl.u32 2102212464, %v2294
    %v2304 = vor.u32 %v2302, %v2303
    %v2305 = vshll.u32 2102212464, %v2293
    %v2306 = vshrl.u32 920167782, %v2294
    %v2307 = vor.u32 %v2305, %v2306
    %v2308 = vshll.u32 920167782, %v2293
    %v2309 = vshrl.u32 1326507024, %v2294
    %v2310 = vor.u32 %v2308, %v2309
    %vm2311 = vcmp.lt.s32.totalorder %v2292, 1
    %vm2312 = vcmp.lt.s32.totalorder %v2292, 2
    %vm2313 = vcmp.lt.s32.totalorder %v2292, 3
    %vm2314 = vcmp.lt.s32.totalorder %v2292, 4
    %v2315 = vsel %vm2311, %v2295, %v2298
    %v2316 = vsel %vm2314, %v2304, 2102212464
    %v2317 = vsel %vm2313, %v2301, %v2316
    %v2318 = vsel %vm2312, %v2315, %v2317
    %v2319 = vsel %vm2311, %v2298, %v2301
    %v2320 = vsel %vm2314, %v2307, 920167782
    %v2321 = vsel %vm2313, %v2304, %v2320
    %v2322 = vsel %vm2312, %v2319, %v2321
    %v2323 = vsel %vm2311, %v2301, %v2304
    %v2324 = vsel %vm2314, %v2310, 1326507024
    %v2325 = vsel %vm2313, %v2307, %v2324
    %v2326 = vsel %vm2312, %v2323, %v2325
    %v2327 = vshll.u32 %v2287, 8
    %v2328 = vmul.u32.u64.compose %v2327, %v2326
    %v2329 = vextract.low.u32 %v2328
    %v2330 = vextract.high.u32 %v2328
    %v2331 = vmul.u32.u64.compose %v2327, %v2322
    %v2332 = vextract.low.u32 %v2331
    %v2333 = vextract.high.u32 %v2331
    %v2334 = vmul.u32 %v2327, %v2318
    %v2335 = vadd.s32 %v2330, %v2332
    %vm2336 = vc.u32 %v2330, %v2332
    %v2337 = vadd.s32 %v2333, 1
    %v2338 = vsel %vm2336, %v2337, %v2333
    %v2339 = vadd.s32 %v2334, %v2338
    %v2340 = vadd.s32 %v2339, 536870912
    %v2341 = vshrl.u32 %v2340, 30
    %v2342 = vshll.u32 %v2341, 30
    %v2343 = vsub.s32 %v2339, %v2342
    %vm2344 = vcmp.lt.s32.totalorder %v2343, 0
    %v2345 = vsub.s32 0, %v2343
    %v2346 = vsel %vm2344, %v2345, %v2343
    %v2347 = vclz %v2346
    %v2348 = vsub.s32 %v2347, 2
    %vm2349 = vcmp.gt.s32.totalorder 0, %v2348
    %v2350 = vsel %vm2349, 0, %v2348
    %v2351 = vsub.s32 32, %v2350
    %v2352 = vshll.u32 %v2343, %v2350
    %v2353 = vshrl.u32 %v2335, %v2351
    %v2354 = vor.u32 %v2352, %v2353
    %v2355 = vsub.s32 4294967266, %v2350
    %v2356 = vadd.s32 %v2355, 127
    %v2357 = vshll.u32 %v2356, 23
    %v2358 = vor.u32 4788187, %v2357
    %v2359 = vand.u32 2147483647, %v2358
    %v2361 = vcvt.s32.f32 %v2354
    %v2362 = vmul.f32 %v2361, %v2359
    %v2363 = vxor.u32 %v2362, 2147483648
    %v2364 = vsel %vm2281, %v2363, %v2362
    %v2365 = vsub.s32 4, %v2341
    %v2366 = vsel %vm2281, %v2365, %v2341
    %v2367 = vsel %vm2280, %v2003, %v2364
    %v2368 = vsel %vm2280, 0, %v2366
    %v2369 = vcosq.f32.pop %v2367
    %v2370 = vsinq.f32.pop %v2367
    %vm2371 = vweird.f32 %v2003
    %v2372 = vadd.s32 %v2368, 3
    %v2373 = vand.u32 %v2372, 3
    %vm2374 = vcmp.lt.s32.totalorder %v2373, 2
    %vm2375 = vcmp.eq.s32.totalorder %v2373, 0
    %v2376 = vxor.u32 %v2370, 2147483648
    %v2377 = vsel %vm2375, %v2369, %v2376
    %vm2378 = vcmp.eq.s32.totalorder %v2373, 2
    %v2379 = vxor.u32 %v2369, 2147483648
    %v2380 = vsel %vm2378, %v2379, %v2370
    %v2381 = vsel %vm2374, %v2377, %v2380
    %v2382 = vsel %vm2371, nan, %v2381
    %v2383 = vand.u32 2147483647, %v2008
    %vm2384 = vcmp.le.f32.partialorder %v2383, 0.7853982
    %vm2385 = vcmp.lt.s32.totalorder %v2008, 0
    %v2386 = vand.u32 %v2008, 2139095040
    %v2387 = vshrl.u32 %v2386, 23
    %v2388 = vsub.s32 %v2387, 127
    %v2389 = vand.u32 2147483647, %v2008
    %v2390 = vand.u32 %v2389, 8388607
    %v2391 = vor.u32 %v2390, 8388608
    %v2392 = vsub.s32 0, %v2391
    %v2393 = vadd.s32 %v2388, 1
    %vm2394 = vcmp.gt.s32.totalorder %v2393, 0
    %v2395 = vsel %vm2394, %v2393, 0
    %v2396 = vshrl.u32 %v2395, 5
    %v2397 = vand.u32 %v2395, 31
    %v2398 = vsub.s32 32, %v2397
    %v2399 = vshrl.u32 683565275, %v2398
    %v2400 = vshll.u32 683565275, %v2397
    %v2401 = vshrl.u32 2475754826, %v2398
    %v2402 = vor.u32 %v2400, %v2401
    %v2403 = vshll.u32 2475754826, %v2397
    %v2404 = vshrl.u32 2131351028, %v2398
    %v2405 = vor.u32 %v2403, %v2404
    %v2406 = vshll.u32 2131351028, %v2397
    %v2407 = vshrl.u32 2102212464, %v2398
    %v2408 = vor.u32 %v2406, %v2407
    %v2409 = vshll.u32 2102212464, %v2397
    %v2410 = vshrl.u32 920167782, %v2398
    %v2411 = vor.u32 %v2409, %v2410
    %v2412 = vshll.u32 920167782, %v2397
    %v2413 = vshrl.u32 1326507024, %v2398
    %v2414 = vor.u32 %v2412, %v2413
    %vm2415 = vcmp.lt.s32.totalorder %v2396, 1
    %vm2416 = vcmp.lt.s32.totalorder %v2396, 2
    %vm2417 = vcmp.lt.s32.totalorder %v2396, 3
    %vm2418 = vcmp.lt.s32.totalorder %v2396, 4
    %v2419 = vsel %vm2415, %v2399, %v2402
    %v2420 = vsel %vm2418, %v2408, 2102212464
    %v2421 = vsel %vm2417, %v2405, %v2420
    %v2422 = vsel %vm2416, %v2419, %v2421
    %v2423 = vsel %vm2415, %v2402, %v2405
    %v2424 = vsel %vm2418, %v2411, 920167782
    %v2425 = vsel %vm2417, %v2408, %v2424
    %v2426 = vsel %vm2416, %v2423, %v2425
    %v2427 = vsel %vm2415, %v2405, %v2408
    %v2428 = vsel %vm2418, %v2414, 1326507024
    %v2429 = vsel %vm2417, %v2411, %v2428
    %v2430 = vsel %vm2416, %v2427, %v2429
    %v2431 = vshll.u32 %v2391, 8
    %v2432 = vmul.u32.u64.compose %v2431, %v2430
    %v2433 = vextract.low.u32 %v2432
    %v2434 = vextract.high.u32 %v2432
    %v2435 = vmul.u32.u64.compose %v2431, %v2426
    %v2436 = vextract.low.u32 %v2435
    %v2437 = vextract.high.u32 %v2435
    %v2438 = vmul.u32 %v2431, %v2422
    %v2439 = vadd.s32 %v2434, %v2436
    %vm2440 = vc.u32 %v2434, %v2436
    %v2441 = vadd.s32 %v2437, 1
    %v2442 = vsel %vm2440, %v2441, %v2437
    %v2443 = vadd.s32 %v2438, %v2442
    %v2444 = vadd.s32 %v2443, 536870912
    %v2445 = vshrl.u32 %v2444, 30
    %v2446 = vshll.u32 %v2445, 30
    %v2447 = vsub.s32 %v2443, %v2446
    %vm2448 = vcmp.lt.s32.totalorder %v2447, 0
    %v2449 = vsub.s32 0, %v2447
    %v2450 = vsel %vm2448, %v2449, %v2447
    %v2451 = vclz %v2450
    %v2452 = vsub.s32 %v2451, 2
    %vm2453 = vcmp.gt.s32.totalorder 0, %v2452
    %v2454 = vsel %vm2453, 0, %v2452
    %v2455 = vsub.s32 32, %v2454
    %v2456 = vshll.u32 %v2447, %v2454
    %v2457 = vshrl.u32 %v2439, %v2455
    %v2458 = vor.u32 %v2456, %v2457
    %v2459 = vsub.s32 4294967266, %v2454
    %v2460 = vadd.s32 %v2459, 127
    %v2461 = vshll.u32 %v2460, 23
    %v2462 = vor.u32 4788187, %v2461
    %v2463 = vand.u32 2147483647, %v2462
    %v2465 = vcvt.s32.f32 %v2458
    %v2466 = vmul.f32 %v2465, %v2463
    %v2467 = vxor.u32 %v2466, 2147483648
    %v2468 = vsel %vm2385, %v2467, %v2466
    %v2469 = vsub.s32 4, %v2445
    %v2470 = vsel %vm2385, %v2469, %v2445
    %v2471 = vsel %vm2384, %v2008, %v2468
    %v2472 = vsel %vm2384, 0, %v2470
    %v2473 = vcosq.f32.pop %v2471
    %v2474 = vsinq.f32.pop %v2471
    %vm2475 = vweird.f32 %v2008
    %v2476 = vadd.s32 %v2472, 3
    %v2477 = vand.u32 %v2476, 3
    %vm2478 = vcmp.lt.s32.totalorder %v2477, 2
    %vm2479 = vcmp.eq.s32.totalorder %v2477, 0
    %v2480 = vxor.u32 %v2474, 2147483648
    %v2481 = vsel %vm2479, %v2473, %v2480
    %vm2482 = vcmp.eq.s32.totalorder %v2477, 2
    %v2483 = vxor.u32 %v2473, 2147483648
    %v2484 = vsel %vm2482, %v2483, %v2474
    %v2485 = vsel %vm2478, %v2481, %v2484
    %v2486 = vsel %vm2475, nan, %v2485
    %v2487 = vand.u32 2147483647, %v2013
    %vm2488 = vcmp.le.f32.partialorder %v2487, 0.7853982
    %vm2489 = vcmp.lt.s32.totalorder %v2013, 0
    %v2490 = vand.u32 %v2013, 2139095040
    %v2491 = vshrl.u32 %v2490, 23
    %v2492 = vsub.s32 %v2491, 127
    %v2493 = vand.u32 2147483647, %v2013
    %v2494 = vand.u32 %v2493, 8388607
    %v2495 = vor.u32 %v2494, 8388608
    %v2496 = vsub.s32 0, %v2495
    %v2497 = vadd.s32 %v2492, 1
    %vm2498 = vcmp.gt.s32.totalorder %v2497, 0
    %v2499 = vsel %vm2498, %v2497, 0
    %v2500 = vshrl.u32 %v2499, 5
    %v2501 = vand.u32 %v2499, 31
    %v2502 = vsub.s32 32, %v2501
    %v2503 = vshrl.u32 683565275, %v2502
    %v2504 = vshll.u32 683565275, %v2501
    %v2505 = vshrl.u32 2475754826, %v2502
    %v2506 = vor.u32 %v2504, %v2505
    %v2507 = vshll.u32 2475754826, %v2501
    %v2508 = vshrl.u32 2131351028, %v2502
    %v2509 = vor.u32 %v2507, %v2508
    %v2510 = vshll.u32 2131351028, %v2501
    %v2511 = vshrl.u32 2102212464, %v2502
    %v2512 = vor.u32 %v2510, %v2511
    %v2513 = vshll.u32 2102212464, %v2501
    %v2514 = vshrl.u32 920167782, %v2502
    %v2515 = vor.u32 %v2513, %v2514
    %v2516 = vshll.u32 920167782, %v2501
    %v2517 = vshrl.u32 1326507024, %v2502
    %v2518 = vor.u32 %v2516, %v2517
    %vm2519 = vcmp.lt.s32.totalorder %v2500, 1
    %vm2520 = vcmp.lt.s32.totalorder %v2500, 2
    %vm2521 = vcmp.lt.s32.totalorder %v2500, 3
    %vm2522 = vcmp.lt.s32.totalorder %v2500, 4
    %v2523 = vsel %vm2519, %v2503, %v2506
    %v2524 = vsel %vm2522, %v2512, 2102212464
    %v2525 = vsel %vm2521, %v2509, %v2524
    %v2526 = vsel %vm2520, %v2523, %v2525
    %v2527 = vsel %vm2519, %v2506, %v2509
    %v2528 = vsel %vm2522, %v2515, 920167782
    %v2529 = vsel %vm2521, %v2512, %v2528
    %v2530 = vsel %vm2520, %v2527, %v2529
    %v2531 = vsel %vm2519, %v2509, %v2512
    %v2532 = vsel %vm2522, %v2518, 1326507024
    %v2533 = vsel %vm2521, %v2515, %v2532
    %v2534 = vsel %vm2520, %v2531, %v2533
    %v2535 = vshll.u32 %v2495, 8
    %v2536 = vmul.u32.u64.compose %v2535, %v2534
    %v2537 = vextract.low.u32 %v2536
    %v2538 = vextract.high.u32 %v2536
    %v2539 = vmul.u32.u64.compose %v2535, %v2530
    %v2540 = vextract.low.u32 %v2539
    %v2541 = vextract.high.u32 %v2539
    %v2542 = vmul.u32 %v2535, %v2526
    %v2543 = vadd.s32 %v2538, %v2540
    %vm2544 = vc.u32 %v2538, %v2540
    %v2545 = vadd.s32 %v2541, 1
    %v2546 = vsel %vm2544, %v2545, %v2541
    %v2547 = vadd.s32 %v2542, %v2546
    %v2548 = vadd.s32 %v2547, 536870912
    %v2549 = vshrl.u32 %v2548, 30
    %v2550 = vshll.u32 %v2549, 30
    %v2551 = vsub.s32 %v2547, %v2550
    %vm2552 = vcmp.lt.s32.totalorder %v2551, 0
    %v2553 = vsub.s32 0, %v2551
    %v2554 = vsel %vm2552, %v2553, %v2551
    %v2555 = vclz %v2554
    %v2556 = vsub.s32 %v2555, 2
    %vm2557 = vcmp.gt.s32.totalorder 0, %v2556
    %v2558 = vsel %vm2557, 0, %v2556
    %v2559 = vsub.s32 32, %v2558
    %v2560 = vshll.u32 %v2551, %v2558
    %v2561 = vshrl.u32 %v2543, %v2559
    %v2562 = vor.u32 %v2560, %v2561
    %v2563 = vsub.s32 4294967266, %v2558
    %v2564 = vadd.s32 %v2563, 127
    %v2565 = vshll.u32 %v2564, 23
    %v2566 = vor.u32 4788187, %v2565
    %v2567 = vand.u32 2147483647, %v2566
    %v2569 = vcvt.s32.f32 %v2562
    %v2570 = vmul.f32 %v2569, %v2567
    %v2571 = vxor.u32 %v2570, 2147483648
    %v2572 = vsel %vm2489, %v2571, %v2570
    %v2573 = vsub.s32 4, %v2549
    %v2574 = vsel %vm2489, %v2573, %v2549
    %v2575 = vsel %vm2488, %v2013, %v2572
    %v2576 = vsel %vm2488, 0, %v2574
    %v2577 = vcosq.f32.pop %v2575
    %v2578 = vsinq.f32.pop %v2575
    %vm2579 = vweird.f32 %v2013
    %v2580 = vadd.s32 %v2576, 3
    %v2581 = vand.u32 %v2580, 3
    %vm2582 = vcmp.lt.s32.totalorder %v2581, 2
    %vm2583 = vcmp.eq.s32.totalorder %v2581, 0
    %v2584 = vxor.u32 %v2578, 2147483648
    %v2585 = vsel %vm2583, %v2577, %v2584
    %vm2586 = vcmp.eq.s32.totalorder %v2581, 2
    %v2587 = vxor.u32 %v2577, 2147483648
    %v2588 = vsel %vm2586, %v2587, %v2578
    %v2589 = vsel %vm2582, %v2585, %v2588
    %v2590 = vsel %vm2579, nan, %v2589
    %v2591 = vand.u32 2147483647, %v2018
    %vm2592 = vcmp.le.f32.partialorder %v2591, 0.7853982
    %vm2593 = vcmp.lt.s32.totalorder %v2018, 0
    %v2594 = vand.u32 %v2018, 2139095040
    %v2595 = vshrl.u32 %v2594, 23
    %v2596 = vsub.s32 %v2595, 127
    %v2597 = vand.u32 2147483647, %v2018
    %v2598 = vand.u32 %v2597, 8388607
    %v2599 = vor.u32 %v2598, 8388608
    %v2600 = vsub.s32 0, %v2599
    %v2601 = vadd.s32 %v2596, 1
    %vm2602 = vcmp.gt.s32.totalorder %v2601, 0
    %v2603 = vsel %vm2602, %v2601, 0
    %v2604 = vshrl.u32 %v2603, 5
    %v2605 = vand.u32 %v2603, 31
    %v2606 = vsub.s32 32, %v2605
    %v2607 = vshrl.u32 683565275, %v2606
    %v2608 = vshll.u32 683565275, %v2605
    %v2609 = vshrl.u32 2475754826, %v2606
    %v2610 = vor.u32 %v2608, %v2609
    %v2611 = vshll.u32 2475754826, %v2605
    %v2612 = vshrl.u32 2131351028, %v2606
    %v2613 = vor.u32 %v2611, %v2612
    %v2614 = vshll.u32 2131351028, %v2605
    %v2615 = vshrl.u32 2102212464, %v2606
    %v2616 = vor.u32 %v2614, %v2615
    %v2617 = vshll.u32 2102212464, %v2605
    %v2618 = vshrl.u32 920167782, %v2606
    %v2619 = vor.u32 %v2617, %v2618
    %v2620 = vshll.u32 920167782, %v2605
    %v2621 = vshrl.u32 1326507024, %v2606
    %v2622 = vor.u32 %v2620, %v2621
    %vm2623 = vcmp.lt.s32.totalorder %v2604, 1
    %vm2624 = vcmp.lt.s32.totalorder %v2604, 2
    %vm2625 = vcmp.lt.s32.totalorder %v2604, 3
    %vm2626 = vcmp.lt.s32.totalorder %v2604, 4
    %v2627 = vsel %vm2623, %v2607, %v2610
    %v2628 = vsel %vm2626, %v2616, 2102212464
    %v2629 = vsel %vm2625, %v2613, %v2628
    %v2630 = vsel %vm2624, %v2627, %v2629
    %v2631 = vsel %vm2623, %v2610, %v2613
    %v2632 = vsel %vm2626, %v2619, 920167782
    %v2633 = vsel %vm2625, %v2616, %v2632
    %v2634 = vsel %vm2624, %v2631, %v2633
    %v2635 = vsel %vm2623, %v2613, %v2616
    %v2636 = vsel %vm2626, %v2622, 1326507024
    %v2637 = vsel %vm2625, %v2619, %v2636
    %v2638 = vsel %vm2624, %v2635, %v2637
    %v2639 = vshll.u32 %v2599, 8
    %v2640 = vmul.u32.u64.compose %v2639, %v2638
    %v2641 = vextract.low.u32 %v2640
    %v2642 = vextract.high.u32 %v2640
    %v2643 = vmul.u32.u64.compose %v2639, %v2634
    %v2644 = vextract.low.u32 %v2643
    %v2645 = vextract.high.u32 %v2643
    %v2646 = vmul.u32 %v2639, %v2630
    %v2647 = vadd.s32 %v2642, %v2644
    %vm2648 = vc.u32 %v2642, %v2644
    %v2649 = vadd.s32 %v2645, 1
    %v2650 = vsel %vm2648, %v2649, %v2645
    %v2651 = vadd.s32 %v2646, %v2650
    %v2652 = vadd.s32 %v2651, 536870912
    %v2653 = vshrl.u32 %v2652, 30
    %v2654 = vshll.u32 %v2653, 30
    %v2655 = vsub.s32 %v2651, %v2654
    %vm2656 = vcmp.lt.s32.totalorder %v2655, 0
    %v2657 = vsub.s32 0, %v2655
    %v2658 = vsel %vm2656, %v2657, %v2655
    %v2659 = vclz %v2658
    %v2660 = vsub.s32 %v2659, 2
    %vm2661 = vcmp.gt.s32.totalorder 0, %v2660
    %v2662 = vsel %vm2661, 0, %v2660
    %v2663 = vsub.s32 32, %v2662
    %v2664 = vshll.u32 %v2655, %v2662
    %v2665 = vshrl.u32 %v2647, %v2663
    %v2666 = vor.u32 %v2664, %v2665
    %v2667 = vsub.s32 4294967266, %v2662
    %v2668 = vadd.s32 %v2667, 127
    %v2669 = vshll.u32 %v2668, 23
    %v2670 = vor.u32 4788187, %v2669
    %v2671 = vand.u32 2147483647, %v2670
    %v2673 = vcvt.s32.f32 %v2666
    %v2674 = vmul.f32 %v2673, %v2671
    %v2675 = vxor.u32 %v2674, 2147483648
    %v2676 = vsel %vm2593, %v2675, %v2674
    %v2677 = vsub.s32 4, %v2653
    %v2678 = vsel %vm2593, %v2677, %v2653
    %v2679 = vsel %vm2592, %v2018, %v2676
    %v2680 = vsel %vm2592, 0, %v2678
    %v2681 = vcosq.f32.pop %v2679
    %v2682 = vsinq.f32.pop %v2679
    %vm2683 = vweird.f32 %v2018
    %v2684 = vadd.s32 %v2680, 3
    %v2685 = vand.u32 %v2684, 3
    %vm2686 = vcmp.lt.s32.totalorder %v2685, 2
    %vm2687 = vcmp.eq.s32.totalorder %v2685, 0
    %v2688 = vxor.u32 %v2682, 2147483648
    %v2689 = vsel %vm2687, %v2681, %v2688
    %vm2690 = vcmp.eq.s32.totalorder %v2685, 2
    %v2691 = vxor.u32 %v2681, 2147483648
    %v2692 = vsel %vm2690, %v2691, %v2682
    %v2693 = vsel %vm2686, %v2689, %v2692
    %v2694 = vsel %vm2683, nan, %v2693
    %v2695 = vand.u32 2147483647, %v2023
    %vm2696 = vcmp.le.f32.partialorder %v2695, 0.7853982
    %vm2697 = vcmp.lt.s32.totalorder %v2023, 0
    %v2698 = vand.u32 %v2023, 2139095040
    %v2699 = vshrl.u32 %v2698, 23
    %v2700 = vsub.s32 %v2699, 127
    %v2701 = vand.u32 2147483647, %v2023
    %v2702 = vand.u32 %v2701, 8388607
    %v2703 = vor.u32 %v2702, 8388608
    %v2704 = vsub.s32 0, %v2703
    %v2705 = vadd.s32 %v2700, 1
    %vm2706 = vcmp.gt.s32.totalorder %v2705, 0
    %v2707 = vsel %vm2706, %v2705, 0
    %v2708 = vshrl.u32 %v2707, 5
    %v2709 = vand.u32 %v2707, 31
    %v2710 = vsub.s32 32, %v2709
    %v2711 = vshrl.u32 683565275, %v2710
    %v2712 = vshll.u32 683565275, %v2709
    %v2713 = vshrl.u32 2475754826, %v2710
    %v2714 = vor.u32 %v2712, %v2713
    %v2715 = vshll.u32 2475754826, %v2709
    %v2716 = vshrl.u32 2131351028, %v2710
    %v2717 = vor.u32 %v2715, %v2716
    %v2718 = vshll.u32 2131351028, %v2709
    %v2719 = vshrl.u32 2102212464, %v2710
    %v2720 = vor.u32 %v2718, %v2719
    %v2721 = vshll.u32 2102212464, %v2709
    %v2722 = vshrl.u32 920167782, %v2710
    %v2723 = vor.u32 %v2721, %v2722
    %v2724 = vshll.u32 920167782, %v2709
    %v2725 = vshrl.u32 1326507024, %v2710
    %v2726 = vor.u32 %v2724, %v2725
    %vm2727 = vcmp.lt.s32.totalorder %v2708, 1
    %vm2728 = vcmp.lt.s32.totalorder %v2708, 2
    %vm2729 = vcmp.lt.s32.totalorder %v2708, 3
    %vm2730 = vcmp.lt.s32.totalorder %v2708, 4
    %v2731 = vsel %vm2727, %v2711, %v2714
    %v2732 = vsel %vm2730, %v2720, 2102212464
    %v2733 = vsel %vm2729, %v2717, %v2732
    %v2734 = vsel %vm2728, %v2731, %v2733
    %v2735 = vsel %vm2727, %v2714, %v2717
    %v2736 = vsel %vm2730, %v2723, 920167782
    %v2737 = vsel %vm2729, %v2720, %v2736
    %v2738 = vsel %vm2728, %v2735, %v2737
    %v2739 = vsel %vm2727, %v2717, %v2720
    %v2740 = vsel %vm2730, %v2726, 1326507024
    %v2741 = vsel %vm2729, %v2723, %v2740
    %v2742 = vsel %vm2728, %v2739, %v2741
    %v2743 = vshll.u32 %v2703, 8
    %v2744 = vmul.u32.u64.compose %v2743, %v2742
    %v2745 = vextract.low.u32 %v2744
    %v2746 = vextract.high.u32 %v2744
    %v2747 = vmul.u32.u64.compose %v2743, %v2738
    %v2748 = vextract.low.u32 %v2747
    %v2749 = vextract.high.u32 %v2747
    %v2750 = vmul.u32 %v2743, %v2734
    %v2751 = vadd.s32 %v2746, %v2748
    %vm2752 = vc.u32 %v2746, %v2748
    %v2753 = vadd.s32 %v2749, 1
    %v2754 = vsel %vm2752, %v2753, %v2749
    %v2755 = vadd.s32 %v2750, %v2754
    %v2756 = vadd.s32 %v2755, 536870912
    %v2757 = vshrl.u32 %v2756, 30
    %v2758 = vshll.u32 %v2757, 30
    %v2759 = vsub.s32 %v2755, %v2758
    %vm2760 = vcmp.lt.s32.totalorder %v2759, 0
    %v2761 = vsub.s32 0, %v2759
    %v2762 = vsel %vm2760, %v2761, %v2759
    %v2763 = vclz %v2762
    %v2764 = vsub.s32 %v2763, 2
    %vm2765 = vcmp.gt.s32.totalorder 0, %v2764
    %v2766 = vsel %vm2765, 0, %v2764
    %v2767 = vsub.s32 32, %v2766
    %v2768 = vshll.u32 %v2759, %v2766
    %v2769 = vshrl.u32 %v2751, %v2767
    %v2770 = vor.u32 %v2768, %v2769
    %v2771 = vsub.s32 4294967266, %v2766
    %v2772 = vadd.s32 %v2771, 127
    %v2773 = vshll.u32 %v2772, 23
    %v2774 = vor.u32 4788187, %v2773
    %v2775 = vand.u32 2147483647, %v2774
    %v2777 = vcvt.s32.f32 %v2770
    %v2778 = vmul.f32 %v2777, %v2775
    %v2779 = vxor.u32 %v2778, 2147483648
    %v2780 = vsel %vm2697, %v2779, %v2778
    %v2781 = vsub.s32 4, %v2757
    %v2782 = vsel %vm2697, %v2781, %v2757
    %v2783 = vsel %vm2696, %v2023, %v2780
    %v2784 = vsel %vm2696, 0, %v2782
    %v2785 = vcosq.f32.pop %v2783
    %v2786 = vsinq.f32.pop %v2783
    %vm2787 = vweird.f32 %v2023
    %v2788 = vadd.s32 %v2784, 3
    %v2789 = vand.u32 %v2788, 3
    %vm2790 = vcmp.lt.s32.totalorder %v2789, 2
    %vm2791 = vcmp.eq.s32.totalorder %v2789, 0
    %v2792 = vxor.u32 %v2786, 2147483648
    %v2793 = vsel %vm2791, %v2785, %v2792
    %vm2794 = vcmp.eq.s32.totalorder %v2789, 2
    %v2795 = vxor.u32 %v2785, 2147483648
    %v2796 = vsel %vm2794, %v2795, %v2786
    %v2797 = vsel %vm2790, %v2793, %v2796
    %v2798 = vsel %vm2787, nan, %v2797
    %v2799 = vand.u32 2147483647, %v2028
    %vm2800 = vcmp.le.f32.partialorder %v2799, 0.7853982
    %vm2801 = vcmp.lt.s32.totalorder %v2028, 0
    %v2802 = vand.u32 %v2028, 2139095040
    %v2803 = vshrl.u32 %v2802, 23
    %v2804 = vsub.s32 %v2803, 127
    %v2805 = vand.u32 2147483647, %v2028
    %v2806 = vand.u32 %v2805, 8388607
    %v2807 = vor.u32 %v2806, 8388608
    %v2808 = vsub.s32 0, %v2807
    %v2809 = vadd.s32 %v2804, 1
    %vm2810 = vcmp.gt.s32.totalorder %v2809, 0
    %v2811 = vsel %vm2810, %v2809, 0
    %v2812 = vshrl.u32 %v2811, 5
    %v2813 = vand.u32 %v2811, 31
    %v2814 = vsub.s32 32, %v2813
    %v2815 = vshrl.u32 683565275, %v2814
    %v2816 = vshll.u32 683565275, %v2813
    %v2817 = vshrl.u32 2475754826, %v2814
    %v2818 = vor.u32 %v2816, %v2817
    %v2819 = vshll.u32 2475754826, %v2813
    %v2820 = vshrl.u32 2131351028, %v2814
    %v2821 = vor.u32 %v2819, %v2820
    %v2822 = vshll.u32 2131351028, %v2813
    %v2823 = vshrl.u32 2102212464, %v2814
    %v2824 = vor.u32 %v2822, %v2823
    %v2825 = vshll.u32 2102212464, %v2813
    %v2826 = vshrl.u32 920167782, %v2814
    %v2827 = vor.u32 %v2825, %v2826
    %v2828 = vshll.u32 920167782, %v2813
    %v2829 = vshrl.u32 1326507024, %v2814
    %v2830 = vor.u32 %v2828, %v2829
    %vm2831 = vcmp.lt.s32.totalorder %v2812, 1
    %vm2832 = vcmp.lt.s32.totalorder %v2812, 2
    %vm2833 = vcmp.lt.s32.totalorder %v2812, 3
    %vm2834 = vcmp.lt.s32.totalorder %v2812, 4
    %v2835 = vsel %vm2831, %v2815, %v2818
    %v2836 = vsel %vm2834, %v2824, 2102212464
    %v2837 = vsel %vm2833, %v2821, %v2836
    %v2838 = vsel %vm2832, %v2835, %v2837
    %v2839 = vsel %vm2831, %v2818, %v2821
    %v2840 = vsel %vm2834, %v2827, 920167782
    %v2841 = vsel %vm2833, %v2824, %v2840
    %v2842 = vsel %vm2832, %v2839, %v2841
    %v2843 = vsel %vm2831, %v2821, %v2824
    %v2844 = vsel %vm2834, %v2830, 1326507024
    %v2845 = vsel %vm2833, %v2827, %v2844
    %v2846 = vsel %vm2832, %v2843, %v2845
    %v2847 = vshll.u32 %v2807, 8
    %v2848 = vmul.u32.u64.compose %v2847, %v2846
    %v2849 = vextract.low.u32 %v2848
    %v2850 = vextract.high.u32 %v2848
    %v2851 = vmul.u32.u64.compose %v2847, %v2842
    %v2852 = vextract.low.u32 %v2851
    %v2853 = vextract.high.u32 %v2851
    %v2854 = vmul.u32 %v2847, %v2838
    %v2855 = vadd.s32 %v2850, %v2852
    %vm2856 = vc.u32 %v2850, %v2852
    %v2857 = vadd.s32 %v2853, 1
    %v2858 = vsel %vm2856, %v2857, %v2853
    %v2859 = vadd.s32 %v2854, %v2858
    %v2860 = vadd.s32 %v2859, 536870912
    %v2861 = vshrl.u32 %v2860, 30
    %v2862 = vshll.u32 %v2861, 30
    %v2863 = vsub.s32 %v2859, %v2862
    %vm2864 = vcmp.lt.s32.totalorder %v2863, 0
    %v2865 = vsub.s32 0, %v2863
    %v2866 = vsel %vm2864, %v2865, %v2863
    %v2867 = vclz %v2866
    %v2868 = vsub.s32 %v2867, 2
    %vm2869 = vcmp.gt.s32.totalorder 0, %v2868
    %v2870 = vsel %vm2869, 0, %v2868
    %v2871 = vsub.s32 32, %v2870
    %v2872 = vshll.u32 %v2863, %v2870
    %v2873 = vshrl.u32 %v2855, %v2871
    %v2874 = vor.u32 %v2872, %v2873
    %v2875 = vsub.s32 4294967266, %v2870
    %v2876 = vadd.s32 %v2875, 127
    %v2877 = vshll.u32 %v2876, 23
    %v2878 = vor.u32 4788187, %v2877
    %v2879 = vand.u32 2147483647, %v2878
    %v2881 = vcvt.s32.f32 %v2874
    %v2882 = vmul.f32 %v2881, %v2879
    %v2883 = vxor.u32 %v2882, 2147483648
    %v2884 = vsel %vm2801, %v2883, %v2882
    %v2885 = vsub.s32 4, %v2861
    %v2886 = vsel %vm2801, %v2885, %v2861
    %v2887 = vsel %vm2800, %v2028, %v2884
    %v2888 = vsel %vm2800, 0, %v2886
    %v2889 = vcosq.f32.pop %v2887
    %v2890 = vsinq.f32.pop %v2887
    %vm2891 = vweird.f32 %v2028
    %v2892 = vadd.s32 %v2888, 3
    %v2893 = vand.u32 %v2892, 3
    %vm2894 = vcmp.lt.s32.totalorder %v2893, 2
    %vm2895 = vcmp.eq.s32.totalorder %v2893, 0
    %v2896 = vxor.u32 %v2890, 2147483648
    %v2897 = vsel %vm2895, %v2889, %v2896
    %vm2898 = vcmp.eq.s32.totalorder %v2893, 2
    %v2899 = vxor.u32 %v2889, 2147483648
    %v2900 = vsel %vm2898, %v2899, %v2890
    %v2901 = vsel %vm2894, %v2897, %v2900
    %v2902 = vsel %vm2891, nan, %v2901
    %v2903 = vand.u32 2147483647, %v2033
    %vm2904 = vcmp.le.f32.partialorder %v2903, 0.7853982
    %vm2905 = vcmp.lt.s32.totalorder %v2033, 0
    %v2906 = vand.u32 %v2033, 2139095040
    %v2907 = vshrl.u32 %v2906, 23
    %v2908 = vsub.s32 %v2907, 127
    %v2909 = vand.u32 2147483647, %v2033
    %v2910 = vand.u32 %v2909, 8388607
    %v2911 = vor.u32 %v2910, 8388608
    %v2912 = vsub.s32 0, %v2911
    %v2913 = vadd.s32 %v2908, 1
    %vm2914 = vcmp.gt.s32.totalorder %v2913, 0
    %v2915 = vsel %vm2914, %v2913, 0
    %v2916 = vshrl.u32 %v2915, 5
    %v2917 = vand.u32 %v2915, 31
    %v2918 = vsub.s32 32, %v2917
    %v2919 = vshrl.u32 683565275, %v2918
    %v2920 = vshll.u32 683565275, %v2917
    %v2921 = vshrl.u32 2475754826, %v2918
    %v2922 = vor.u32 %v2920, %v2921
    %v2923 = vshll.u32 2475754826, %v2917
    %v2924 = vshrl.u32 2131351028, %v2918
    %v2925 = vor.u32 %v2923, %v2924
    %v2926 = vshll.u32 2131351028, %v2917
    %v2927 = vshrl.u32 2102212464, %v2918
    %v2928 = vor.u32 %v2926, %v2927
    %v2929 = vshll.u32 2102212464, %v2917
    %v2930 = vshrl.u32 920167782, %v2918
    %v2931 = vor.u32 %v2929, %v2930
    %v2932 = vshll.u32 920167782, %v2917
    %v2933 = vshrl.u32 1326507024, %v2918
    %v2934 = vor.u32 %v2932, %v2933
    %vm2935 = vcmp.lt.s32.totalorder %v2916, 1
    %vm2936 = vcmp.lt.s32.totalorder %v2916, 2
    %vm2937 = vcmp.lt.s32.totalorder %v2916, 3
    %vm2938 = vcmp.lt.s32.totalorder %v2916, 4
    %v2939 = vsel %vm2935, %v2919, %v2922
    %v2940 = vsel %vm2938, %v2928, 2102212464
    %v2941 = vsel %vm2937, %v2925, %v2940
    %v2942 = vsel %vm2936, %v2939, %v2941
    %v2943 = vsel %vm2935, %v2922, %v2925
    %v2944 = vsel %vm2938, %v2931, 920167782
    %v2945 = vsel %vm2937, %v2928, %v2944
    %v2946 = vsel %vm2936, %v2943, %v2945
    %v2947 = vsel %vm2935, %v2925, %v2928
    %v2948 = vsel %vm2938, %v2934, 1326507024
    %v2949 = vsel %vm2937, %v2931, %v2948
    %v2950 = vsel %vm2936, %v2947, %v2949
    %v2951 = vshll.u32 %v2911, 8
    %v2952 = vmul.u32.u64.compose %v2951, %v2950
    %v2953 = vextract.low.u32 %v2952
    %v2954 = vextract.high.u32 %v2952
    %v2955 = vmul.u32.u64.compose %v2951, %v2946
    %v2956 = vextract.low.u32 %v2955
    %v2957 = vextract.high.u32 %v2955
    %v2958 = vmul.u32 %v2951, %v2942
    %v2959 = vadd.s32 %v2954, %v2956
    %vm2960 = vc.u32 %v2954, %v2956
    %v2961 = vadd.s32 %v2957, 1
    %v2962 = vsel %vm2960, %v2961, %v2957
    %v2963 = vadd.s32 %v2958, %v2962
    %v2964 = vadd.s32 %v2963, 536870912
    %v2965 = vshrl.u32 %v2964, 30
    %v2966 = vshll.u32 %v2965, 30
    %v2967 = vsub.s32 %v2963, %v2966
    %vm2968 = vcmp.lt.s32.totalorder %v2967, 0
    %v2969 = vsub.s32 0, %v2967
    %v2970 = vsel %vm2968, %v2969, %v2967
    %v2971 = vclz %v2970
    %v2972 = vsub.s32 %v2971, 2
    %vm2973 = vcmp.gt.s32.totalorder 0, %v2972
    %v2974 = vsel %vm2973, 0, %v2972
    %v2975 = vsub.s32 32, %v2974
    %v2976 = vshll.u32 %v2967, %v2974
    %v2977 = vshrl.u32 %v2959, %v2975
    %v2978 = vor.u32 %v2976, %v2977
    %v2979 = vsub.s32 4294967266, %v2974
    %v2980 = vadd.s32 %v2979, 127
    %v2981 = vshll.u32 %v2980, 23
    %v2982 = vor.u32 4788187, %v2981
    %v2983 = vand.u32 2147483647, %v2982
    %v2985 = vcvt.s32.f32 %v2978
    %v2986 = vmul.f32 %v2985, %v2983
    %v2987 = vxor.u32 %v2986, 2147483648
    %v2988 = vsel %vm2905, %v2987, %v2986
    %v2989 = vsub.s32 4, %v2965
    %v2990 = vsel %vm2905, %v2989, %v2965
    %v2991 = vsel %vm2904, %v2033, %v2988
    %v2992 = vsel %vm2904, 0, %v2990
    %v2993 = vcosq.f32.pop %v2991
    %v2994 = vsinq.f32.pop %v2991
    %vm2995 = vweird.f32 %v2033
    %v2996 = vadd.s32 %v2992, 3
    %v2997 = vand.u32 %v2996, 3
    %vm2998 = vcmp.lt.s32.totalorder %v2997, 2
    %vm2999 = vcmp.eq.s32.totalorder %v2997, 0
    %v3000 = vxor.u32 %v2994, 2147483648
    %v3001 = vsel %vm2999, %v2993, %v3000
    %vm3002 = vcmp.eq.s32.totalorder %v2997, 2
    %v3003 = vxor.u32 %v2993, 2147483648
    %v3004 = vsel %vm3002, %v3003, %v2994
    %v3005 = vsel %vm2998, %v3001, %v3004
    %v3006 = vsel %vm2995, nan, %v3005
    %v3007 = vand.u32 2147483647, %v2038
    %vm3008 = vcmp.le.f32.partialorder %v3007, 0.7853982
    %vm3009 = vcmp.lt.s32.totalorder %v2038, 0
    %v3010 = vand.u32 %v2038, 2139095040
    %v3011 = vshrl.u32 %v3010, 23
    %v3012 = vsub.s32 %v3011, 127
    %v3013 = vand.u32 2147483647, %v2038
    %v3014 = vand.u32 %v3013, 8388607
    %v3015 = vor.u32 %v3014, 8388608
    %v3016 = vsub.s32 0, %v3015
    %v3017 = vadd.s32 %v3012, 1
    %vm3018 = vcmp.gt.s32.totalorder %v3017, 0
    %v3019 = vsel %vm3018, %v3017, 0
    %v3020 = vshrl.u32 %v3019, 5
    %v3021 = vand.u32 %v3019, 31
    %v3022 = vsub.s32 32, %v3021
    %v3023 = vshrl.u32 683565275, %v3022
    %v3024 = vshll.u32 683565275, %v3021
    %v3025 = vshrl.u32 2475754826, %v3022
    %v3026 = vor.u32 %v3024, %v3025
    %v3027 = vshll.u32 2475754826, %v3021
    %v3028 = vshrl.u32 2131351028, %v3022
    %v3029 = vor.u32 %v3027, %v3028
    %v3030 = vshll.u32 2131351028, %v3021
    %v3031 = vshrl.u32 2102212464, %v3022
    %v3032 = vor.u32 %v3030, %v3031
    %v3033 = vshll.u32 2102212464, %v3021
    %v3034 = vshrl.u32 920167782, %v3022
    %v3035 = vor.u32 %v3033, %v3034
    %v3036 = vshll.u32 920167782, %v3021
    %v3037 = vshrl.u32 1326507024, %v3022
    %v3038 = vor.u32 %v3036, %v3037
    %vm3039 = vcmp.lt.s32.totalorder %v3020, 1
    %vm3040 = vcmp.lt.s32.totalorder %v3020, 2
    %vm3041 = vcmp.lt.s32.totalorder %v3020, 3
    %vm3042 = vcmp.lt.s32.totalorder %v3020, 4
    %v3043 = vsel %vm3039, %v3023, %v3026
    %v3044 = vsel %vm3042, %v3032, 2102212464
    %v3045 = vsel %vm3041, %v3029, %v3044
    %v3046 = vsel %vm3040, %v3043, %v3045
    %v3047 = vsel %vm3039, %v3026, %v3029
    %v3048 = vsel %vm3042, %v3035, 920167782
    %v3049 = vsel %vm3041, %v3032, %v3048
    %v3050 = vsel %vm3040, %v3047, %v3049
    %v3051 = vsel %vm3039, %v3029, %v3032
    %v3052 = vsel %vm3042, %v3038, 1326507024
    %v3053 = vsel %vm3041, %v3035, %v3052
    %v3054 = vsel %vm3040, %v3051, %v3053
    %v3055 = vshll.u32 %v3015, 8
    %v3056 = vmul.u32.u64.compose %v3055, %v3054
    %v3057 = vextract.low.u32 %v3056
    %v3058 = vextract.high.u32 %v3056
    %v3059 = vmul.u32.u64.compose %v3055, %v3050
    %v3060 = vextract.low.u32 %v3059
    %v3061 = vextract.high.u32 %v3059
    %v3062 = vmul.u32 %v3055, %v3046
    %v3063 = vadd.s32 %v3058, %v3060
    %vm3064 = vc.u32 %v3058, %v3060
    %v3065 = vadd.s32 %v3061, 1
    %v3066 = vsel %vm3064, %v3065, %v3061
    %v3067 = vadd.s32 %v3062, %v3066
    %v3068 = vadd.s32 %v3067, 536870912
    %v3069 = vshrl.u32 %v3068, 30
    %v3070 = vshll.u32 %v3069, 30
    %v3071 = vsub.s32 %v3067, %v3070
    %vm3072 = vcmp.lt.s32.totalorder %v3071, 0
    %v3073 = vsub.s32 0, %v3071
    %v3074 = vsel %vm3072, %v3073, %v3071
    %v3075 = vclz %v3074
    %v3076 = vsub.s32 %v3075, 2
    %vm3077 = vcmp.gt.s32.totalorder 0, %v3076
    %v3078 = vsel %vm3077, 0, %v3076
    %v3079 = vsub.s32 32, %v3078
    %v3080 = vshll.u32 %v3071, %v3078
    %v3081 = vshrl.u32 %v3063, %v3079
    %v3082 = vor.u32 %v3080, %v3081
    %v3083 = vsub.s32 4294967266, %v3078
    %v3084 = vadd.s32 %v3083, 127
    %v3085 = vshll.u32 %v3084, 23
    %v3086 = vor.u32 4788187, %v3085
    %v3087 = vand.u32 2147483647, %v3086
    %v3089 = vcvt.s32.f32 %v3082
    %v3090 = vmul.f32 %v3089, %v3087
    %v3091 = vxor.u32 %v3090, 2147483648
    %v3092 = vsel %vm3009, %v3091, %v3090
    %v3093 = vsub.s32 4, %v3069
    %v3094 = vsel %vm3009, %v3093, %v3069
    %v3095 = vsel %vm3008, %v2038, %v3092
    %v3096 = vsel %vm3008, 0, %v3094
    %v3097 = vcosq.f32.pop %v3095
    %v3098 = vsinq.f32.pop %v3095
    %vm3099 = vweird.f32 %v2038
    %v3100 = vadd.s32 %v3096, 3
    %v3101 = vand.u32 %v3100, 3
    %vm3102 = vcmp.lt.s32.totalorder %v3101, 2
    %vm3103 = vcmp.eq.s32.totalorder %v3101, 0
    %v3104 = vxor.u32 %v3098, 2147483648
    %v3105 = vsel %vm3103, %v3097, %v3104
    %vm3106 = vcmp.eq.s32.totalorder %v3101, 2
    %v3107 = vxor.u32 %v3097, 2147483648
    %v3108 = vsel %vm3106, %v3107, %v3098
    %v3109 = vsel %vm3102, %v3105, %v3108
    %v3110 = vsel %vm3099, nan, %v3109
    %v3111 = vand.u32 2147483647, %v2043
    %vm3112 = vcmp.le.f32.partialorder %v3111, 0.7853982
    %vm3113 = vcmp.lt.s32.totalorder %v2043, 0
    %v3114 = vand.u32 %v2043, 2139095040
    %v3115 = vshrl.u32 %v3114, 23
    %v3116 = vsub.s32 %v3115, 127
    %v3117 = vand.u32 2147483647, %v2043
    %v3118 = vand.u32 %v3117, 8388607
    %v3119 = vor.u32 %v3118, 8388608
    %v3120 = vsub.s32 0, %v3119
    %v3121 = vadd.s32 %v3116, 1
    %vm3122 = vcmp.gt.s32.totalorder %v3121, 0
    %v3123 = vsel %vm3122, %v3121, 0
    %v3124 = vshrl.u32 %v3123, 5
    %v3125 = vand.u32 %v3123, 31
    %v3126 = vsub.s32 32, %v3125
    %v3127 = vshrl.u32 683565275, %v3126
    %v3128 = vshll.u32 683565275, %v3125
    %v3129 = vshrl.u32 2475754826, %v3126
    %v3130 = vor.u32 %v3128, %v3129
    %v3131 = vshll.u32 2475754826, %v3125
    %v3132 = vshrl.u32 2131351028, %v3126
    %v3133 = vor.u32 %v3131, %v3132
    %v3134 = vshll.u32 2131351028, %v3125
    %v3135 = vshrl.u32 2102212464, %v3126
    %v3136 = vor.u32 %v3134, %v3135
    %v3137 = vshll.u32 2102212464, %v3125
    %v3138 = vshrl.u32 920167782, %v3126
    %v3139 = vor.u32 %v3137, %v3138
    %v3140 = vshll.u32 920167782, %v3125
    %v3141 = vshrl.u32 1326507024, %v3126
    %v3142 = vor.u32 %v3140, %v3141
    %vm3143 = vcmp.lt.s32.totalorder %v3124, 1
    %vm3144 = vcmp.lt.s32.totalorder %v3124, 2
    %vm3145 = vcmp.lt.s32.totalorder %v3124, 3
    %vm3146 = vcmp.lt.s32.totalorder %v3124, 4
    %v3147 = vsel %vm3143, %v3127, %v3130
    %v3148 = vsel %vm3146, %v3136, 2102212464
    %v3149 = vsel %vm3145, %v3133, %v3148
    %v3150 = vsel %vm3144, %v3147, %v3149
    %v3151 = vsel %vm3143, %v3130, %v3133
    %v3152 = vsel %vm3146, %v3139, 920167782
    %v3153 = vsel %vm3145, %v3136, %v3152
    %v3154 = vsel %vm3144, %v3151, %v3153
    %v3155 = vsel %vm3143, %v3133, %v3136
    %v3156 = vsel %vm3146, %v3142, 1326507024
    %v3157 = vsel %vm3145, %v3139, %v3156
    %v3158 = vsel %vm3144, %v3155, %v3157
    %v3159 = vshll.u32 %v3119, 8
    %v3160 = vmul.u32.u64.compose %v3159, %v3158
    %v3161 = vextract.low.u32 %v3160
    %v3162 = vextract.high.u32 %v3160
    %v3163 = vmul.u32.u64.compose %v3159, %v3154
    %v3164 = vextract.low.u32 %v3163
    %v3165 = vextract.high.u32 %v3163
    %v3166 = vmul.u32 %v3159, %v3150
    %v3167 = vadd.s32 %v3162, %v3164
    %vm3168 = vc.u32 %v3162, %v3164
    %v3169 = vadd.s32 %v3165, 1
    %v3170 = vsel %vm3168, %v3169, %v3165
    %v3171 = vadd.s32 %v3166, %v3170
    %v3172 = vadd.s32 %v3171, 536870912
    %v3173 = vshrl.u32 %v3172, 30
    %v3174 = vshll.u32 %v3173, 30
    %v3175 = vsub.s32 %v3171, %v3174
    %vm3176 = vcmp.lt.s32.totalorder %v3175, 0
    %v3177 = vsub.s32 0, %v3175
    %v3178 = vsel %vm3176, %v3177, %v3175
    %v3179 = vclz %v3178
    %v3180 = vsub.s32 %v3179, 2
    %vm3181 = vcmp.gt.s32.totalorder 0, %v3180
    %v3182 = vsel %vm3181, 0, %v3180
    %v3183 = vsub.s32 32, %v3182
    %v3184 = vshll.u32 %v3175, %v3182
    %v3185 = vshrl.u32 %v3167, %v3183
    %v3186 = vor.u32 %v3184, %v3185
    %v3187 = vsub.s32 4294967266, %v3182
    %v3188 = vadd.s32 %v3187, 127
    %v3189 = vshll.u32 %v3188, 23
    %v3190 = vor.u32 4788187, %v3189
    %v3191 = vand.u32 2147483647, %v3190
    %v3193 = vcvt.s32.f32 %v3186
    %v3194 = vmul.f32 %v3193, %v3191
    %v3195 = vxor.u32 %v3194, 2147483648
    %v3196 = vsel %vm3113, %v3195, %v3194
    %v3197 = vsub.s32 4, %v3173
    %v3198 = vsel %vm3113, %v3197, %v3173
    %v3199 = vsel %vm3112, %v2043, %v3196
    %v3200 = vsel %vm3112, 0, %v3198
    %v3201 = vcosq.f32.pop %v3199
    %v3202 = vsinq.f32.pop %v3199
    %vm3203 = vweird.f32 %v2043
    %v3204 = vadd.s32 %v3200, 3
    %v3205 = vand.u32 %v3204, 3
    %vm3206 = vcmp.lt.s32.totalorder %v3205, 2
    %vm3207 = vcmp.eq.s32.totalorder %v3205, 0
    %v3208 = vxor.u32 %v3202, 2147483648
    %v3209 = vsel %vm3207, %v3201, %v3208
    %vm3210 = vcmp.eq.s32.totalorder %v3205, 2
    %v3211 = vxor.u32 %v3201, 2147483648
    %v3212 = vsel %vm3210, %v3211, %v3202
    %v3213 = vsel %vm3206, %v3209, %v3212
    %v3214 = vsel %vm3203, nan, %v3213
    %v3215 = vand.u32 2147483647, %v2048
    %vm3216 = vcmp.le.f32.partialorder %v3215, 0.7853982
    %vm3217 = vcmp.lt.s32.totalorder %v2048, 0
    %v3218 = vand.u32 %v2048, 2139095040
    %v3219 = vshrl.u32 %v3218, 23
    %v3220 = vsub.s32 %v3219, 127
    %v3221 = vand.u32 2147483647, %v2048
    %v3222 = vand.u32 %v3221, 8388607
    %v3223 = vor.u32 %v3222, 8388608
    %v3224 = vsub.s32 0, %v3223
    %v3225 = vadd.s32 %v3220, 1
    %vm3226 = vcmp.gt.s32.totalorder %v3225, 0
    %v3227 = vsel %vm3226, %v3225, 0
    %v3228 = vshrl.u32 %v3227, 5
    %v3229 = vand.u32 %v3227, 31
    %v3230 = vsub.s32 32, %v3229
    %v3231 = vshrl.u32 683565275, %v3230
    %v3232 = vshll.u32 683565275, %v3229
    %v3233 = vshrl.u32 2475754826, %v3230
    %v3234 = vor.u32 %v3232, %v3233
    %v3235 = vshll.u32 2475754826, %v3229
    %v3236 = vshrl.u32 2131351028, %v3230
    %v3237 = vor.u32 %v3235, %v3236
    %v3238 = vshll.u32 2131351028, %v3229
    %v3239 = vshrl.u32 2102212464, %v3230
    %v3240 = vor.u32 %v3238, %v3239
    %v3241 = vshll.u32 2102212464, %v3229
    %v3242 = vshrl.u32 920167782, %v3230
    %v3243 = vor.u32 %v3241, %v3242
    %v3244 = vshll.u32 920167782, %v3229
    %v3245 = vshrl.u32 1326507024, %v3230
    %v3246 = vor.u32 %v3244, %v3245
    %vm3247 = vcmp.lt.s32.totalorder %v3228, 1
    %vm3248 = vcmp.lt.s32.totalorder %v3228, 2
    %vm3249 = vcmp.lt.s32.totalorder %v3228, 3
    %vm3250 = vcmp.lt.s32.totalorder %v3228, 4
    %v3251 = vsel %vm3247, %v3231, %v3234
    %v3252 = vsel %vm3250, %v3240, 2102212464
    %v3253 = vsel %vm3249, %v3237, %v3252
    %v3254 = vsel %vm3248, %v3251, %v3253
    %v3255 = vsel %vm3247, %v3234, %v3237
    %v3256 = vsel %vm3250, %v3243, 920167782
    %v3257 = vsel %vm3249, %v3240, %v3256
    %v3258 = vsel %vm3248, %v3255, %v3257
    %v3259 = vsel %vm3247, %v3237, %v3240
    %v3260 = vsel %vm3250, %v3246, 1326507024
    %v3261 = vsel %vm3249, %v3243, %v3260
    %v3262 = vsel %vm3248, %v3259, %v3261
    %v3263 = vshll.u32 %v3223, 8
    %v3264 = vmul.u32.u64.compose %v3263, %v3262
    %v3265 = vextract.low.u32 %v3264
    %v3266 = vextract.high.u32 %v3264
    %v3267 = vmul.u32.u64.compose %v3263, %v3258
    %v3268 = vextract.low.u32 %v3267
    %v3269 = vextract.high.u32 %v3267
    %v3270 = vmul.u32 %v3263, %v3254
    %v3271 = vadd.s32 %v3266, %v3268
    %vm3272 = vc.u32 %v3266, %v3268
    %v3273 = vadd.s32 %v3269, 1
    %v3274 = vsel %vm3272, %v3273, %v3269
    %v3275 = vadd.s32 %v3270, %v3274
    %v3276 = vadd.s32 %v3275, 536870912
    %v3277 = vshrl.u32 %v3276, 30
    %v3278 = vshll.u32 %v3277, 30
    %v3279 = vsub.s32 %v3275, %v3278
    %vm3280 = vcmp.lt.s32.totalorder %v3279, 0
    %v3281 = vsub.s32 0, %v3279
    %v3282 = vsel %vm3280, %v3281, %v3279
    %v3283 = vclz %v3282
    %v3284 = vsub.s32 %v3283, 2
    %vm3285 = vcmp.gt.s32.totalorder 0, %v3284
    %v3286 = vsel %vm3285, 0, %v3284
    %v3287 = vsub.s32 32, %v3286
    %v3288 = vshll.u32 %v3279, %v3286
    %v3289 = vshrl.u32 %v3271, %v3287
    %v3290 = vor.u32 %v3288, %v3289
    %v3291 = vsub.s32 4294967266, %v3286
    %v3292 = vadd.s32 %v3291, 127
    %v3293 = vshll.u32 %v3292, 23
    %v3294 = vor.u32 4788187, %v3293
    %v3295 = vand.u32 2147483647, %v3294
    %v3297 = vcvt.s32.f32 %v3290
    %v3298 = vmul.f32 %v3297, %v3295
    %v3299 = vxor.u32 %v3298, 2147483648
    %v3300 = vsel %vm3217, %v3299, %v3298
    %v3301 = vsub.s32 4, %v3277
    %v3302 = vsel %vm3217, %v3301, %v3277
    %v3303 = vsel %vm3216, %v2048, %v3300
    %v3304 = vsel %vm3216, 0, %v3302
    %v3305 = vcosq.f32.pop %v3303
    %v3306 = vsinq.f32.pop %v3303
    %vm3307 = vweird.f32 %v2048
    %v3308 = vadd.s32 %v3304, 3
    %v3309 = vand.u32 %v3308, 3
    %vm3310 = vcmp.lt.s32.totalorder %v3309, 2
    %vm3311 = vcmp.eq.s32.totalorder %v3309, 0
    %v3312 = vxor.u32 %v3306, 2147483648
    %v3313 = vsel %vm3311, %v3305, %v3312
    %vm3314 = vcmp.eq.s32.totalorder %v3309, 2
    %v3315 = vxor.u32 %v3305, 2147483648
    %v3316 = vsel %vm3314, %v3315, %v3306
    %v3317 = vsel %vm3310, %v3313, %v3316
    %v3318 = vsel %vm3307, nan, %v3317
    %v3319 = vand.u32 2147483647, %v2053
    %vm3320 = vcmp.le.f32.partialorder %v3319, 0.7853982
    %vm3321 = vcmp.lt.s32.totalorder %v2053, 0
    %v3322 = vand.u32 %v2053, 2139095040
    %v3323 = vshrl.u32 %v3322, 23
    %v3324 = vsub.s32 %v3323, 127
    %v3325 = vand.u32 2147483647, %v2053
    %v3326 = vand.u32 %v3325, 8388607
    %v3327 = vor.u32 %v3326, 8388608
    %v3328 = vsub.s32 0, %v3327
    %v3329 = vadd.s32 %v3324, 1
    %vm3330 = vcmp.gt.s32.totalorder %v3329, 0
    %v3331 = vsel %vm3330, %v3329, 0
    %v3332 = vshrl.u32 %v3331, 5
    %v3333 = vand.u32 %v3331, 31
    %v3334 = vsub.s32 32, %v3333
    %v3335 = vshrl.u32 683565275, %v3334
    %v3336 = vshll.u32 683565275, %v3333
    %v3337 = vshrl.u32 2475754826, %v3334
    %v3338 = vor.u32 %v3336, %v3337
    %v3339 = vshll.u32 2475754826, %v3333
    %v3340 = vshrl.u32 2131351028, %v3334
    %v3341 = vor.u32 %v3339, %v3340
    %v3342 = vshll.u32 2131351028, %v3333
    %v3343 = vshrl.u32 2102212464, %v3334
    %v3344 = vor.u32 %v3342, %v3343
    %v3345 = vshll.u32 2102212464, %v3333
    %v3346 = vshrl.u32 920167782, %v3334
    %v3347 = vor.u32 %v3345, %v3346
    %v3348 = vshll.u32 920167782, %v3333
    %v3349 = vshrl.u32 1326507024, %v3334
    %v3350 = vor.u32 %v3348, %v3349
    %vm3351 = vcmp.lt.s32.totalorder %v3332, 1
    %vm3352 = vcmp.lt.s32.totalorder %v3332, 2
    %vm3353 = vcmp.lt.s32.totalorder %v3332, 3
    %vm3354 = vcmp.lt.s32.totalorder %v3332, 4
    %v3355 = vsel %vm3351, %v3335, %v3338
    %v3356 = vsel %vm3354, %v3344, 2102212464
    %v3357 = vsel %vm3353, %v3341, %v3356
    %v3358 = vsel %vm3352, %v3355, %v3357
    %v3359 = vsel %vm3351, %v3338, %v3341
    %v3360 = vsel %vm3354, %v3347, 920167782
    %v3361 = vsel %vm3353, %v3344, %v3360
    %v3362 = vsel %vm3352, %v3359, %v3361
    %v3363 = vsel %vm3351, %v3341, %v3344
    %v3364 = vsel %vm3354, %v3350, 1326507024
    %v3365 = vsel %vm3353, %v3347, %v3364
    %v3366 = vsel %vm3352, %v3363, %v3365
    %v3367 = vshll.u32 %v3327, 8
    %v3368 = vmul.u32.u64.compose %v3367, %v3366
    %v3369 = vextract.low.u32 %v3368
    %v3370 = vextract.high.u32 %v3368
    %v3371 = vmul.u32.u64.compose %v3367, %v3362
    %v3372 = vextract.low.u32 %v3371
    %v3373 = vextract.high.u32 %v3371
    %v3374 = vmul.u32 %v3367, %v3358
    %v3375 = vadd.s32 %v3370, %v3372
    %vm3376 = vc.u32 %v3370, %v3372
    %v3377 = vadd.s32 %v3373, 1
    %v3378 = vsel %vm3376, %v3377, %v3373
    %v3379 = vadd.s32 %v3374, %v3378
    %v3380 = vadd.s32 %v3379, 536870912
    %v3381 = vshrl.u32 %v3380, 30
    %v3382 = vshll.u32 %v3381, 30
    %v3383 = vsub.s32 %v3379, %v3382
    %vm3384 = vcmp.lt.s32.totalorder %v3383, 0
    %v3385 = vsub.s32 0, %v3383
    %v3386 = vsel %vm3384, %v3385, %v3383
    %v3387 = vclz %v3386
    %v3388 = vsub.s32 %v3387, 2
    %vm3389 = vcmp.gt.s32.totalorder 0, %v3388
    %v3390 = vsel %vm3389, 0, %v3388
    %v3391 = vsub.s32 32, %v3390
    %v3392 = vshll.u32 %v3383, %v3390
    %v3393 = vshrl.u32 %v3375, %v3391
    %v3394 = vor.u32 %v3392, %v3393
    %v3395 = vsub.s32 4294967266, %v3390
    %v3396 = vadd.s32 %v3395, 127
    %v3397 = vshll.u32 %v3396, 23
    %v3398 = vor.u32 4788187, %v3397
    %v3399 = vand.u32 2147483647, %v3398
    %v3401 = vcvt.s32.f32 %v3394
    %v3402 = vmul.f32 %v3401, %v3399
    %v3403 = vxor.u32 %v3402, 2147483648
    %v3404 = vsel %vm3321, %v3403, %v3402
    %v3405 = vsub.s32 4, %v3381
    %v3406 = vsel %vm3321, %v3405, %v3381
    %v3407 = vsel %vm3320, %v2053, %v3404
    %v3408 = vsel %vm3320, 0, %v3406
    %v3409 = vcosq.f32.pop %v3407
    %v3410 = vsinq.f32.pop %v3407
    %vm3411 = vweird.f32 %v2053
    %v3412 = vadd.s32 %v3408, 3
    %v3413 = vand.u32 %v3412, 3
    %vm3414 = vcmp.lt.s32.totalorder %v3413, 2
    %vm3415 = vcmp.eq.s32.totalorder %v3413, 0
    %v3416 = vxor.u32 %v3410, 2147483648
    %v3417 = vsel %vm3415, %v3409, %v3416
    %vm3418 = vcmp.eq.s32.totalorder %v3413, 2
    %v3419 = vxor.u32 %v3409, 2147483648
    %v3420 = vsel %vm3418, %v3419, %v3410
    %v3421 = vsel %vm3414, %v3417, %v3420
    %v3422 = vsel %vm3411, nan, %v3421
    %v3423 = vand.u32 2147483647, %v2058
    %vm3424 = vcmp.le.f32.partialorder %v3423, 0.7853982
    %vm3425 = vcmp.lt.s32.totalorder %v2058, 0
    %v3426 = vand.u32 %v2058, 2139095040
    %v3427 = vshrl.u32 %v3426, 23
    %v3428 = vsub.s32 %v3427, 127
    %v3429 = vand.u32 2147483647, %v2058
    %v3430 = vand.u32 %v3429, 8388607
    %v3431 = vor.u32 %v3430, 8388608
    %v3432 = vsub.s32 0, %v3431
    %v3433 = vadd.s32 %v3428, 1
    %vm3434 = vcmp.gt.s32.totalorder %v3433, 0
    %v3435 = vsel %vm3434, %v3433, 0
    %v3436 = vshrl.u32 %v3435, 5
    %v3437 = vand.u32 %v3435, 31
    %v3438 = vsub.s32 32, %v3437
    %v3439 = vshrl.u32 683565275, %v3438
    %v3440 = vshll.u32 683565275, %v3437
    %v3441 = vshrl.u32 2475754826, %v3438
    %v3442 = vor.u32 %v3440, %v3441
    %v3443 = vshll.u32 2475754826, %v3437
    %v3444 = vshrl.u32 2131351028, %v3438
    %v3445 = vor.u32 %v3443, %v3444
    %v3446 = vshll.u32 2131351028, %v3437
    %v3447 = vshrl.u32 2102212464, %v3438
    %v3448 = vor.u32 %v3446, %v3447
    %v3449 = vshll.u32 2102212464, %v3437
    %v3450 = vshrl.u32 920167782, %v3438
    %v3451 = vor.u32 %v3449, %v3450
    %v3452 = vshll.u32 920167782, %v3437
    %v3453 = vshrl.u32 1326507024, %v3438
    %v3454 = vor.u32 %v3452, %v3453
    %vm3455 = vcmp.lt.s32.totalorder %v3436, 1
    %vm3456 = vcmp.lt.s32.totalorder %v3436, 2
    %vm3457 = vcmp.lt.s32.totalorder %v3436, 3
    %vm3458 = vcmp.lt.s32.totalorder %v3436, 4
    %v3459 = vsel %vm3455, %v3439, %v3442
    %v3460 = vsel %vm3458, %v3448, 2102212464
    %v3461 = vsel %vm3457, %v3445, %v3460
    %v3462 = vsel %vm3456, %v3459, %v3461
    %v3463 = vsel %vm3455, %v3442, %v3445
    %v3464 = vsel %vm3458, %v3451, 920167782
    %v3465 = vsel %vm3457, %v3448, %v3464
    %v3466 = vsel %vm3456, %v3463, %v3465
    %v3467 = vsel %vm3455, %v3445, %v3448
    %v3468 = vsel %vm3458, %v3454, 1326507024
    %v3469 = vsel %vm3457, %v3451, %v3468
    %v3470 = vsel %vm3456, %v3467, %v3469
    %v3471 = vshll.u32 %v3431, 8
    %v3472 = vmul.u32.u64.compose %v3471, %v3470
    %v3473 = vextract.low.u32 %v3472
    %v3474 = vextract.high.u32 %v3472
    %v3475 = vmul.u32.u64.compose %v3471, %v3466
    %v3476 = vextract.low.u32 %v3475
    %v3477 = vextract.high.u32 %v3475
    %v3478 = vmul.u32 %v3471, %v3462
    %v3479 = vadd.s32 %v3474, %v3476
    %vm3480 = vc.u32 %v3474, %v3476
    %v3481 = vadd.s32 %v3477, 1
    %v3482 = vsel %vm3480, %v3481, %v3477
    %v3483 = vadd.s32 %v3478, %v3482
    %v3484 = vadd.s32 %v3483, 536870912
    %v3485 = vshrl.u32 %v3484, 30
    %v3486 = vshll.u32 %v3485, 30
    %v3487 = vsub.s32 %v3483, %v3486
    %vm3488 = vcmp.lt.s32.totalorder %v3487, 0
    %v3489 = vsub.s32 0, %v3487
    %v3490 = vsel %vm3488, %v3489, %v3487
    %v3491 = vclz %v3490
    %v3492 = vsub.s32 %v3491, 2
    %vm3493 = vcmp.gt.s32.totalorder 0, %v3492
    %v3494 = vsel %vm3493, 0, %v3492
    %v3495 = vsub.s32 32, %v3494
    %v3496 = vshll.u32 %v3487, %v3494
    %v3497 = vshrl.u32 %v3479, %v3495
    %v3498 = vor.u32 %v3496, %v3497
    %v3499 = vsub.s32 4294967266, %v3494
    %v3500 = vadd.s32 %v3499, 127
    %v3501 = vshll.u32 %v3500, 23
    %v3502 = vor.u32 4788187, %v3501
    %v3503 = vand.u32 2147483647, %v3502
    %v3505 = vcvt.s32.f32 %v3498
    %v3506 = vmul.f32 %v3505, %v3503
    %v3507 = vxor.u32 %v3506, 2147483648
    %v3508 = vsel %vm3425, %v3507, %v3506
    %v3509 = vsub.s32 4, %v3485
    %v3510 = vsel %vm3425, %v3509, %v3485
    %v3511 = vsel %vm3424, %v2058, %v3508
    %v3512 = vsel %vm3424, 0, %v3510
    %v3513 = vcosq.f32.pop %v3511
    %v3514 = vsinq.f32.pop %v3511
    %vm3515 = vweird.f32 %v2058
    %v3516 = vadd.s32 %v3512, 3
    %v3517 = vand.u32 %v3516, 3
    %vm3518 = vcmp.lt.s32.totalorder %v3517, 2
    %vm3519 = vcmp.eq.s32.totalorder %v3517, 0
    %v3520 = vxor.u32 %v3514, 2147483648
    %v3521 = vsel %vm3519, %v3513, %v3520
    %vm3522 = vcmp.eq.s32.totalorder %v3517, 2
    %v3523 = vxor.u32 %v3513, 2147483648
    %v3524 = vsel %vm3522, %v3523, %v3514
    %v3525 = vsel %vm3518, %v3521, %v3524
    %v3526 = vsel %vm3515, nan, %v3525
    %v3527 = vand.u32 2147483647, %v2063
    %vm3528 = vcmp.le.f32.partialorder %v3527, 0.7853982
    %vm3529 = vcmp.lt.s32.totalorder %v2063, 0
    %v3530 = vand.u32 %v2063, 2139095040
    %v3531 = vshrl.u32 %v3530, 23
    %v3532 = vsub.s32 %v3531, 127
    %v3533 = vand.u32 2147483647, %v2063
    %v3534 = vand.u32 %v3533, 8388607
    %v3535 = vor.u32 %v3534, 8388608
    %v3536 = vsub.s32 0, %v3535
    %v3537 = vadd.s32 %v3532, 1
    %vm3538 = vcmp.gt.s32.totalorder %v3537, 0
    %v3539 = vsel %vm3538, %v3537, 0
    %v3540 = vshrl.u32 %v3539, 5
    %v3541 = vand.u32 %v3539, 31
    %v3542 = vsub.s32 32, %v3541
    %v3543 = vshrl.u32 683565275, %v3542
    %v3544 = vshll.u32 683565275, %v3541
    %v3545 = vshrl.u32 2475754826, %v3542
    %v3546 = vor.u32 %v3544, %v3545
    %v3547 = vshll.u32 2475754826, %v3541
    %v3548 = vshrl.u32 2131351028, %v3542
    %v3549 = vor.u32 %v3547, %v3548
    %v3550 = vshll.u32 2131351028, %v3541
    %v3551 = vshrl.u32 2102212464, %v3542
    %v3552 = vor.u32 %v3550, %v3551
    %v3553 = vshll.u32 2102212464, %v3541
    %v3554 = vshrl.u32 920167782, %v3542
    %v3555 = vor.u32 %v3553, %v3554
    %v3556 = vshll.u32 920167782, %v3541
    %v3557 = vshrl.u32 1326507024, %v3542
    %v3558 = vor.u32 %v3556, %v3557
    %vm3559 = vcmp.lt.s32.totalorder %v3540, 1
    %vm3560 = vcmp.lt.s32.totalorder %v3540, 2
    %vm3561 = vcmp.lt.s32.totalorder %v3540, 3
    %vm3562 = vcmp.lt.s32.totalorder %v3540, 4
    %v3563 = vsel %vm3559, %v3543, %v3546
    %v3564 = vsel %vm3562, %v3552, 2102212464
    %v3565 = vsel %vm3561, %v3549, %v3564
    %v3566 = vsel %vm3560, %v3563, %v3565
    %v3567 = vsel %vm3559, %v3546, %v3549
    %v3568 = vsel %vm3562, %v3555, 920167782
    %v3569 = vsel %vm3561, %v3552, %v3568
    %v3570 = vsel %vm3560, %v3567, %v3569
    %v3571 = vsel %vm3559, %v3549, %v3552
    %v3572 = vsel %vm3562, %v3558, 1326507024
    %v3573 = vsel %vm3561, %v3555, %v3572
    %v3574 = vsel %vm3560, %v3571, %v3573
    %v3575 = vshll.u32 %v3535, 8
    %v3576 = vmul.u32.u64.compose %v3575, %v3574
    %v3577 = vextract.low.u32 %v3576
    %v3578 = vextract.high.u32 %v3576
    %v3579 = vmul.u32.u64.compose %v3575, %v3570
    %v3580 = vextract.low.u32 %v3579
    %v3581 = vextract.high.u32 %v3579
    %v3582 = vmul.u32 %v3575, %v3566
    %v3583 = vadd.s32 %v3578, %v3580
    %vm3584 = vc.u32 %v3578, %v3580
    %v3585 = vadd.s32 %v3581, 1
    %v3586 = vsel %vm3584, %v3585, %v3581
    %v3587 = vadd.s32 %v3582, %v3586
    %v3588 = vadd.s32 %v3587, 536870912
    %v3589 = vshrl.u32 %v3588, 30
    %v3590 = vshll.u32 %v3589, 30
    %v3591 = vsub.s32 %v3587, %v3590
    %vm3592 = vcmp.lt.s32.totalorder %v3591, 0
    %v3593 = vsub.s32 0, %v3591
    %v3594 = vsel %vm3592, %v3593, %v3591
    %v3595 = vclz %v3594
    %v3596 = vsub.s32 %v3595, 2
    %vm3597 = vcmp.gt.s32.totalorder 0, %v3596
    %v3598 = vsel %vm3597, 0, %v3596
    %v3599 = vsub.s32 32, %v3598
    %v3600 = vshll.u32 %v3591, %v3598
    %v3601 = vshrl.u32 %v3583, %v3599
    %v3602 = vor.u32 %v3600, %v3601
    %v3603 = vsub.s32 4294967266, %v3598
    %v3604 = vadd.s32 %v3603, 127
    %v3605 = vshll.u32 %v3604, 23
    %v3606 = vor.u32 4788187, %v3605
    %v3607 = vand.u32 2147483647, %v3606
    %v3609 = vcvt.s32.f32 %v3602
    %v3610 = vmul.f32 %v3609, %v3607
    %v3611 = vxor.u32 %v3610, 2147483648
    %v3612 = vsel %vm3529, %v3611, %v3610
    %v3613 = vsub.s32 4, %v3589
    %v3614 = vsel %vm3529, %v3613, %v3589
    %v3615 = vsel %vm3528, %v2063, %v3612
    %v3616 = vsel %vm3528, 0, %v3614
    %v3617 = vcosq.f32.pop %v3615
    %v3618 = vsinq.f32.pop %v3615
    %vm3619 = vweird.f32 %v2063
    %v3620 = vadd.s32 %v3616, 3
    %v3621 = vand.u32 %v3620, 3
    %vm3622 = vcmp.lt.s32.totalorder %v3621, 2
    %vm3623 = vcmp.eq.s32.totalorder %v3621, 0
    %v3624 = vxor.u32 %v3618, 2147483648
    %v3625 = vsel %vm3623, %v3617, %v3624
    %vm3626 = vcmp.eq.s32.totalorder %v3621, 2
    %v3627 = vxor.u32 %v3617, 2147483648
    %v3628 = vsel %vm3626, %v3627, %v3618
    %v3629 = vsel %vm3622, %v3625, %v3628
    %v3630 = vsel %vm3619, nan, %v3629
    %v3631 = vand.u32 2147483647, %v2068
    %vm3632 = vcmp.le.f32.partialorder %v3631, 0.7853982
    %vm3633 = vcmp.lt.s32.totalorder %v2068, 0
    %v3634 = vand.u32 %v2068, 2139095040
    %v3635 = vshrl.u32 %v3634, 23
    %v3636 = vsub.s32 %v3635, 127
    %v3637 = vand.u32 2147483647, %v2068
    %v3638 = vand.u32 %v3637, 8388607
    %v3639 = vor.u32 %v3638, 8388608
    %v3640 = vsub.s32 0, %v3639
    %v3641 = vadd.s32 %v3636, 1
    %vm3642 = vcmp.gt.s32.totalorder %v3641, 0
    %v3643 = vsel %vm3642, %v3641, 0
    %v3644 = vshrl.u32 %v3643, 5
    %v3645 = vand.u32 %v3643, 31
    %v3646 = vsub.s32 32, %v3645
    %v3647 = vshrl.u32 683565275, %v3646
    %v3648 = vshll.u32 683565275, %v3645
    %v3649 = vshrl.u32 2475754826, %v3646
    %v3650 = vor.u32 %v3648, %v3649
    %v3651 = vshll.u32 2475754826, %v3645
    %v3652 = vshrl.u32 2131351028, %v3646
    %v3653 = vor.u32 %v3651, %v3652
    %v3654 = vshll.u32 2131351028, %v3645
    %v3655 = vshrl.u32 2102212464, %v3646
    %v3656 = vor.u32 %v3654, %v3655
    %v3657 = vshll.u32 2102212464, %v3645
    %v3658 = vshrl.u32 920167782, %v3646
    %v3659 = vor.u32 %v3657, %v3658
    %v3660 = vshll.u32 920167782, %v3645
    %v3661 = vshrl.u32 1326507024, %v3646
    %v3662 = vor.u32 %v3660, %v3661
    %vm3663 = vcmp.lt.s32.totalorder %v3644, 1
    %vm3664 = vcmp.lt.s32.totalorder %v3644, 2
    %vm3665 = vcmp.lt.s32.totalorder %v3644, 3
    %vm3666 = vcmp.lt.s32.totalorder %v3644, 4
    %v3667 = vsel %vm3663, %v3647, %v3650
    %v3668 = vsel %vm3666, %v3656, 2102212464
    %v3669 = vsel %vm3665, %v3653, %v3668
    %v3670 = vsel %vm3664, %v3667, %v3669
    %v3671 = vsel %vm3663, %v3650, %v3653
    %v3672 = vsel %vm3666, %v3659, 920167782
    %v3673 = vsel %vm3665, %v3656, %v3672
    %v3674 = vsel %vm3664, %v3671, %v3673
    %v3675 = vsel %vm3663, %v3653, %v3656
    %v3676 = vsel %vm3666, %v3662, 1326507024
    %v3677 = vsel %vm3665, %v3659, %v3676
    %v3678 = vsel %vm3664, %v3675, %v3677
    %v3679 = vshll.u32 %v3639, 8
    %v3680 = vmul.u32.u64.compose %v3679, %v3678
    %v3681 = vextract.low.u32 %v3680
    %v3682 = vextract.high.u32 %v3680
    %v3683 = vmul.u32.u64.compose %v3679, %v3674
    %v3684 = vextract.low.u32 %v3683
    %v3685 = vextract.high.u32 %v3683
    %v3686 = vmul.u32 %v3679, %v3670
    %v3687 = vadd.s32 %v3682, %v3684
    %vm3688 = vc.u32 %v3682, %v3684
    %v3689 = vadd.s32 %v3685, 1
    %v3690 = vsel %vm3688, %v3689, %v3685
    %v3691 = vadd.s32 %v3686, %v3690
    %v3692 = vadd.s32 %v3691, 536870912
    %v3693 = vshrl.u32 %v3692, 30
    %v3694 = vshll.u32 %v3693, 30
    %v3695 = vsub.s32 %v3691, %v3694
    %vm3696 = vcmp.lt.s32.totalorder %v3695, 0
    %v3697 = vsub.s32 0, %v3695
    %v3698 = vsel %vm3696, %v3697, %v3695
    %v3699 = vclz %v3698
    %v3700 = vsub.s32 %v3699, 2
    %vm3701 = vcmp.gt.s32.totalorder 0, %v3700
    %v3702 = vsel %vm3701, 0, %v3700
    %v3703 = vsub.s32 32, %v3702
    %v3704 = vshll.u32 %v3695, %v3702
    %v3705 = vshrl.u32 %v3687, %v3703
    %v3706 = vor.u32 %v3704, %v3705
    %v3707 = vsub.s32 4294967266, %v3702
    %v3708 = vadd.s32 %v3707, 127
    %v3709 = vshll.u32 %v3708, 23
    %v3710 = vor.u32 4788187, %v3709
    %v3711 = vand.u32 2147483647, %v3710
    %v3713 = vcvt.s32.f32 %v3706
    %v3714 = vmul.f32 %v3713, %v3711
    %v3715 = vxor.u32 %v3714, 2147483648
    %v3716 = vsel %vm3633, %v3715, %v3714
    %v3717 = vsub.s32 4, %v3693
    %v3718 = vsel %vm3633, %v3717, %v3693
    %v3719 = vsel %vm3632, %v2068, %v3716
    %v3720 = vsel %vm3632, 0, %v3718
    %v3721 = vcosq.f32.pop %v3719
    %v3722 = vsinq.f32.pop %v3719
    %vm3723 = vweird.f32 %v2068
    %v3724 = vadd.s32 %v3720, 3
    %v3725 = vand.u32 %v3724, 3
    %vm3726 = vcmp.lt.s32.totalorder %v3725, 2
    %vm3727 = vcmp.eq.s32.totalorder %v3725, 0
    %v3728 = vxor.u32 %v3722, 2147483648
    %v3729 = vsel %vm3727, %v3721, %v3728
    %vm3730 = vcmp.eq.s32.totalorder %v3725, 2
    %v3731 = vxor.u32 %v3721, 2147483648
    %v3732 = vsel %vm3730, %v3731, %v3722
    %v3733 = vsel %vm3726, %v3729, %v3732
    %v3734 = vsel %vm3723, nan, %v3733
    %v3735 = vld [vmem:[#allocation2 + $0x88] sm:$0xff]
    %v3736 = vld [vmem:[#allocation2 + $0x90] sm:$0xff]
    %v3737 = vld [vmem:[#allocation2 + $0x98] sm:$0xff]
    %v3738 = vld [vmem:[#allocation2 + $0xa0] sm:$0xff]
    %v3739 = vld [vmem:[#allocation2 + $0xa8] sm:$0xff]
    %v3740 = vld [vmem:[#allocation2 + $0xb0] sm:$0xff]
    %v3741 = vld [vmem:[#allocation2 + $0xb8] sm:$0xff]
    %v3742 = vld [vmem:[#allocation2 + $0xc0] sm:$0xff]
    %v3743 = vld [vmem:[#allocation2 + $0xc8] sm:$0xff]
    %v3744 = vld [vmem:[#allocation2 + $0xd0] sm:$0xff]
    %v3745 = vld [vmem:[#allocation2 + $0xd8] sm:$0xff]
    %v3746 = vld [vmem:[#allocation2 + $0xe0] sm:$0xff]
    %v3747 = vld [vmem:[#allocation2 + $0xe8] sm:$0xff]
    %v3748 = vld [vmem:[#allocation2 + $0xf0] sm:$0xff]
    %v3749 = vld [vmem:[#allocation2 + $0xf8] sm:$0xff]
    %v3750 = vld [vmem:[#allocation2 + $0x100] sm:$0xff]
    %v3751 = vld [vmem:[#allocation2 + $0x18a] sm:$0x1]
    %v3752 = vlaneseq
    %v3753 = vshrl.u32 %v3752, 7
    %v3754 = vsub.s32 0, %v3753
    %v3755 = vrot.slane %v3751, %v3754
    %3756 = vmatprep.subr.mxu0 0.0
    %3757 = vmatpush1.msra.mxu0 %v3735
    %3758 = vmatprep.subr.mxu0 0.0
    %3759 = vmatpush1.msra.mxu0 %v3736
    %3760 = vmatprep.subr.mxu0 0.0
    %3761 = vmatpush1.msra.mxu0 %v3737
    %3762 = vmatprep.subr.mxu0 0.0
    %3763 = vmatpush1.msra.mxu0 %v3738
    %3764 = vmatprep.subr.mxu0 0.0
    %3765 = vmatpush1.msra.mxu0 %v3739
    %3766 = vmatprep.subr.mxu0 0.0
    %3767 = vmatpush1.msra.mxu0 %v3740
    %3768 = vmatprep.subr.mxu0 0.0
    %3769 = vmatpush1.msra.mxu0 %v3741
    %3770 = vmatprep.subr.mxu0 0.0
    %3771 = vmatpush1.msra.mxu0 %v3742
    %3772 = vmatprep.subr.mxu0 0.0
    %3773 = vmatpush1.msra.mxu0 %v3743
    %3774 = vmatprep.subr.mxu0 0.0
    %3775 = vmatpush1.msra.mxu0 %v3744
    %3776 = vmatprep.subr.mxu0 0.0
    %3777 = vmatpush1.msra.mxu0 %v3745
    %3778 = vmatprep.subr.mxu0 0.0
    %3779 = vmatpush1.msra.mxu0 %v3746
    %3780 = vmatprep.subr.mxu0 0.0
    %3781 = vmatpush1.msra.mxu0 %v3747
    %3782 = vmatprep.subr.mxu0 0.0
    %3783 = vmatpush1.msra.mxu0 %v3748
    %3784 = vmatprep.subr.mxu0 0.0
    %3785 = vmatpush1.msra.mxu0 %v3749
    %3786 = vmatprep.subr.mxu0 0.0
    %3787 = vmatpush1.msra.mxu0 %v3750
    %3788 = vmatprep.subr.mxu0 0.0
    %3789 = vmatpush1.msra.mxu0 0.0
    %3790 = vmatprep.subr.mxu0 0.0
    %3791 = vmatpush1.msra.mxu0 0.0
    %3792 = vmatprep.subr.mxu0 0.0
    %3793 = vmatpush1.msra.mxu0 0.0
    %3794 = vmatprep.subr.mxu0 0.0
    %3795 = vmatpush1.msra.mxu0 0.0
    %3796 = vmatprep.subr.mxu0 0.0
    %3797 = vmatpush1.msra.mxu0 0.0
    %3798 = vmatprep.subr.mxu0 0.0
    %3799 = vmatpush1.msra.mxu0 0.0
    %3800 = vmatprep.subr.mxu0 0.0
    %3801 = vmatpush1.msra.mxu0 0.0
    %3802 = vmatprep.subr.mxu0 0.0
    %3803 = vmatpush1.msra.mxu0 0.0
    %3804 = vmatprep.subr.mxu0 0.0
    %3805 = vmatpush1.msra.mxu0 0.0
    %3806 = vmatprep.subr.mxu0 0.0
    %3807 = vmatpush1.msra.mxu0 0.0
    %3808 = vmatprep.subr.mxu0 0.0
    %3809 = vmatpush1.msra.mxu0 0.0
    %3810 = vmatprep.subr.mxu0 0.0
    %3811 = vmatpush1.msra.mxu0 0.0
    %3812 = vmatprep.subr.mxu0 0.0
    %3813 = vmatpush1.msra.mxu0 0.0
    %3814 = vmatprep.subr.mxu0 0.0
    %3815 = vmatpush1.msra.mxu0 0.0
    %3816 = vmatprep.subr.mxu0 0.0
    %3817 = vmatpush1.msra.mxu0 0.0
    %3818 = vmatprep.subr.mxu0 0.0
    %3819 = vmatpush1.msra.mxu0 0.0
    %3820 = vmatprep.mubr.f32.mxu0 0.0
    %3821 = vmatmul.mubr.f32.gmra.mrb[0].mxu0 %v2174
    %v3822 = vpop.f32.mrb[0].mxu0
    %v3823 = vadd.f32 %v3755, %v3822
    %v3824 = vpop.f32.mrb[0].mxu0
    %3825 = vmatprep.mubr.f32.mxu0 0.0
    %3826 = vmatmul.mubr.f32.gmra.mrb[0].mxu0 %v2278
    %v3827 = vpop.f32.mrb[0].mxu0
    %v3828 = vadd.f32 %v3755, %v3827
    %v3829 = vpop.f32.mrb[0].mxu0
    %3830 = vmatprep.mubr.f32.mxu0 0.0
    %3831 = vmatmul.mubr.f32.gmra.mrb[0].mxu0 %v2382
    %v3832 = vpop.f32.mrb[0].mxu0
    %v3833 = vadd.f32 %v3755, %v3832
    %v3834 = vpop.f32.mrb[0].mxu0
    %3835 = vmatprep.mubr.f32.mxu0 0.0
    %3836 = vmatmul.mubr.f32.gmra.mrb[0].mxu0 %v2486
    %v3837 = vpop.f32.mrb[0].mxu0
    %v3838 = vadd.f32 %v3755, %v3837
    %v3839 = vpop.f32.mrb[0].mxu0
    %3840 = vmatprep.mubr.f32.mxu0 0.0
    %3841 = vmatmul.mubr.f32.gmra.mrb[0].mxu0 %v2590
    %v3842 = vpop.f32.mrb[0].mxu0
    %v3843 = vadd.f32 %v3755, %v3842
    %v3844 = vpop.f32.mrb[0].mxu0
    %3845 = vmatprep.mubr.f32.mxu0 0.0
    %3846 = vmatmul.mubr.f32.gmra.mrb[0].mxu0 %v2694
    %v3847 = vpop.f32.mrb[0].mxu0
    %v3848 = vadd.f32 %v3755, %v3847
    %v3849 = vpop.f32.mrb[0].mxu0
    %3850 = vmatprep.mubr.f32.mxu0 0.0
    %3851 = vmatmul.mubr.f32.gmra.mrb[0].mxu0 %v2798
    %v3852 = vpop.f32.mrb[0].mxu0
    %v3853 = vadd.f32 %v3755, %v3852
    %v3854 = vpop.f32.mrb[0].mxu0
    %3855 = vmatprep.mubr.f32.mxu0 0.0
    %3856 = vmatmul.mubr.f32.gmra.mrb[0].mxu0 %v2902
    %v3857 = vpop.f32.mrb[0].mxu0
    %v3858 = vadd.f32 %v3755, %v3857
    %v3859 = vpop.f32.mrb[0].mxu0
    %3860 = vmatprep.mubr.f32.mxu0 0.0
    %3861 = vmatmul.mubr.f32.gmra.mrb[0].mxu0 %v3006
    %v3862 = vpop.f32.mrb[0].mxu0
    %v3863 = vadd.f32 %v3755, %v3862
    %v3864 = vpop.f32.mrb[0].mxu0
    %3865 = vmatprep.mubr.f32.mxu0 0.0
    %3866 = vmatmul.mubr.f32.gmra.mrb[0].mxu0 %v3110
    %v3867 = vpop.f32.mrb[0].mxu0
    %v3868 = vadd.f32 %v3755, %v3867
    %v3869 = vpop.f32.mrb[0].mxu0
    %3870 = vmatprep.mubr.f32.mxu0 0.0
    %3871 = vmatmul.mubr.f32.gmra.mrb[0].mxu0 %v3214
    %v3872 = vpop.f32.mrb[0].mxu0
    %v3873 = vadd.f32 %v3755, %v3872
    %v3874 = vpop.f32.mrb[0].mxu0
    %3875 = vmatprep.mubr.f32.mxu0 0.0
    %3876 = vmatmul.mubr.f32.gmra.mrb[0].mxu0 %v3318
    %v3877 = vpop.f32.mrb[0].mxu0
    %v3878 = vadd.f32 %v3755, %v3877
    %v3879 = vpop.f32.mrb[0].mxu0
    %3880 = vmatprep.mubr.f32.mxu0 0.0
    %3881 = vmatmul.mubr.f32.gmra.mrb[0].mxu0 %v3422
    %v3882 = vpop.f32.mrb[0].mxu0
    %v3883 = vadd.f32 %v3755, %v3882
    %v3884 = vpop.f32.mrb[0].mxu0
    %3885 = vmatprep.mubr.f32.mxu0 0.0
    %3886 = vmatmul.mubr.f32.gmra.mrb[0].mxu0 %v3526
    %v3887 = vpop.f32.mrb[0].mxu0
    %v3888 = vadd.f32 %v3755, %v3887
    %v3889 = vpop.f32.mrb[0].mxu0
    %3890 = vmatprep.mubr.f32.mxu0 0.0
    %3891 = vmatmul.mubr.f32.gmra.mrb[0].mxu0 %v3630
    %v3892 = vpop.f32.mrb[0].mxu0
    %v3893 = vadd.f32 %v3755, %v3892
    %v3894 = vpop.f32.mrb[0].mxu0
    %3895 = vmatprep.mubr.f32.mxu0 0.0
    %3896 = vmatmul.mubr.f32.gmra.mrb[0].mxu0 %v3734
    %v3897 = vpop.f32.mrb[0].mxu0
    %v3898 = vadd.f32 %v3755, %v3897
    %v3899 = vpop.f32.mrb[0].mxu0
    %3900 = vdwg.mxu0
    %v3901 = vand.u32 2147483647, %v3823
    %vm3902 = vcmp.le.f32.partialorder %v3901, 0.7853982
    %vm3903 = vcmp.lt.s32.totalorder %v3823, 0
    %v3904 = vand.u32 %v3823, 2139095040
    %v3905 = vshrl.u32 %v3904, 23
    %v3906 = vsub.s32 %v3905, 127
    %v3907 = vand.u32 2147483647, %v3823
    %v3908 = vand.u32 %v3907, 8388607
    %v3909 = vor.u32 %v3908, 8388608
    %v3910 = vsub.s32 0, %v3909
    %v3911 = vadd.s32 %v3906, 1
    %vm3912 = vcmp.gt.s32.totalorder %v3911, 0
    %v3913 = vsel %vm3912, %v3911, 0
    %v3914 = vshrl.u32 %v3913, 5
    %v3915 = vand.u32 %v3913, 31
    %v3916 = vsub.s32 32, %v3915
    %v3917 = vshrl.u32 683565275, %v3916
    %v3918 = vshll.u32 683565275, %v3915
    %v3919 = vshrl.u32 2475754826, %v3916
    %v3920 = vor.u32 %v3918, %v3919
    %v3921 = vshll.u32 2475754826, %v3915
    %v3922 = vshrl.u32 2131351028, %v3916
    %v3923 = vor.u32 %v3921, %v3922
    %v3924 = vshll.u32 2131351028, %v3915
    %v3925 = vshrl.u32 2102212464, %v3916
    %v3926 = vor.u32 %v3924, %v3925
    %v3927 = vshll.u32 2102212464, %v3915
    %v3928 = vshrl.u32 920167782, %v3916
    %v3929 = vor.u32 %v3927, %v3928
    %v3930 = vshll.u32 920167782, %v3915
    %v3931 = vshrl.u32 1326507024, %v3916
    %v3932 = vor.u32 %v3930, %v3931
    %vm3933 = vcmp.lt.s32.totalorder %v3914, 1
    %vm3934 = vcmp.lt.s32.totalorder %v3914, 2
    %vm3935 = vcmp.lt.s32.totalorder %v3914, 3
    %vm3936 = vcmp.lt.s32.totalorder %v3914, 4
    %v3937 = vsel %vm3933, %v3917, %v3920
    %v3938 = vsel %vm3936, %v3926, 2102212464
    %v3939 = vsel %vm3935, %v3923, %v3938
    %v3940 = vsel %vm3934, %v3937, %v3939
    %v3941 = vsel %vm3933, %v3920, %v3923
    %v3942 = vsel %vm3936, %v3929, 920167782
    %v3943 = vsel %vm3935, %v3926, %v3942
    %v3944 = vsel %vm3934, %v3941, %v3943
    %v3945 = vsel %vm3933, %v3923, %v3926
    %v3946 = vsel %vm3936, %v3932, 1326507024
    %v3947 = vsel %vm3935, %v3929, %v3946
    %v3948 = vsel %vm3934, %v3945, %v3947
    %v3949 = vshll.u32 %v3909, 8
    %v3950 = vmul.u32.u64.compose %v3949, %v3948
    %v3951 = vextract.low.u32 %v3950
    %v3952 = vextract.high.u32 %v3950
    %v3953 = vmul.u32.u64.compose %v3949, %v3944
    %v3954 = vextract.low.u32 %v3953
    %v3955 = vextract.high.u32 %v3953
    %v3956 = vmul.u32 %v3949, %v3940
    %v3957 = vadd.s32 %v3952, %v3954
    %vm3958 = vc.u32 %v3952, %v3954
    %v3959 = vadd.s32 %v3955, 1
    %v3960 = vsel %vm3958, %v3959, %v3955
    %v3961 = vadd.s32 %v3956, %v3960
    %v3962 = vadd.s32 %v3961, 536870912
    %v3963 = vshrl.u32 %v3962, 30
    %v3964 = vshll.u32 %v3963, 30
    %v3965 = vsub.s32 %v3961, %v3964
    %vm3966 = vcmp.lt.s32.totalorder %v3965, 0
    %v3967 = vsub.s32 0, %v3965
    %v3968 = vsel %vm3966, %v3967, %v3965
    %v3969 = vclz %v3968
    %v3970 = vsub.s32 %v3969, 2
    %vm3971 = vcmp.gt.s32.totalorder 0, %v3970
    %v3972 = vsel %vm3971, 0, %v3970
    %v3973 = vsub.s32 32, %v3972
    %v3974 = vshll.u32 %v3965, %v3972
    %v3975 = vshrl.u32 %v3957, %v3973
    %v3976 = vor.u32 %v3974, %v3975
    %v3977 = vsub.s32 4294967266, %v3972
    %v3978 = vadd.s32 %v3977, 127
    %v3979 = vshll.u32 %v3978, 23
    %v3980 = vor.u32 4788187, %v3979
    %v3981 = vand.u32 2147483647, %v3980
    %v3983 = vcvt.s32.f32 %v3976
    %v3984 = vmul.f32 %v3983, %v3981
    %v3985 = vxor.u32 %v3984, 2147483648
    %v3986 = vsel %vm3903, %v3985, %v3984
    %v3987 = vsub.s32 4, %v3963
    %v3988 = vsel %vm3903, %v3987, %v3963
    %v3989 = vsel %vm3902, %v3823, %v3986
    %v3990 = vsel %vm3902, 0, %v3988
    %v3991 = vcosq.f32.pop %v3989
    %v3992 = vsinq.f32.pop %v3989
    %vm3993 = vweird.f32 %v3823
    %v3994 = vadd.s32 %v3990, 3
    %v3995 = vand.u32 %v3994, 3
    %vm3996 = vcmp.lt.s32.totalorder %v3995, 2
    %vm3997 = vcmp.eq.s32.totalorder %v3995, 0
    %v3998 = vxor.u32 %v3992, 2147483648
    %v3999 = vsel %vm3997, %v3991, %v3998
    %vm4000 = vcmp.eq.s32.totalorder %v3995, 2
    %v4001 = vxor.u32 %v3991, 2147483648
    %v4002 = vsel %vm4000, %v4001, %v3992
    %v4003 = vsel %vm3996, %v3999, %v4002
    %v4004 = vsel %vm3993, nan, %v4003
    %v4005 = vand.u32 2147483647, %v3828
    %vm4006 = vcmp.le.f32.partialorder %v4005, 0.7853982
    %vm4007 = vcmp.lt.s32.totalorder %v3828, 0
    %v4008 = vand.u32 %v3828, 2139095040
    %v4009 = vshrl.u32 %v4008, 23
    %v4010 = vsub.s32 %v4009, 127
    %v4011 = vand.u32 2147483647, %v3828
    %v4012 = vand.u32 %v4011, 8388607
    %v4013 = vor.u32 %v4012, 8388608
    %v4014 = vsub.s32 0, %v4013
    %v4015 = vadd.s32 %v4010, 1
    %vm4016 = vcmp.gt.s32.totalorder %v4015, 0
    %v4017 = vsel %vm4016, %v4015, 0
    %v4018 = vshrl.u32 %v4017, 5
    %v4019 = vand.u32 %v4017, 31
    %v4020 = vsub.s32 32, %v4019
    %v4021 = vshrl.u32 683565275, %v4020
    %v4022 = vshll.u32 683565275, %v4019
    %v4023 = vshrl.u32 2475754826, %v4020
    %v4024 = vor.u32 %v4022, %v4023
    %v4025 = vshll.u32 2475754826, %v4019
    %v4026 = vshrl.u32 2131351028, %v4020
    %v4027 = vor.u32 %v4025, %v4026
    %v4028 = vshll.u32 2131351028, %v4019
    %v4029 = vshrl.u32 2102212464, %v4020
    %v4030 = vor.u32 %v4028, %v4029
    %v4031 = vshll.u32 2102212464, %v4019
    %v4032 = vshrl.u32 920167782, %v4020
    %v4033 = vor.u32 %v4031, %v4032
    %v4034 = vshll.u32 920167782, %v4019
    %v4035 = vshrl.u32 1326507024, %v4020
    %v4036 = vor.u32 %v4034, %v4035
    %vm4037 = vcmp.lt.s32.totalorder %v4018, 1
    %vm4038 = vcmp.lt.s32.totalorder %v4018, 2
    %vm4039 = vcmp.lt.s32.totalorder %v4018, 3
    %vm4040 = vcmp.lt.s32.totalorder %v4018, 4
    %v4041 = vsel %vm4037, %v4021, %v4024
    %v4042 = vsel %vm4040, %v4030, 2102212464
    %v4043 = vsel %vm4039, %v4027, %v4042
    %v4044 = vsel %vm4038, %v4041, %v4043
    %v4045 = vsel %vm4037, %v4024, %v4027
    %v4046 = vsel %vm4040, %v4033, 920167782
    %v4047 = vsel %vm4039, %v4030, %v4046
    %v4048 = vsel %vm4038, %v4045, %v4047
    %v4049 = vsel %vm4037, %v4027, %v4030
    %v4050 = vsel %vm4040, %v4036, 1326507024
    %v4051 = vsel %vm4039, %v4033, %v4050
    %v4052 = vsel %vm4038, %v4049, %v4051
    %v4053 = vshll.u32 %v4013, 8
    %v4054 = vmul.u32.u64.compose %v4053, %v4052
    %v4055 = vextract.low.u32 %v4054
    %v4056 = vextract.high.u32 %v4054
    %v4057 = vmul.u32.u64.compose %v4053, %v4048
    %v4058 = vextract.low.u32 %v4057
    %v4059 = vextract.high.u32 %v4057
    %v4060 = vmul.u32 %v4053, %v4044
    %v4061 = vadd.s32 %v4056, %v4058
    %vm4062 = vc.u32 %v4056, %v4058
    %v4063 = vadd.s32 %v4059, 1
    %v4064 = vsel %vm4062, %v4063, %v4059
    %v4065 = vadd.s32 %v4060, %v4064
    %v4066 = vadd.s32 %v4065, 536870912
    %v4067 = vshrl.u32 %v4066, 30
    %v4068 = vshll.u32 %v4067, 30
    %v4069 = vsub.s32 %v4065, %v4068
    %vm4070 = vcmp.lt.s32.totalorder %v4069, 0
    %v4071 = vsub.s32 0, %v4069
    %v4072 = vsel %vm4070, %v4071, %v4069
    %v4073 = vclz %v4072
    %v4074 = vsub.s32 %v4073, 2
    %vm4075 = vcmp.gt.s32.totalorder 0, %v4074
    %v4076 = vsel %vm4075, 0, %v4074
    %v4077 = vsub.s32 32, %v4076
    %v4078 = vshll.u32 %v4069, %v4076
    %v4079 = vshrl.u32 %v4061, %v4077
    %v4080 = vor.u32 %v4078, %v4079
    %v4081 = vsub.s32 4294967266, %v4076
    %v4082 = vadd.s32 %v4081, 127
    %v4083 = vshll.u32 %v4082, 23
    %v4084 = vor.u32 4788187, %v4083
    %v4085 = vand.u32 2147483647, %v4084
    %v4087 = vcvt.s32.f32 %v4080
    %v4088 = vmul.f32 %v4087, %v4085
    %v4089 = vxor.u32 %v4088, 2147483648
    %v4090 = vsel %vm4007, %v4089, %v4088
    %v4091 = vsub.s32 4, %v4067
    %v4092 = vsel %vm4007, %v4091, %v4067
    %v4093 = vsel %vm4006, %v3828, %v4090
    %v4094 = vsel %vm4006, 0, %v4092
    %v4095 = vcosq.f32.pop %v4093
    %v4096 = vsinq.f32.pop %v4093
    %vm4097 = vweird.f32 %v3828
    %v4098 = vadd.s32 %v4094, 3
    %v4099 = vand.u32 %v4098, 3
    %vm4100 = vcmp.lt.s32.totalorder %v4099, 2
    %vm4101 = vcmp.eq.s32.totalorder %v4099, 0
    %v4102 = vxor.u32 %v4096, 2147483648
    %v4103 = vsel %vm4101, %v4095, %v4102
    %vm4104 = vcmp.eq.s32.totalorder %v4099, 2
    %v4105 = vxor.u32 %v4095, 2147483648
    %v4106 = vsel %vm4104, %v4105, %v4096
    %v4107 = vsel %vm4100, %v4103, %v4106
    %v4108 = vsel %vm4097, nan, %v4107
    %v4109 = vand.u32 2147483647, %v3833
    %vm4110 = vcmp.le.f32.partialorder %v4109, 0.7853982
    %vm4111 = vcmp.lt.s32.totalorder %v3833, 0
    %v4112 = vand.u32 %v3833, 2139095040
    %v4113 = vshrl.u32 %v4112, 23
    %v4114 = vsub.s32 %v4113, 127
    %v4115 = vand.u32 2147483647, %v3833
    %v4116 = vand.u32 %v4115, 8388607
    %v4117 = vor.u32 %v4116, 8388608
    %v4118 = vsub.s32 0, %v4117
    %v4119 = vadd.s32 %v4114, 1
    %vm4120 = vcmp.gt.s32.totalorder %v4119, 0
    %v4121 = vsel %vm4120, %v4119, 0
    %v4122 = vshrl.u32 %v4121, 5
    %v4123 = vand.u32 %v4121, 31
    %v4124 = vsub.s32 32, %v4123
    %v4125 = vshrl.u32 683565275, %v4124
    %v4126 = vshll.u32 683565275, %v4123
    %v4127 = vshrl.u32 2475754826, %v4124
    %v4128 = vor.u32 %v4126, %v4127
    %v4129 = vshll.u32 2475754826, %v4123
    %v4130 = vshrl.u32 2131351028, %v4124
    %v4131 = vor.u32 %v4129, %v4130
    %v4132 = vshll.u32 2131351028, %v4123
    %v4133 = vshrl.u32 2102212464, %v4124
    %v4134 = vor.u32 %v4132, %v4133
    %v4135 = vshll.u32 2102212464, %v4123
    %v4136 = vshrl.u32 920167782, %v4124
    %v4137 = vor.u32 %v4135, %v4136
    %v4138 = vshll.u32 920167782, %v4123
    %v4139 = vshrl.u32 1326507024, %v4124
    %v4140 = vor.u32 %v4138, %v4139
    %vm4141 = vcmp.lt.s32.totalorder %v4122, 1
    %vm4142 = vcmp.lt.s32.totalorder %v4122, 2
    %vm4143 = vcmp.lt.s32.totalorder %v4122, 3
    %vm4144 = vcmp.lt.s32.totalorder %v4122, 4
    %v4145 = vsel %vm4141, %v4125, %v4128
    %v4146 = vsel %vm4144, %v4134, 2102212464
    %v4147 = vsel %vm4143, %v4131, %v4146
    %v4148 = vsel %vm4142, %v4145, %v4147
    %v4149 = vsel %vm4141, %v4128, %v4131
    %v4150 = vsel %vm4144, %v4137, 920167782
    %v4151 = vsel %vm4143, %v4134, %v4150
    %v4152 = vsel %vm4142, %v4149, %v4151
    %v4153 = vsel %vm4141, %v4131, %v4134
    %v4154 = vsel %vm4144, %v4140, 1326507024
    %v4155 = vsel %vm4143, %v4137, %v4154
    %v4156 = vsel %vm4142, %v4153, %v4155
    %v4157 = vshll.u32 %v4117, 8
    %v4158 = vmul.u32.u64.compose %v4157, %v4156
    %v4159 = vextract.low.u32 %v4158
    %v4160 = vextract.high.u32 %v4158
    %v4161 = vmul.u32.u64.compose %v4157, %v4152
    %v4162 = vextract.low.u32 %v4161
    %v4163 = vextract.high.u32 %v4161
    %v4164 = vmul.u32 %v4157, %v4148
    %v4165 = vadd.s32 %v4160, %v4162
    %vm4166 = vc.u32 %v4160, %v4162
    %v4167 = vadd.s32 %v4163, 1
    %v4168 = vsel %vm4166, %v4167, %v4163
    %v4169 = vadd.s32 %v4164, %v4168
    %v4170 = vadd.s32 %v4169, 536870912
    %v4171 = vshrl.u32 %v4170, 30
    %v4172 = vshll.u32 %v4171, 30
    %v4173 = vsub.s32 %v4169, %v4172
    %vm4174 = vcmp.lt.s32.totalorder %v4173, 0
    %v4175 = vsub.s32 0, %v4173
    %v4176 = vsel %vm4174, %v4175, %v4173
    %v4177 = vclz %v4176
    %v4178 = vsub.s32 %v4177, 2
    %vm4179 = vcmp.gt.s32.totalorder 0, %v4178
    %v4180 = vsel %vm4179, 0, %v4178
    %v4181 = vsub.s32 32, %v4180
    %v4182 = vshll.u32 %v4173, %v4180
    %v4183 = vshrl.u32 %v4165, %v4181
    %v4184 = vor.u32 %v4182, %v4183
    %v4185 = vsub.s32 4294967266, %v4180
    %v4186 = vadd.s32 %v4185, 127
    %v4187 = vshll.u32 %v4186, 23
    %v4188 = vor.u32 4788187, %v4187
    %v4189 = vand.u32 2147483647, %v4188
    %v4191 = vcvt.s32.f32 %v4184
    %v4192 = vmul.f32 %v4191, %v4189
    %v4193 = vxor.u32 %v4192, 2147483648
    %v4194 = vsel %vm4111, %v4193, %v4192
    %v4195 = vsub.s32 4, %v4171
    %v4196 = vsel %vm4111, %v4195, %v4171
    %v4197 = vsel %vm4110, %v3833, %v4194
    %v4198 = vsel %vm4110, 0, %v4196
    %v4199 = vcosq.f32.pop %v4197
    %v4200 = vsinq.f32.pop %v4197
    %vm4201 = vweird.f32 %v3833
    %v4202 = vadd.s32 %v4198, 3
    %v4203 = vand.u32 %v4202, 3
    %vm4204 = vcmp.lt.s32.totalorder %v4203, 2
    %vm4205 = vcmp.eq.s32.totalorder %v4203, 0
    %v4206 = vxor.u32 %v4200, 2147483648
    %v4207 = vsel %vm4205, %v4199, %v4206
    %vm4208 = vcmp.eq.s32.totalorder %v4203, 2
    %v4209 = vxor.u32 %v4199, 2147483648
    %v4210 = vsel %vm4208, %v4209, %v4200
    %v4211 = vsel %vm4204, %v4207, %v4210
    %v4212 = vsel %vm4201, nan, %v4211
    %v4213 = vand.u32 2147483647, %v3838
    %vm4214 = vcmp.le.f32.partialorder %v4213, 0.7853982
    %vm4215 = vcmp.lt.s32.totalorder %v3838, 0
    %v4216 = vand.u32 %v3838, 2139095040
    %v4217 = vshrl.u32 %v4216, 23
    %v4218 = vsub.s32 %v4217, 127
    %v4219 = vand.u32 2147483647, %v3838
    %v4220 = vand.u32 %v4219, 8388607
    %v4221 = vor.u32 %v4220, 8388608
    %v4222 = vsub.s32 0, %v4221
    %v4223 = vadd.s32 %v4218, 1
    %vm4224 = vcmp.gt.s32.totalorder %v4223, 0
    %v4225 = vsel %vm4224, %v4223, 0
    %v4226 = vshrl.u32 %v4225, 5
    %v4227 = vand.u32 %v4225, 31
    %v4228 = vsub.s32 32, %v4227
    %v4229 = vshrl.u32 683565275, %v4228
    %v4230 = vshll.u32 683565275, %v4227
    %v4231 = vshrl.u32 2475754826, %v4228
    %v4232 = vor.u32 %v4230, %v4231
    %v4233 = vshll.u32 2475754826, %v4227
    %v4234 = vshrl.u32 2131351028, %v4228
    %v4235 = vor.u32 %v4233, %v4234
    %v4236 = vshll.u32 2131351028, %v4227
    %v4237 = vshrl.u32 2102212464, %v4228
    %v4238 = vor.u32 %v4236, %v4237
    %v4239 = vshll.u32 2102212464, %v4227
    %v4240 = vshrl.u32 920167782, %v4228
    %v4241 = vor.u32 %v4239, %v4240
    %v4242 = vshll.u32 920167782, %v4227
    %v4243 = vshrl.u32 1326507024, %v4228
    %v4244 = vor.u32 %v4242, %v4243
    %vm4245 = vcmp.lt.s32.totalorder %v4226, 1
    %vm4246 = vcmp.lt.s32.totalorder %v4226, 2
    %vm4247 = vcmp.lt.s32.totalorder %v4226, 3
    %vm4248 = vcmp.lt.s32.totalorder %v4226, 4
    %v4249 = vsel %vm4245, %v4229, %v4232
    %v4250 = vsel %vm4248, %v4238, 2102212464
    %v4251 = vsel %vm4247, %v4235, %v4250
    %v4252 = vsel %vm4246, %v4249, %v4251
    %v4253 = vsel %vm4245, %v4232, %v4235
    %v4254 = vsel %vm4248, %v4241, 920167782
    %v4255 = vsel %vm4247, %v4238, %v4254
    %v4256 = vsel %vm4246, %v4253, %v4255
    %v4257 = vsel %vm4245, %v4235, %v4238
    %v4258 = vsel %vm4248, %v4244, 1326507024
    %v4259 = vsel %vm4247, %v4241, %v4258
    %v4260 = vsel %vm4246, %v4257, %v4259
    %v4261 = vshll.u32 %v4221, 8
    %v4262 = vmul.u32.u64.compose %v4261, %v4260
    %v4263 = vextract.low.u32 %v4262
    %v4264 = vextract.high.u32 %v4262
    %v4265 = vmul.u32.u64.compose %v4261, %v4256
    %v4266 = vextract.low.u32 %v4265
    %v4267 = vextract.high.u32 %v4265
    %v4268 = vmul.u32 %v4261, %v4252
    %v4269 = vadd.s32 %v4264, %v4266
    %vm4270 = vc.u32 %v4264, %v4266
    %v4271 = vadd.s32 %v4267, 1
    %v4272 = vsel %vm4270, %v4271, %v4267
    %v4273 = vadd.s32 %v4268, %v4272
    %v4274 = vadd.s32 %v4273, 536870912
    %v4275 = vshrl.u32 %v4274, 30
    %v4276 = vshll.u32 %v4275, 30
    %v4277 = vsub.s32 %v4273, %v4276
    %vm4278 = vcmp.lt.s32.totalorder %v4277, 0
    %v4279 = vsub.s32 0, %v4277
    %v4280 = vsel %vm4278, %v4279, %v4277
    %v4281 = vclz %v4280
    %v4282 = vsub.s32 %v4281, 2
    %vm4283 = vcmp.gt.s32.totalorder 0, %v4282
    %v4284 = vsel %vm4283, 0, %v4282
    %v4285 = vsub.s32 32, %v4284
    %v4286 = vshll.u32 %v4277, %v4284
    %v4287 = vshrl.u32 %v4269, %v4285
    %v4288 = vor.u32 %v4286, %v4287
    %v4289 = vsub.s32 4294967266, %v4284
    %v4290 = vadd.s32 %v4289, 127
    %v4291 = vshll.u32 %v4290, 23
    %v4292 = vor.u32 4788187, %v4291
    %v4293 = vand.u32 2147483647, %v4292
    %v4295 = vcvt.s32.f32 %v4288
    %v4296 = vmul.f32 %v4295, %v4293
    %v4297 = vxor.u32 %v4296, 2147483648
    %v4298 = vsel %vm4215, %v4297, %v4296
    %v4299 = vsub.s32 4, %v4275
    %v4300 = vsel %vm4215, %v4299, %v4275
    %v4301 = vsel %vm4214, %v3838, %v4298
    %v4302 = vsel %vm4214, 0, %v4300
    %v4303 = vcosq.f32.pop %v4301
    %v4304 = vsinq.f32.pop %v4301
    %vm4305 = vweird.f32 %v3838
    %v4306 = vadd.s32 %v4302, 3
    %v4307 = vand.u32 %v4306, 3
    %vm4308 = vcmp.lt.s32.totalorder %v4307, 2
    %vm4309 = vcmp.eq.s32.totalorder %v4307, 0
    %v4310 = vxor.u32 %v4304, 2147483648
    %v4311 = vsel %vm4309, %v4303, %v4310
    %vm4312 = vcmp.eq.s32.totalorder %v4307, 2
    %v4313 = vxor.u32 %v4303, 2147483648
    %v4314 = vsel %vm4312, %v4313, %v4304
    %v4315 = vsel %vm4308, %v4311, %v4314
    %v4316 = vsel %vm4305, nan, %v4315
    %v4317 = vand.u32 2147483647, %v3843
    %vm4318 = vcmp.le.f32.partialorder %v4317, 0.7853982
    %vm4319 = vcmp.lt.s32.totalorder %v3843, 0
    %v4320 = vand.u32 %v3843, 2139095040
    %v4321 = vshrl.u32 %v4320, 23
    %v4322 = vsub.s32 %v4321, 127
    %v4323 = vand.u32 2147483647, %v3843
    %v4324 = vand.u32 %v4323, 8388607
    %v4325 = vor.u32 %v4324, 8388608
    %v4326 = vsub.s32 0, %v4325
    %v4327 = vadd.s32 %v4322, 1
    %vm4328 = vcmp.gt.s32.totalorder %v4327, 0
    %v4329 = vsel %vm4328, %v4327, 0
    %v4330 = vshrl.u32 %v4329, 5
    %v4331 = vand.u32 %v4329, 31
    %v4332 = vsub.s32 32, %v4331
    %v4333 = vshrl.u32 683565275, %v4332
    %v4334 = vshll.u32 683565275, %v4331
    %v4335 = vshrl.u32 2475754826, %v4332
    %v4336 = vor.u32 %v4334, %v4335
    %v4337 = vshll.u32 2475754826, %v4331
    %v4338 = vshrl.u32 2131351028, %v4332
    %v4339 = vor.u32 %v4337, %v4338
    %v4340 = vshll.u32 2131351028, %v4331
    %v4341 = vshrl.u32 2102212464, %v4332
    %v4342 = vor.u32 %v4340, %v4341
    %v4343 = vshll.u32 2102212464, %v4331
    %v4344 = vshrl.u32 920167782, %v4332
    %v4345 = vor.u32 %v4343, %v4344
    %v4346 = vshll.u32 920167782, %v4331
    %v4347 = vshrl.u32 1326507024, %v4332
    %v4348 = vor.u32 %v4346, %v4347
    %vm4349 = vcmp.lt.s32.totalorder %v4330, 1
    %vm4350 = vcmp.lt.s32.totalorder %v4330, 2
    %vm4351 = vcmp.lt.s32.totalorder %v4330, 3
    %vm4352 = vcmp.lt.s32.totalorder %v4330, 4
    %v4353 = vsel %vm4349, %v4333, %v4336
    %v4354 = vsel %vm4352, %v4342, 2102212464
    %v4355 = vsel %vm4351, %v4339, %v4354
    %v4356 = vsel %vm4350, %v4353, %v4355
    %v4357 = vsel %vm4349, %v4336, %v4339
    %v4358 = vsel %vm4352, %v4345, 920167782
    %v4359 = vsel %vm4351, %v4342, %v4358
    %v4360 = vsel %vm4350, %v4357, %v4359
    %v4361 = vsel %vm4349, %v4339, %v4342
    %v4362 = vsel %vm4352, %v4348, 1326507024
    %v4363 = vsel %vm4351, %v4345, %v4362
    %v4364 = vsel %vm4350, %v4361, %v4363
    %v4365 = vshll.u32 %v4325, 8
    %v4366 = vmul.u32.u64.compose %v4365, %v4364
    %v4367 = vextract.low.u32 %v4366
    %v4368 = vextract.high.u32 %v4366
    %v4369 = vmul.u32.u64.compose %v4365, %v4360
    %v4370 = vextract.low.u32 %v4369
    %v4371 = vextract.high.u32 %v4369
    %v4372 = vmul.u32 %v4365, %v4356
    %v4373 = vadd.s32 %v4368, %v4370
    %vm4374 = vc.u32 %v4368, %v4370
    %v4375 = vadd.s32 %v4371, 1
    %v4376 = vsel %vm4374, %v4375, %v4371
    %v4377 = vadd.s32 %v4372, %v4376
    %v4378 = vadd.s32 %v4377, 536870912
    %v4379 = vshrl.u32 %v4378, 30
    %v4380 = vshll.u32 %v4379, 30
    %v4381 = vsub.s32 %v4377, %v4380
    %vm4382 = vcmp.lt.s32.totalorder %v4381, 0
    %v4383 = vsub.s32 0, %v4381
    %v4384 = vsel %vm4382, %v4383, %v4381
    %v4385 = vclz %v4384
    %v4386 = vsub.s32 %v4385, 2
    %vm4387 = vcmp.gt.s32.totalorder 0, %v4386
    %v4388 = vsel %vm4387, 0, %v4386
    %v4389 = vsub.s32 32, %v4388
    %v4390 = vshll.u32 %v4381, %v4388
    %v4391 = vshrl.u32 %v4373, %v4389
    %v4392 = vor.u32 %v4390, %v4391
    %v4393 = vsub.s32 4294967266, %v4388
    %v4394 = vadd.s32 %v4393, 127
    %v4395 = vshll.u32 %v4394, 23
    %v4396 = vor.u32 4788187, %v4395
    %v4397 = vand.u32 2147483647, %v4396
    %v4399 = vcvt.s32.f32 %v4392
    %v4400 = vmul.f32 %v4399, %v4397
    %v4401 = vxor.u32 %v4400, 2147483648
    %v4402 = vsel %vm4319, %v4401, %v4400
    %v4403 = vsub.s32 4, %v4379
    %v4404 = vsel %vm4319, %v4403, %v4379
    %v4405 = vsel %vm4318, %v3843, %v4402
    %v4406 = vsel %vm4318, 0, %v4404
    %v4407 = vcosq.f32.pop %v4405
    %v4408 = vsinq.f32.pop %v4405
    %vm4409 = vweird.f32 %v3843
    %v4410 = vadd.s32 %v4406, 3
    %v4411 = vand.u32 %v4410, 3
    %vm4412 = vcmp.lt.s32.totalorder %v4411, 2
    %vm4413 = vcmp.eq.s32.totalorder %v4411, 0
    %v4414 = vxor.u32 %v4408, 2147483648
    %v4415 = vsel %vm4413, %v4407, %v4414
    %vm4416 = vcmp.eq.s32.totalorder %v4411, 2
    %v4417 = vxor.u32 %v4407, 2147483648
    %v4418 = vsel %vm4416, %v4417, %v4408
    %v4419 = vsel %vm4412, %v4415, %v4418
    %v4420 = vsel %vm4409, nan, %v4419
    %v4421 = vand.u32 2147483647, %v3848
    %vm4422 = vcmp.le.f32.partialorder %v4421, 0.7853982
    %vm4423 = vcmp.lt.s32.totalorder %v3848, 0
    %v4424 = vand.u32 %v3848, 2139095040
    %v4425 = vshrl.u32 %v4424, 23
    %v4426 = vsub.s32 %v4425, 127
    %v4427 = vand.u32 2147483647, %v3848
    %v4428 = vand.u32 %v4427, 8388607
    %v4429 = vor.u32 %v4428, 8388608
    %v4430 = vsub.s32 0, %v4429
    %v4431 = vadd.s32 %v4426, 1
    %vm4432 = vcmp.gt.s32.totalorder %v4431, 0
    %v4433 = vsel %vm4432, %v4431, 0
    %v4434 = vshrl.u32 %v4433, 5
    %v4435 = vand.u32 %v4433, 31
    %v4436 = vsub.s32 32, %v4435
    %v4437 = vshrl.u32 683565275, %v4436
    %v4438 = vshll.u32 683565275, %v4435
    %v4439 = vshrl.u32 2475754826, %v4436
    %v4440 = vor.u32 %v4438, %v4439
    %v4441 = vshll.u32 2475754826, %v4435
    %v4442 = vshrl.u32 2131351028, %v4436
    %v4443 = vor.u32 %v4441, %v4442
    %v4444 = vshll.u32 2131351028, %v4435
    %v4445 = vshrl.u32 2102212464, %v4436
    %v4446 = vor.u32 %v4444, %v4445
    %v4447 = vshll.u32 2102212464, %v4435
    %v4448 = vshrl.u32 920167782, %v4436
    %v4449 = vor.u32 %v4447, %v4448
    %v4450 = vshll.u32 920167782, %v4435
    %v4451 = vshrl.u32 1326507024, %v4436
    %v4452 = vor.u32 %v4450, %v4451
    %vm4453 = vcmp.lt.s32.totalorder %v4434, 1
    %vm4454 = vcmp.lt.s32.totalorder %v4434, 2
    %vm4455 = vcmp.lt.s32.totalorder %v4434, 3
    %vm4456 = vcmp.lt.s32.totalorder %v4434, 4
    %v4457 = vsel %vm4453, %v4437, %v4440
    %v4458 = vsel %vm4456, %v4446, 2102212464
    %v4459 = vsel %vm4455, %v4443, %v4458
    %v4460 = vsel %vm4454, %v4457, %v4459
    %v4461 = vsel %vm4453, %v4440, %v4443
    %v4462 = vsel %vm4456, %v4449, 920167782
    %v4463 = vsel %vm4455, %v4446, %v4462
    %v4464 = vsel %vm4454, %v4461, %v4463
    %v4465 = vsel %vm4453, %v4443, %v4446
    %v4466 = vsel %vm4456, %v4452, 1326507024
    %v4467 = vsel %vm4455, %v4449, %v4466
    %v4468 = vsel %vm4454, %v4465, %v4467
    %v4469 = vshll.u32 %v4429, 8
    %v4470 = vmul.u32.u64.compose %v4469, %v4468
    %v4471 = vextract.low.u32 %v4470
    %v4472 = vextract.high.u32 %v4470
    %v4473 = vmul.u32.u64.compose %v4469, %v4464
    %v4474 = vextract.low.u32 %v4473
    %v4475 = vextract.high.u32 %v4473
    %v4476 = vmul.u32 %v4469, %v4460
    %v4477 = vadd.s32 %v4472, %v4474
    %vm4478 = vc.u32 %v4472, %v4474
    %v4479 = vadd.s32 %v4475, 1
    %v4480 = vsel %vm4478, %v4479, %v4475
    %v4481 = vadd.s32 %v4476, %v4480
    %v4482 = vadd.s32 %v4481, 536870912
    %v4483 = vshrl.u32 %v4482, 30
    %v4484 = vshll.u32 %v4483, 30
    %v4485 = vsub.s32 %v4481, %v4484
    %vm4486 = vcmp.lt.s32.totalorder %v4485, 0
    %v4487 = vsub.s32 0, %v4485
    %v4488 = vsel %vm4486, %v4487, %v4485
    %v4489 = vclz %v4488
    %v4490 = vsub.s32 %v4489, 2
    %vm4491 = vcmp.gt.s32.totalorder 0, %v4490
    %v4492 = vsel %vm4491, 0, %v4490
    %v4493 = vsub.s32 32, %v4492
    %v4494 = vshll.u32 %v4485, %v4492
    %v4495 = vshrl.u32 %v4477, %v4493
    %v4496 = vor.u32 %v4494, %v4495
    %v4497 = vsub.s32 4294967266, %v4492
    %v4498 = vadd.s32 %v4497, 127
    %v4499 = vshll.u32 %v4498, 23
    %v4500 = vor.u32 4788187, %v4499
    %v4501 = vand.u32 2147483647, %v4500
    %v4503 = vcvt.s32.f32 %v4496
    %v4504 = vmul.f32 %v4503, %v4501
    %v4505 = vxor.u32 %v4504, 2147483648
    %v4506 = vsel %vm4423, %v4505, %v4504
    %v4507 = vsub.s32 4, %v4483
    %v4508 = vsel %vm4423, %v4507, %v4483
    %v4509 = vsel %vm4422, %v3848, %v4506
    %v4510 = vsel %vm4422, 0, %v4508
    %v4511 = vcosq.f32.pop %v4509
    %v4512 = vsinq.f32.pop %v4509
    %vm4513 = vweird.f32 %v3848
    %v4514 = vadd.s32 %v4510, 3
    %v4515 = vand.u32 %v4514, 3
    %vm4516 = vcmp.lt.s32.totalorder %v4515, 2
    %vm4517 = vcmp.eq.s32.totalorder %v4515, 0
    %v4518 = vxor.u32 %v4512, 2147483648
    %v4519 = vsel %vm4517, %v4511, %v4518
    %vm4520 = vcmp.eq.s32.totalorder %v4515, 2
    %v4521 = vxor.u32 %v4511, 2147483648
    %v4522 = vsel %vm4520, %v4521, %v4512
    %v4523 = vsel %vm4516, %v4519, %v4522
    %v4524 = vsel %vm4513, nan, %v4523
    %v4525 = vand.u32 2147483647, %v3853
    %vm4526 = vcmp.le.f32.partialorder %v4525, 0.7853982
    %vm4527 = vcmp.lt.s32.totalorder %v3853, 0
    %v4528 = vand.u32 %v3853, 2139095040
    %v4529 = vshrl.u32 %v4528, 23
    %v4530 = vsub.s32 %v4529, 127
    %v4531 = vand.u32 2147483647, %v3853
    %v4532 = vand.u32 %v4531, 8388607
    %v4533 = vor.u32 %v4532, 8388608
    %v4534 = vsub.s32 0, %v4533
    %v4535 = vadd.s32 %v4530, 1
    %vm4536 = vcmp.gt.s32.totalorder %v4535, 0
    %v4537 = vsel %vm4536, %v4535, 0
    %v4538 = vshrl.u32 %v4537, 5
    %v4539 = vand.u32 %v4537, 31
    %v4540 = vsub.s32 32, %v4539
    %v4541 = vshrl.u32 683565275, %v4540
    %v4542 = vshll.u32 683565275, %v4539
    %v4543 = vshrl.u32 2475754826, %v4540
    %v4544 = vor.u32 %v4542, %v4543
    %v4545 = vshll.u32 2475754826, %v4539
    %v4546 = vshrl.u32 2131351028, %v4540
    %v4547 = vor.u32 %v4545, %v4546
    %v4548 = vshll.u32 2131351028, %v4539
    %v4549 = vshrl.u32 2102212464, %v4540
    %v4550 = vor.u32 %v4548, %v4549
    %v4551 = vshll.u32 2102212464, %v4539
    %v4552 = vshrl.u32 920167782, %v4540
    %v4553 = vor.u32 %v4551, %v4552
    %v4554 = vshll.u32 920167782, %v4539
    %v4555 = vshrl.u32 1326507024, %v4540
    %v4556 = vor.u32 %v4554, %v4555
    %vm4557 = vcmp.lt.s32.totalorder %v4538, 1
    %vm4558 = vcmp.lt.s32.totalorder %v4538, 2
    %vm4559 = vcmp.lt.s32.totalorder %v4538, 3
    %vm4560 = vcmp.lt.s32.totalorder %v4538, 4
    %v4561 = vsel %vm4557, %v4541, %v4544
    %v4562 = vsel %vm4560, %v4550, 2102212464
    %v4563 = vsel %vm4559, %v4547, %v4562
    %v4564 = vsel %vm4558, %v4561, %v4563
    %v4565 = vsel %vm4557, %v4544, %v4547
    %v4566 = vsel %vm4560, %v4553, 920167782
    %v4567 = vsel %vm4559, %v4550, %v4566
    %v4568 = vsel %vm4558, %v4565, %v4567
    %v4569 = vsel %vm4557, %v4547, %v4550
    %v4570 = vsel %vm4560, %v4556, 1326507024
    %v4571 = vsel %vm4559, %v4553, %v4570
    %v4572 = vsel %vm4558, %v4569, %v4571
    %v4573 = vshll.u32 %v4533, 8
    %v4574 = vmul.u32.u64.compose %v4573, %v4572
    %v4575 = vextract.low.u32 %v4574
    %v4576 = vextract.high.u32 %v4574
    %v4577 = vmul.u32.u64.compose %v4573, %v4568
    %v4578 = vextract.low.u32 %v4577
    %v4579 = vextract.high.u32 %v4577
    %v4580 = vmul.u32 %v4573, %v4564
    %v4581 = vadd.s32 %v4576, %v4578
    %vm4582 = vc.u32 %v4576, %v4578
    %v4583 = vadd.s32 %v4579, 1
    %v4584 = vsel %vm4582, %v4583, %v4579
    %v4585 = vadd.s32 %v4580, %v4584
    %v4586 = vadd.s32 %v4585, 536870912
    %v4587 = vshrl.u32 %v4586, 30
    %v4588 = vshll.u32 %v4587, 30
    %v4589 = vsub.s32 %v4585, %v4588
    %vm4590 = vcmp.lt.s32.totalorder %v4589, 0
    %v4591 = vsub.s32 0, %v4589
    %v4592 = vsel %vm4590, %v4591, %v4589
    %v4593 = vclz %v4592
    %v4594 = vsub.s32 %v4593, 2
    %vm4595 = vcmp.gt.s32.totalorder 0, %v4594
    %v4596 = vsel %vm4595, 0, %v4594
    %v4597 = vsub.s32 32, %v4596
    %v4598 = vshll.u32 %v4589, %v4596
    %v4599 = vshrl.u32 %v4581, %v4597
    %v4600 = vor.u32 %v4598, %v4599
    %v4601 = vsub.s32 4294967266, %v4596
    %v4602 = vadd.s32 %v4601, 127
    %v4603 = vshll.u32 %v4602, 23
    %v4604 = vor.u32 4788187, %v4603
    %v4605 = vand.u32 2147483647, %v4604
    %v4607 = vcvt.s32.f32 %v4600
    %v4608 = vmul.f32 %v4607, %v4605
    %v4609 = vxor.u32 %v4608, 2147483648
    %v4610 = vsel %vm4527, %v4609, %v4608
    %v4611 = vsub.s32 4, %v4587
    %v4612 = vsel %vm4527, %v4611, %v4587
    %v4613 = vsel %vm4526, %v3853, %v4610
    %v4614 = vsel %vm4526, 0, %v4612
    %v4615 = vcosq.f32.pop %v4613
    %v4616 = vsinq.f32.pop %v4613
    %vm4617 = vweird.f32 %v3853
    %v4618 = vadd.s32 %v4614, 3
    %v4619 = vand.u32 %v4618, 3
    %vm4620 = vcmp.lt.s32.totalorder %v4619, 2
    %vm4621 = vcmp.eq.s32.totalorder %v4619, 0
    %v4622 = vxor.u32 %v4616, 2147483648
    %v4623 = vsel %vm4621, %v4615, %v4622
    %vm4624 = vcmp.eq.s32.totalorder %v4619, 2
    %v4625 = vxor.u32 %v4615, 2147483648
    %v4626 = vsel %vm4624, %v4625, %v4616
    %v4627 = vsel %vm4620, %v4623, %v4626
    %v4628 = vsel %vm4617, nan, %v4627
    %v4629 = vand.u32 2147483647, %v3858
    %vm4630 = vcmp.le.f32.partialorder %v4629, 0.7853982
    %vm4631 = vcmp.lt.s32.totalorder %v3858, 0
    %v4632 = vand.u32 %v3858, 2139095040
    %v4633 = vshrl.u32 %v4632, 23
    %v4634 = vsub.s32 %v4633, 127
    %v4635 = vand.u32 2147483647, %v3858
    %v4636 = vand.u32 %v4635, 8388607
    %v4637 = vor.u32 %v4636, 8388608
    %v4638 = vsub.s32 0, %v4637
    %v4639 = vadd.s32 %v4634, 1
    %vm4640 = vcmp.gt.s32.totalorder %v4639, 0
    %v4641 = vsel %vm4640, %v4639, 0
    %v4642 = vshrl.u32 %v4641, 5
    %v4643 = vand.u32 %v4641, 31
    %v4644 = vsub.s32 32, %v4643
    %v4645 = vshrl.u32 683565275, %v4644
    %v4646 = vshll.u32 683565275, %v4643
    %v4647 = vshrl.u32 2475754826, %v4644
    %v4648 = vor.u32 %v4646, %v4647
    %v4649 = vshll.u32 2475754826, %v4643
    %v4650 = vshrl.u32 2131351028, %v4644
    %v4651 = vor.u32 %v4649, %v4650
    %v4652 = vshll.u32 2131351028, %v4643
    %v4653 = vshrl.u32 2102212464, %v4644
    %v4654 = vor.u32 %v4652, %v4653
    %v4655 = vshll.u32 2102212464, %v4643
    %v4656 = vshrl.u32 920167782, %v4644
    %v4657 = vor.u32 %v4655, %v4656
    %v4658 = vshll.u32 920167782, %v4643
    %v4659 = vshrl.u32 1326507024, %v4644
    %v4660 = vor.u32 %v4658, %v4659
    %vm4661 = vcmp.lt.s32.totalorder %v4642, 1
    %vm4662 = vcmp.lt.s32.totalorder %v4642, 2
    %vm4663 = vcmp.lt.s32.totalorder %v4642, 3
    %vm4664 = vcmp.lt.s32.totalorder %v4642, 4
    %v4665 = vsel %vm4661, %v4645, %v4648
    %v4666 = vsel %vm4664, %v4654, 2102212464
    %v4667 = vsel %vm4663, %v4651, %v4666
    %v4668 = vsel %vm4662, %v4665, %v4667
    %v4669 = vsel %vm4661, %v4648, %v4651
    %v4670 = vsel %vm4664, %v4657, 920167782
    %v4671 = vsel %vm4663, %v4654, %v4670
    %v4672 = vsel %vm4662, %v4669, %v4671
    %v4673 = vsel %vm4661, %v4651, %v4654
    %v4674 = vsel %vm4664, %v4660, 1326507024
    %v4675 = vsel %vm4663, %v4657, %v4674
    %v4676 = vsel %vm4662, %v4673, %v4675
    %v4677 = vshll.u32 %v4637, 8
    %v4678 = vmul.u32.u64.compose %v4677, %v4676
    %v4679 = vextract.low.u32 %v4678
    %v4680 = vextract.high.u32 %v4678
    %v4681 = vmul.u32.u64.compose %v4677, %v4672
    %v4682 = vextract.low.u32 %v4681
    %v4683 = vextract.high.u32 %v4681
    %v4684 = vmul.u32 %v4677, %v4668
    %v4685 = vadd.s32 %v4680, %v4682
    %vm4686 = vc.u32 %v4680, %v4682
    %v4687 = vadd.s32 %v4683, 1
    %v4688 = vsel %vm4686, %v4687, %v4683
    %v4689 = vadd.s32 %v4684, %v4688
    %v4690 = vadd.s32 %v4689, 536870912
    %v4691 = vshrl.u32 %v4690, 30
    %v4692 = vshll.u32 %v4691, 30
    %v4693 = vsub.s32 %v4689, %v4692
    %vm4694 = vcmp.lt.s32.totalorder %v4693, 0
    %v4695 = vsub.s32 0, %v4693
    %v4696 = vsel %vm4694, %v4695, %v4693
    %v4697 = vclz %v4696
    %v4698 = vsub.s32 %v4697, 2
    %vm4699 = vcmp.gt.s32.totalorder 0, %v4698
    %v4700 = vsel %vm4699, 0, %v4698
    %v4701 = vsub.s32 32, %v4700
    %v4702 = vshll.u32 %v4693, %v4700
    %v4703 = vshrl.u32 %v4685, %v4701
    %v4704 = vor.u32 %v4702, %v4703
    %v4705 = vsub.s32 4294967266, %v4700
    %v4706 = vadd.s32 %v4705, 127
    %v4707 = vshll.u32 %v4706, 23
    %v4708 = vor.u32 4788187, %v4707
    %v4709 = vand.u32 2147483647, %v4708
    %v4711 = vcvt.s32.f32 %v4704
    %v4712 = vmul.f32 %v4711, %v4709
    %v4713 = vxor.u32 %v4712, 2147483648
    %v4714 = vsel %vm4631, %v4713, %v4712
    %v4715 = vsub.s32 4, %v4691
    %v4716 = vsel %vm4631, %v4715, %v4691
    %v4717 = vsel %vm4630, %v3858, %v4714
    %v4718 = vsel %vm4630, 0, %v4716
    %v4719 = vcosq.f32.pop %v4717
    %v4720 = vsinq.f32.pop %v4717
    %vm4721 = vweird.f32 %v3858
    %v4722 = vadd.s32 %v4718, 3
    %v4723 = vand.u32 %v4722, 3
    %vm4724 = vcmp.lt.s32.totalorder %v4723, 2
    %vm4725 = vcmp.eq.s32.totalorder %v4723, 0
    %v4726 = vxor.u32 %v4720, 2147483648
    %v4727 = vsel %vm4725, %v4719, %v4726
    %vm4728 = vcmp.eq.s32.totalorder %v4723, 2
    %v4729 = vxor.u32 %v4719, 2147483648
    %v4730 = vsel %vm4728, %v4729, %v4720
    %v4731 = vsel %vm4724, %v4727, %v4730
    %v4732 = vsel %vm4721, nan, %v4731
    %v4733 = vand.u32 2147483647, %v3863
    %vm4734 = vcmp.le.f32.partialorder %v4733, 0.7853982
    %vm4735 = vcmp.lt.s32.totalorder %v3863, 0
    %v4736 = vand.u32 %v3863, 2139095040
    %v4737 = vshrl.u32 %v4736, 23
    %v4738 = vsub.s32 %v4737, 127
    %v4739 = vand.u32 2147483647, %v3863
    %v4740 = vand.u32 %v4739, 8388607
    %v4741 = vor.u32 %v4740, 8388608
    %v4742 = vsub.s32 0, %v4741
    %v4743 = vadd.s32 %v4738, 1
    %vm4744 = vcmp.gt.s32.totalorder %v4743, 0
    %v4745 = vsel %vm4744, %v4743, 0
    %v4746 = vshrl.u32 %v4745, 5
    %v4747 = vand.u32 %v4745, 31
    %v4748 = vsub.s32 32, %v4747
    %v4749 = vshrl.u32 683565275, %v4748
    %v4750 = vshll.u32 683565275, %v4747
    %v4751 = vshrl.u32 2475754826, %v4748
    %v4752 = vor.u32 %v4750, %v4751
    %v4753 = vshll.u32 2475754826, %v4747
    %v4754 = vshrl.u32 2131351028, %v4748
    %v4755 = vor.u32 %v4753, %v4754
    %v4756 = vshll.u32 2131351028, %v4747
    %v4757 = vshrl.u32 2102212464, %v4748
    %v4758 = vor.u32 %v4756, %v4757
    %v4759 = vshll.u32 2102212464, %v4747
    %v4760 = vshrl.u32 920167782, %v4748
    %v4761 = vor.u32 %v4759, %v4760
    %v4762 = vshll.u32 920167782, %v4747
    %v4763 = vshrl.u32 1326507024, %v4748
    %v4764 = vor.u32 %v4762, %v4763
    %vm4765 = vcmp.lt.s32.totalorder %v4746, 1
    %vm4766 = vcmp.lt.s32.totalorder %v4746, 2
    %vm4767 = vcmp.lt.s32.totalorder %v4746, 3
    %vm4768 = vcmp.lt.s32.totalorder %v4746, 4
    %v4769 = vsel %vm4765, %v4749, %v4752
    %v4770 = vsel %vm4768, %v4758, 2102212464
    %v4771 = vsel %vm4767, %v4755, %v4770
    %v4772 = vsel %vm4766, %v4769, %v4771
    %v4773 = vsel %vm4765, %v4752, %v4755
    %v4774 = vsel %vm4768, %v4761, 920167782
    %v4775 = vsel %vm4767, %v4758, %v4774
    %v4776 = vsel %vm4766, %v4773, %v4775
    %v4777 = vsel %vm4765, %v4755, %v4758
    %v4778 = vsel %vm4768, %v4764, 1326507024
    %v4779 = vsel %vm4767, %v4761, %v4778
    %v4780 = vsel %vm4766, %v4777, %v4779
    %v4781 = vshll.u32 %v4741, 8
    %v4782 = vmul.u32.u64.compose %v4781, %v4780
    %v4783 = vextract.low.u32 %v4782
    %v4784 = vextract.high.u32 %v4782
    %v4785 = vmul.u32.u64.compose %v4781, %v4776
    %v4786 = vextract.low.u32 %v4785
    %v4787 = vextract.high.u32 %v4785
    %v4788 = vmul.u32 %v4781, %v4772
    %v4789 = vadd.s32 %v4784, %v4786
    %vm4790 = vc.u32 %v4784, %v4786
    %v4791 = vadd.s32 %v4787, 1
    %v4792 = vsel %vm4790, %v4791, %v4787
    %v4793 = vadd.s32 %v4788, %v4792
    %v4794 = vadd.s32 %v4793, 536870912
    %v4795 = vshrl.u32 %v4794, 30
    %v4796 = vshll.u32 %v4795, 30
    %v4797 = vsub.s32 %v4793, %v4796
    %vm4798 = vcmp.lt.s32.totalorder %v4797, 0
    %v4799 = vsub.s32 0, %v4797
    %v4800 = vsel %vm4798, %v4799, %v4797
    %v4801 = vclz %v4800
    %v4802 = vsub.s32 %v4801, 2
    %vm4803 = vcmp.gt.s32.totalorder 0, %v4802
    %v4804 = vsel %vm4803, 0, %v4802
    %v4805 = vsub.s32 32, %v4804
    %v4806 = vshll.u32 %v4797, %v4804
    %v4807 = vshrl.u32 %v4789, %v4805
    %v4808 = vor.u32 %v4806, %v4807
    %v4809 = vsub.s32 4294967266, %v4804
    %v4810 = vadd.s32 %v4809, 127
    %v4811 = vshll.u32 %v4810, 23
    %v4812 = vor.u32 4788187, %v4811
    %v4813 = vand.u32 2147483647, %v4812
    %v4815 = vcvt.s32.f32 %v4808
    %v4816 = vmul.f32 %v4815, %v4813
    %v4817 = vxor.u32 %v4816, 2147483648
    %v4818 = vsel %vm4735, %v4817, %v4816
    %v4819 = vsub.s32 4, %v4795
    %v4820 = vsel %vm4735, %v4819, %v4795
    %v4821 = vsel %vm4734, %v3863, %v4818
    %v4822 = vsel %vm4734, 0, %v4820
    %v4823 = vcosq.f32.pop %v4821
    %v4824 = vsinq.f32.pop %v4821
    %vm4825 = vweird.f32 %v3863
    %v4826 = vadd.s32 %v4822, 3
    %v4827 = vand.u32 %v4826, 3
    %vm4828 = vcmp.lt.s32.totalorder %v4827, 2
    %vm4829 = vcmp.eq.s32.totalorder %v4827, 0
    %v4830 = vxor.u32 %v4824, 2147483648
    %v4831 = vsel %vm4829, %v4823, %v4830
    %vm4832 = vcmp.eq.s32.totalorder %v4827, 2
    %v4833 = vxor.u32 %v4823, 2147483648
    %v4834 = vsel %vm4832, %v4833, %v4824
    %v4835 = vsel %vm4828, %v4831, %v4834
    %v4836 = vsel %vm4825, nan, %v4835
    %v4837 = vand.u32 2147483647, %v3868
    %vm4838 = vcmp.le.f32.partialorder %v4837, 0.7853982
    %vm4839 = vcmp.lt.s32.totalorder %v3868, 0
    %v4840 = vand.u32 %v3868, 2139095040
    %v4841 = vshrl.u32 %v4840, 23
    %v4842 = vsub.s32 %v4841, 127
    %v4843 = vand.u32 2147483647, %v3868
    %v4844 = vand.u32 %v4843, 8388607
    %v4845 = vor.u32 %v4844, 8388608
    %v4846 = vsub.s32 0, %v4845
    %v4847 = vadd.s32 %v4842, 1
    %vm4848 = vcmp.gt.s32.totalorder %v4847, 0
    %v4849 = vsel %vm4848, %v4847, 0
    %v4850 = vshrl.u32 %v4849, 5
    %v4851 = vand.u32 %v4849, 31
    %v4852 = vsub.s32 32, %v4851
    %v4853 = vshrl.u32 683565275, %v4852
    %v4854 = vshll.u32 683565275, %v4851
    %v4855 = vshrl.u32 2475754826, %v4852
    %v4856 = vor.u32 %v4854, %v4855
    %v4857 = vshll.u32 2475754826, %v4851
    %v4858 = vshrl.u32 2131351028, %v4852
    %v4859 = vor.u32 %v4857, %v4858
    %v4860 = vshll.u32 2131351028, %v4851
    %v4861 = vshrl.u32 2102212464, %v4852
    %v4862 = vor.u32 %v4860, %v4861
    %v4863 = vshll.u32 2102212464, %v4851
    %v4864 = vshrl.u32 920167782, %v4852
    %v4865 = vor.u32 %v4863, %v4864
    %v4866 = vshll.u32 920167782, %v4851
    %v4867 = vshrl.u32 1326507024, %v4852
    %v4868 = vor.u32 %v4866, %v4867
    %vm4869 = vcmp.lt.s32.totalorder %v4850, 1
    %vm4870 = vcmp.lt.s32.totalorder %v4850, 2
    %vm4871 = vcmp.lt.s32.totalorder %v4850, 3
    %vm4872 = vcmp.lt.s32.totalorder %v4850, 4
    %v4873 = vsel %vm4869, %v4853, %v4856
    %v4874 = vsel %vm4872, %v4862, 2102212464
    %v4875 = vsel %vm4871, %v4859, %v4874
    %v4876 = vsel %vm4870, %v4873, %v4875
    %v4877 = vsel %vm4869, %v4856, %v4859
    %v4878 = vsel %vm4872, %v4865, 920167782
    %v4879 = vsel %vm4871, %v4862, %v4878
    %v4880 = vsel %vm4870, %v4877, %v4879
    %v4881 = vsel %vm4869, %v4859, %v4862
    %v4882 = vsel %vm4872, %v4868, 1326507024
    %v4883 = vsel %vm4871, %v4865, %v4882
    %v4884 = vsel %vm4870, %v4881, %v4883
    %v4885 = vshll.u32 %v4845, 8
    %v4886 = vmul.u32.u64.compose %v4885, %v4884
    %v4887 = vextract.low.u32 %v4886
    %v4888 = vextract.high.u32 %v4886
    %v4889 = vmul.u32.u64.compose %v4885, %v4880
    %v4890 = vextract.low.u32 %v4889
    %v4891 = vextract.high.u32 %v4889
    %v4892 = vmul.u32 %v4885, %v4876
    %v4893 = vadd.s32 %v4888, %v4890
    %vm4894 = vc.u32 %v4888, %v4890
    %v4895 = vadd.s32 %v4891, 1
    %v4896 = vsel %vm4894, %v4895, %v4891
    %v4897 = vadd.s32 %v4892, %v4896
    %v4898 = vadd.s32 %v4897, 536870912
    %v4899 = vshrl.u32 %v4898, 30
    %v4900 = vshll.u32 %v4899, 30
    %v4901 = vsub.s32 %v4897, %v4900
    %vm4902 = vcmp.lt.s32.totalorder %v4901, 0
    %v4903 = vsub.s32 0, %v4901
    %v4904 = vsel %vm4902, %v4903, %v4901
    %v4905 = vclz %v4904
    %v4906 = vsub.s32 %v4905, 2
    %vm4907 = vcmp.gt.s32.totalorder 0, %v4906
    %v4908 = vsel %vm4907, 0, %v4906
    %v4909 = vsub.s32 32, %v4908
    %v4910 = vshll.u32 %v4901, %v4908
    %v4911 = vshrl.u32 %v4893, %v4909
    %v4912 = vor.u32 %v4910, %v4911
    %v4913 = vsub.s32 4294967266, %v4908
    %v4914 = vadd.s32 %v4913, 127
    %v4915 = vshll.u32 %v4914, 23
    %v4916 = vor.u32 4788187, %v4915
    %v4917 = vand.u32 2147483647, %v4916
    %v4919 = vcvt.s32.f32 %v4912
    %v4920 = vmul.f32 %v4919, %v4917
    %v4921 = vxor.u32 %v4920, 2147483648
    %v4922 = vsel %vm4839, %v4921, %v4920
    %v4923 = vsub.s32 4, %v4899
    %v4924 = vsel %vm4839, %v4923, %v4899
    %v4925 = vsel %vm4838, %v3868, %v4922
    %v4926 = vsel %vm4838, 0, %v4924
    %v4927 = vcosq.f32.pop %v4925
    %v4928 = vsinq.f32.pop %v4925
    %vm4929 = vweird.f32 %v3868
    %v4930 = vadd.s32 %v4926, 3
    %v4931 = vand.u32 %v4930, 3
    %vm4932 = vcmp.lt.s32.totalorder %v4931, 2
    %vm4933 = vcmp.eq.s32.totalorder %v4931, 0
    %v4934 = vxor.u32 %v4928, 2147483648
    %v4935 = vsel %vm4933, %v4927, %v4934
    %vm4936 = vcmp.eq.s32.totalorder %v4931, 2
    %v4937 = vxor.u32 %v4927, 2147483648
    %v4938 = vsel %vm4936, %v4937, %v4928
    %v4939 = vsel %vm4932, %v4935, %v4938
    %v4940 = vsel %vm4929, nan, %v4939
    %v4941 = vand.u32 2147483647, %v3873
    %vm4942 = vcmp.le.f32.partialorder %v4941, 0.7853982
    %vm4943 = vcmp.lt.s32.totalorder %v3873, 0
    %v4944 = vand.u32 %v3873, 2139095040
    %v4945 = vshrl.u32 %v4944, 23
    %v4946 = vsub.s32 %v4945, 127
    %v4947 = vand.u32 2147483647, %v3873
    %v4948 = vand.u32 %v4947, 8388607
    %v4949 = vor.u32 %v4948, 8388608
    %v4950 = vsub.s32 0, %v4949
    %v4951 = vadd.s32 %v4946, 1
    %vm4952 = vcmp.gt.s32.totalorder %v4951, 0
    %v4953 = vsel %vm4952, %v4951, 0
    %v4954 = vshrl.u32 %v4953, 5
    %v4955 = vand.u32 %v4953, 31
    %v4956 = vsub.s32 32, %v4955
    %v4957 = vshrl.u32 683565275, %v4956
    %v4958 = vshll.u32 683565275, %v4955
    %v4959 = vshrl.u32 2475754826, %v4956
    %v4960 = vor.u32 %v4958, %v4959
    %v4961 = vshll.u32 2475754826, %v4955
    %v4962 = vshrl.u32 2131351028, %v4956
    %v4963 = vor.u32 %v4961, %v4962
    %v4964 = vshll.u32 2131351028, %v4955
    %v4965 = vshrl.u32 2102212464, %v4956
    %v4966 = vor.u32 %v4964, %v4965
    %v4967 = vshll.u32 2102212464, %v4955
    %v4968 = vshrl.u32 920167782, %v4956
    %v4969 = vor.u32 %v4967, %v4968
    %v4970 = vshll.u32 920167782, %v4955
    %v4971 = vshrl.u32 1326507024, %v4956
    %v4972 = vor.u32 %v4970, %v4971
    %vm4973 = vcmp.lt.s32.totalorder %v4954, 1
    %vm4974 = vcmp.lt.s32.totalorder %v4954, 2
    %vm4975 = vcmp.lt.s32.totalorder %v4954, 3
    %vm4976 = vcmp.lt.s32.totalorder %v4954, 4
    %v4977 = vsel %vm4973, %v4957, %v4960
    %v4978 = vsel %vm4976, %v4966, 2102212464
    %v4979 = vsel %vm4975, %v4963, %v4978
    %v4980 = vsel %vm4974, %v4977, %v4979
    %v4981 = vsel %vm4973, %v4960, %v4963
    %v4982 = vsel %vm4976, %v4969, 920167782
    %v4983 = vsel %vm4975, %v4966, %v4982
    %v4984 = vsel %vm4974, %v4981, %v4983
    %v4985 = vsel %vm4973, %v4963, %v4966
    %v4986 = vsel %vm4976, %v4972, 1326507024
    %v4987 = vsel %vm4975, %v4969, %v4986
    %v4988 = vsel %vm4974, %v4985, %v4987
    %v4989 = vshll.u32 %v4949, 8
    %v4990 = vmul.u32.u64.compose %v4989, %v4988
    %v4991 = vextract.low.u32 %v4990
    %v4992 = vextract.high.u32 %v4990
    %v4993 = vmul.u32.u64.compose %v4989, %v4984
    %v4994 = vextract.low.u32 %v4993
    %v4995 = vextract.high.u32 %v4993
    %v4996 = vmul.u32 %v4989, %v4980
    %v4997 = vadd.s32 %v4992, %v4994
    %vm4998 = vc.u32 %v4992, %v4994
    %v4999 = vadd.s32 %v4995, 1
    %v5000 = vsel %vm4998, %v4999, %v4995
    %v5001 = vadd.s32 %v4996, %v5000
    %v5002 = vadd.s32 %v5001, 536870912
    %v5003 = vshrl.u32 %v5002, 30
    %v5004 = vshll.u32 %v5003, 30
    %v5005 = vsub.s32 %v5001, %v5004
    %vm5006 = vcmp.lt.s32.totalorder %v5005, 0
    %v5007 = vsub.s32 0, %v5005
    %v5008 = vsel %vm5006, %v5007, %v5005
    %v5009 = vclz %v5008
    %v5010 = vsub.s32 %v5009, 2
    %vm5011 = vcmp.gt.s32.totalorder 0, %v5010
    %v5012 = vsel %vm5011, 0, %v5010
    %v5013 = vsub.s32 32, %v5012
    %v5014 = vshll.u32 %v5005, %v5012
    %v5015 = vshrl.u32 %v4997, %v5013
    %v5016 = vor.u32 %v5014, %v5015
    %v5017 = vsub.s32 4294967266, %v5012
    %v5018 = vadd.s32 %v5017, 127
    %v5019 = vshll.u32 %v5018, 23
    %v5020 = vor.u32 4788187, %v5019
    %v5021 = vand.u32 2147483647, %v5020
    %v5023 = vcvt.s32.f32 %v5016
    %v5024 = vmul.f32 %v5023, %v5021
    %v5025 = vxor.u32 %v5024, 2147483648
    %v5026 = vsel %vm4943, %v5025, %v5024
    %v5027 = vsub.s32 4, %v5003
    %v5028 = vsel %vm4943, %v5027, %v5003
    %v5029 = vsel %vm4942, %v3873, %v5026
    %v5030 = vsel %vm4942, 0, %v5028
    %v5031 = vcosq.f32.pop %v5029
    %v5032 = vsinq.f32.pop %v5029
    %vm5033 = vweird.f32 %v3873
    %v5034 = vadd.s32 %v5030, 3
    %v5035 = vand.u32 %v5034, 3
    %vm5036 = vcmp.lt.s32.totalorder %v5035, 2
    %vm5037 = vcmp.eq.s32.totalorder %v5035, 0
    %v5038 = vxor.u32 %v5032, 2147483648
    %v5039 = vsel %vm5037, %v5031, %v5038
    %vm5040 = vcmp.eq.s32.totalorder %v5035, 2
    %v5041 = vxor.u32 %v5031, 2147483648
    %v5042 = vsel %vm5040, %v5041, %v5032
    %v5043 = vsel %vm5036, %v5039, %v5042
    %v5044 = vsel %vm5033, nan, %v5043
    %v5045 = vand.u32 2147483647, %v3878
    %vm5046 = vcmp.le.f32.partialorder %v5045, 0.7853982
    %vm5047 = vcmp.lt.s32.totalorder %v3878, 0
    %v5048 = vand.u32 %v3878, 2139095040
    %v5049 = vshrl.u32 %v5048, 23
    %v5050 = vsub.s32 %v5049, 127
    %v5051 = vand.u32 2147483647, %v3878
    %v5052 = vand.u32 %v5051, 8388607
    %v5053 = vor.u32 %v5052, 8388608
    %v5054 = vsub.s32 0, %v5053
    %v5055 = vadd.s32 %v5050, 1
    %vm5056 = vcmp.gt.s32.totalorder %v5055, 0
    %v5057 = vsel %vm5056, %v5055, 0
    %v5058 = vshrl.u32 %v5057, 5
    %v5059 = vand.u32 %v5057, 31
    %v5060 = vsub.s32 32, %v5059
    %v5061 = vshrl.u32 683565275, %v5060
    %v5062 = vshll.u32 683565275, %v5059
    %v5063 = vshrl.u32 2475754826, %v5060
    %v5064 = vor.u32 %v5062, %v5063
    %v5065 = vshll.u32 2475754826, %v5059
    %v5066 = vshrl.u32 2131351028, %v5060
    %v5067 = vor.u32 %v5065, %v5066
    %v5068 = vshll.u32 2131351028, %v5059
    %v5069 = vshrl.u32 2102212464, %v5060
    %v5070 = vor.u32 %v5068, %v5069
    %v5071 = vshll.u32 2102212464, %v5059
    %v5072 = vshrl.u32 920167782, %v5060
    %v5073 = vor.u32 %v5071, %v5072
    %v5074 = vshll.u32 920167782, %v5059
    %v5075 = vshrl.u32 1326507024, %v5060
    %v5076 = vor.u32 %v5074, %v5075
    %vm5077 = vcmp.lt.s32.totalorder %v5058, 1
    %vm5078 = vcmp.lt.s32.totalorder %v5058, 2
    %vm5079 = vcmp.lt.s32.totalorder %v5058, 3
    %vm5080 = vcmp.lt.s32.totalorder %v5058, 4
    %v5081 = vsel %vm5077, %v5061, %v5064
    %v5082 = vsel %vm5080, %v5070, 2102212464
    %v5083 = vsel %vm5079, %v5067, %v5082
    %v5084 = vsel %vm5078, %v5081, %v5083
    %v5085 = vsel %vm5077, %v5064, %v5067
    %v5086 = vsel %vm5080, %v5073, 920167782
    %v5087 = vsel %vm5079, %v5070, %v5086
    %v5088 = vsel %vm5078, %v5085, %v5087
    %v5089 = vsel %vm5077, %v5067, %v5070
    %v5090 = vsel %vm5080, %v5076, 1326507024
    %v5091 = vsel %vm5079, %v5073, %v5090
    %v5092 = vsel %vm5078, %v5089, %v5091
    %v5093 = vshll.u32 %v5053, 8
    %v5094 = vmul.u32.u64.compose %v5093, %v5092
    %v5095 = vextract.low.u32 %v5094
    %v5096 = vextract.high.u32 %v5094
    %v5097 = vmul.u32.u64.compose %v5093, %v5088
    %v5098 = vextract.low.u32 %v5097
    %v5099 = vextract.high.u32 %v5097
    %v5100 = vmul.u32 %v5093, %v5084
    %v5101 = vadd.s32 %v5096, %v5098
    %vm5102 = vc.u32 %v5096, %v5098
    %v5103 = vadd.s32 %v5099, 1
    %v5104 = vsel %vm5102, %v5103, %v5099
    %v5105 = vadd.s32 %v5100, %v5104
    %v5106 = vadd.s32 %v5105, 536870912
    %v5107 = vshrl.u32 %v5106, 30
    %v5108 = vshll.u32 %v5107, 30
    %v5109 = vsub.s32 %v5105, %v5108
    %vm5110 = vcmp.lt.s32.totalorder %v5109, 0
    %v5111 = vsub.s32 0, %v5109
    %v5112 = vsel %vm5110, %v5111, %v5109
    %v5113 = vclz %v5112
    %v5114 = vsub.s32 %v5113, 2
    %vm5115 = vcmp.gt.s32.totalorder 0, %v5114
    %v5116 = vsel %vm5115, 0, %v5114
    %v5117 = vsub.s32 32, %v5116
    %v5118 = vshll.u32 %v5109, %v5116
    %v5119 = vshrl.u32 %v5101, %v5117
    %v5120 = vor.u32 %v5118, %v5119
    %v5121 = vsub.s32 4294967266, %v5116
    %v5122 = vadd.s32 %v5121, 127
    %v5123 = vshll.u32 %v5122, 23
    %v5124 = vor.u32 4788187, %v5123
    %v5125 = vand.u32 2147483647, %v5124
    %v5127 = vcvt.s32.f32 %v5120
    %v5128 = vmul.f32 %v5127, %v5125
    %v5129 = vxor.u32 %v5128, 2147483648
    %v5130 = vsel %vm5047, %v5129, %v5128
    %v5131 = vsub.s32 4, %v5107
    %v5132 = vsel %vm5047, %v5131, %v5107
    %v5133 = vsel %vm5046, %v3878, %v5130
    %v5134 = vsel %vm5046, 0, %v5132
    %v5135 = vcosq.f32.pop %v5133
    %v5136 = vsinq.f32.pop %v5133
    %vm5137 = vweird.f32 %v3878
    %v5138 = vadd.s32 %v5134, 3
    %v5139 = vand.u32 %v5138, 3
    %vm5140 = vcmp.lt.s32.totalorder %v5139, 2
    %vm5141 = vcmp.eq.s32.totalorder %v5139, 0
    %v5142 = vxor.u32 %v5136, 2147483648
    %v5143 = vsel %vm5141, %v5135, %v5142
    %vm5144 = vcmp.eq.s32.totalorder %v5139, 2
    %v5145 = vxor.u32 %v5135, 2147483648
    %v5146 = vsel %vm5144, %v5145, %v5136
    %v5147 = vsel %vm5140, %v5143, %v5146
    %v5148 = vsel %vm5137, nan, %v5147
    %v5149 = vand.u32 2147483647, %v3883
    %vm5150 = vcmp.le.f32.partialorder %v5149, 0.7853982
    %vm5151 = vcmp.lt.s32.totalorder %v3883, 0
    %v5152 = vand.u32 %v3883, 2139095040
    %v5153 = vshrl.u32 %v5152, 23
    %v5154 = vsub.s32 %v5153, 127
    %v5155 = vand.u32 2147483647, %v3883
    %v5156 = vand.u32 %v5155, 8388607
    %v5157 = vor.u32 %v5156, 8388608
    %v5158 = vsub.s32 0, %v5157
    %v5159 = vadd.s32 %v5154, 1
    %vm5160 = vcmp.gt.s32.totalorder %v5159, 0
    %v5161 = vsel %vm5160, %v5159, 0
    %v5162 = vshrl.u32 %v5161, 5
    %v5163 = vand.u32 %v5161, 31
    %v5164 = vsub.s32 32, %v5163
    %v5165 = vshrl.u32 683565275, %v5164
    %v5166 = vshll.u32 683565275, %v5163
    %v5167 = vshrl.u32 2475754826, %v5164
    %v5168 = vor.u32 %v5166, %v5167
    %v5169 = vshll.u32 2475754826, %v5163
    %v5170 = vshrl.u32 2131351028, %v5164
    %v5171 = vor.u32 %v5169, %v5170
    %v5172 = vshll.u32 2131351028, %v5163
    %v5173 = vshrl.u32 2102212464, %v5164
    %v5174 = vor.u32 %v5172, %v5173
    %v5175 = vshll.u32 2102212464, %v5163
    %v5176 = vshrl.u32 920167782, %v5164
    %v5177 = vor.u32 %v5175, %v5176
    %v5178 = vshll.u32 920167782, %v5163
    %v5179 = vshrl.u32 1326507024, %v5164
    %v5180 = vor.u32 %v5178, %v5179
    %vm5181 = vcmp.lt.s32.totalorder %v5162, 1
    %vm5182 = vcmp.lt.s32.totalorder %v5162, 2
    %vm5183 = vcmp.lt.s32.totalorder %v5162, 3
    %vm5184 = vcmp.lt.s32.totalorder %v5162, 4
    %v5185 = vsel %vm5181, %v5165, %v5168
    %v5186 = vsel %vm5184, %v5174, 2102212464
    %v5187 = vsel %vm5183, %v5171, %v5186
    %v5188 = vsel %vm5182, %v5185, %v5187
    %v5189 = vsel %vm5181, %v5168, %v5171
    %v5190 = vsel %vm5184, %v5177, 920167782
    %v5191 = vsel %vm5183, %v5174, %v5190
    %v5192 = vsel %vm5182, %v5189, %v5191
    %v5193 = vsel %vm5181, %v5171, %v5174
    %v5194 = vsel %vm5184, %v5180, 1326507024
    %v5195 = vsel %vm5183, %v5177, %v5194
    %v5196 = vsel %vm5182, %v5193, %v5195
    %v5197 = vshll.u32 %v5157, 8
    %v5198 = vmul.u32.u64.compose %v5197, %v5196
    %v5199 = vextract.low.u32 %v5198
    %v5200 = vextract.high.u32 %v5198
    %v5201 = vmul.u32.u64.compose %v5197, %v5192
    %v5202 = vextract.low.u32 %v5201
    %v5203 = vextract.high.u32 %v5201
    %v5204 = vmul.u32 %v5197, %v5188
    %v5205 = vadd.s32 %v5200, %v5202
    %vm5206 = vc.u32 %v5200, %v5202
    %v5207 = vadd.s32 %v5203, 1
    %v5208 = vsel %vm5206, %v5207, %v5203
    %v5209 = vadd.s32 %v5204, %v5208
    %v5210 = vadd.s32 %v5209, 536870912
    %v5211 = vshrl.u32 %v5210, 30
    %v5212 = vshll.u32 %v5211, 30
    %v5213 = vsub.s32 %v5209, %v5212
    %vm5214 = vcmp.lt.s32.totalorder %v5213, 0
    %v5215 = vsub.s32 0, %v5213
    %v5216 = vsel %vm5214, %v5215, %v5213
    %v5217 = vclz %v5216
    %v5218 = vsub.s32 %v5217, 2
    %vm5219 = vcmp.gt.s32.totalorder 0, %v5218
    %v5220 = vsel %vm5219, 0, %v5218
    %v5221 = vsub.s32 32, %v5220
    %v5222 = vshll.u32 %v5213, %v5220
    %v5223 = vshrl.u32 %v5205, %v5221
    %v5224 = vor.u32 %v5222, %v5223
    %v5225 = vsub.s32 4294967266, %v5220
    %v5226 = vadd.s32 %v5225, 127
    %v5227 = vshll.u32 %v5226, 23
    %v5228 = vor.u32 4788187, %v5227
    %v5229 = vand.u32 2147483647, %v5228
    %v5231 = vcvt.s32.f32 %v5224
    %v5232 = vmul.f32 %v5231, %v5229
    %v5233 = vxor.u32 %v5232, 2147483648
    %v5234 = vsel %vm5151, %v5233, %v5232
    %v5235 = vsub.s32 4, %v5211
    %v5236 = vsel %vm5151, %v5235, %v5211
    %v5237 = vsel %vm5150, %v3883, %v5234
    %v5238 = vsel %vm5150, 0, %v5236
    %v5239 = vcosq.f32.pop %v5237
    %v5240 = vsinq.f32.pop %v5237
    %vm5241 = vweird.f32 %v3883
    %v5242 = vadd.s32 %v5238, 3
    %v5243 = vand.u32 %v5242, 3
    %vm5244 = vcmp.lt.s32.totalorder %v5243, 2
    %vm5245 = vcmp.eq.s32.totalorder %v5243, 0
    %v5246 = vxor.u32 %v5240, 2147483648
    %v5247 = vsel %vm5245, %v5239, %v5246
    %vm5248 = vcmp.eq.s32.totalorder %v5243, 2
    %v5249 = vxor.u32 %v5239, 2147483648
    %v5250 = vsel %vm5248, %v5249, %v5240
    %v5251 = vsel %vm5244, %v5247, %v5250
    %v5252 = vsel %vm5241, nan, %v5251
    %v5253 = vand.u32 2147483647, %v3888
    %vm5254 = vcmp.le.f32.partialorder %v5253, 0.7853982
    %vm5255 = vcmp.lt.s32.totalorder %v3888, 0
    %v5256 = vand.u32 %v3888, 2139095040
    %v5257 = vshrl.u32 %v5256, 23
    %v5258 = vsub.s32 %v5257, 127
    %v5259 = vand.u32 2147483647, %v3888
    %v5260 = vand.u32 %v5259, 8388607
    %v5261 = vor.u32 %v5260, 8388608
    %v5262 = vsub.s32 0, %v5261
    %v5263 = vadd.s32 %v5258, 1
    %vm5264 = vcmp.gt.s32.totalorder %v5263, 0
    %v5265 = vsel %vm5264, %v5263, 0
    %v5266 = vshrl.u32 %v5265, 5
    %v5267 = vand.u32 %v5265, 31
    %v5268 = vsub.s32 32, %v5267
    %v5269 = vshrl.u32 683565275, %v5268
    %v5270 = vshll.u32 683565275, %v5267
    %v5271 = vshrl.u32 2475754826, %v5268
    %v5272 = vor.u32 %v5270, %v5271
    %v5273 = vshll.u32 2475754826, %v5267
    %v5274 = vshrl.u32 2131351028, %v5268
    %v5275 = vor.u32 %v5273, %v5274
    %v5276 = vshll.u32 2131351028, %v5267
    %v5277 = vshrl.u32 2102212464, %v5268
    %v5278 = vor.u32 %v5276, %v5277
    %v5279 = vshll.u32 2102212464, %v5267
    %v5280 = vshrl.u32 920167782, %v5268
    %v5281 = vor.u32 %v5279, %v5280
    %v5282 = vshll.u32 920167782, %v5267
    %v5283 = vshrl.u32 1326507024, %v5268
    %v5284 = vor.u32 %v5282, %v5283
    %vm5285 = vcmp.lt.s32.totalorder %v5266, 1
    %vm5286 = vcmp.lt.s32.totalorder %v5266, 2
    %vm5287 = vcmp.lt.s32.totalorder %v5266, 3
    %vm5288 = vcmp.lt.s32.totalorder %v5266, 4
    %v5289 = vsel %vm5285, %v5269, %v5272
    %v5290 = vsel %vm5288, %v5278, 2102212464
    %v5291 = vsel %vm5287, %v5275, %v5290
    %v5292 = vsel %vm5286, %v5289, %v5291
    %v5293 = vsel %vm5285, %v5272, %v5275
    %v5294 = vsel %vm5288, %v5281, 920167782
    %v5295 = vsel %vm5287, %v5278, %v5294
    %v5296 = vsel %vm5286, %v5293, %v5295
    %v5297 = vsel %vm5285, %v5275, %v5278
    %v5298 = vsel %vm5288, %v5284, 1326507024
    %v5299 = vsel %vm5287, %v5281, %v5298
    %v5300 = vsel %vm5286, %v5297, %v5299
    %v5301 = vshll.u32 %v5261, 8
    %v5302 = vmul.u32.u64.compose %v5301, %v5300
    %v5303 = vextract.low.u32 %v5302
    %v5304 = vextract.high.u32 %v5302
    %v5305 = vmul.u32.u64.compose %v5301, %v5296
    %v5306 = vextract.low.u32 %v5305
    %v5307 = vextract.high.u32 %v5305
    %v5308 = vmul.u32 %v5301, %v5292
    %v5309 = vadd.s32 %v5304, %v5306
    %vm5310 = vc.u32 %v5304, %v5306
    %v5311 = vadd.s32 %v5307, 1
    %v5312 = vsel %vm5310, %v5311, %v5307
    %v5313 = vadd.s32 %v5308, %v5312
    %v5314 = vadd.s32 %v5313, 536870912
    %v5315 = vshrl.u32 %v5314, 30
    %v5316 = vshll.u32 %v5315, 30
    %v5317 = vsub.s32 %v5313, %v5316
    %vm5318 = vcmp.lt.s32.totalorder %v5317, 0
    %v5319 = vsub.s32 0, %v5317
    %v5320 = vsel %vm5318, %v5319, %v5317
    %v5321 = vclz %v5320
    %v5322 = vsub.s32 %v5321, 2
    %vm5323 = vcmp.gt.s32.totalorder 0, %v5322
    %v5324 = vsel %vm5323, 0, %v5322
    %v5325 = vsub.s32 32, %v5324
    %v5326 = vshll.u32 %v5317, %v5324
    %v5327 = vshrl.u32 %v5309, %v5325
    %v5328 = vor.u32 %v5326, %v5327
    %v5329 = vsub.s32 4294967266, %v5324
    %v5330 = vadd.s32 %v5329, 127
    %v5331 = vshll.u32 %v5330, 23
    %v5332 = vor.u32 4788187, %v5331
    %v5333 = vand.u32 2147483647, %v5332
    %v5335 = vcvt.s32.f32 %v5328
    %v5336 = vmul.f32 %v5335, %v5333
    %v5337 = vxor.u32 %v5336, 2147483648
    %v5338 = vsel %vm5255, %v5337, %v5336
    %v5339 = vsub.s32 4, %v5315
    %v5340 = vsel %vm5255, %v5339, %v5315
    %v5341 = vsel %vm5254, %v3888, %v5338
    %v5342 = vsel %vm5254, 0, %v5340
    %v5343 = vcosq.f32.pop %v5341
    %v5344 = vsinq.f32.pop %v5341
    %vm5345 = vweird.f32 %v3888
    %v5346 = vadd.s32 %v5342, 3
    %v5347 = vand.u32 %v5346, 3
    %vm5348 = vcmp.lt.s32.totalorder %v5347, 2
    %vm5349 = vcmp.eq.s32.totalorder %v5347, 0
    %v5350 = vxor.u32 %v5344, 2147483648
    %v5351 = vsel %vm5349, %v5343, %v5350
    %vm5352 = vcmp.eq.s32.totalorder %v5347, 2
    %v5353 = vxor.u32 %v5343, 2147483648
    %v5354 = vsel %vm5352, %v5353, %v5344
    %v5355 = vsel %vm5348, %v5351, %v5354
    %v5356 = vsel %vm5345, nan, %v5355
    %v5357 = vand.u32 2147483647, %v3893
    %vm5358 = vcmp.le.f32.partialorder %v5357, 0.7853982
    %vm5359 = vcmp.lt.s32.totalorder %v3893, 0
    %v5360 = vand.u32 %v3893, 2139095040
    %v5361 = vshrl.u32 %v5360, 23
    %v5362 = vsub.s32 %v5361, 127
    %v5363 = vand.u32 2147483647, %v3893
    %v5364 = vand.u32 %v5363, 8388607
    %v5365 = vor.u32 %v5364, 8388608
    %v5366 = vsub.s32 0, %v5365
    %v5367 = vadd.s32 %v5362, 1
    %vm5368 = vcmp.gt.s32.totalorder %v5367, 0
    %v5369 = vsel %vm5368, %v5367, 0
    %v5370 = vshrl.u32 %v5369, 5
    %v5371 = vand.u32 %v5369, 31
    %v5372 = vsub.s32 32, %v5371
    %v5373 = vshrl.u32 683565275, %v5372
    %v5374 = vshll.u32 683565275, %v5371
    %v5375 = vshrl.u32 2475754826, %v5372
    %v5376 = vor.u32 %v5374, %v5375
    %v5377 = vshll.u32 2475754826, %v5371
    %v5378 = vshrl.u32 2131351028, %v5372
    %v5379 = vor.u32 %v5377, %v5378
    %v5380 = vshll.u32 2131351028, %v5371
    %v5381 = vshrl.u32 2102212464, %v5372
    %v5382 = vor.u32 %v5380, %v5381
    %v5383 = vshll.u32 2102212464, %v5371
    %v5384 = vshrl.u32 920167782, %v5372
    %v5385 = vor.u32 %v5383, %v5384
    %v5386 = vshll.u32 920167782, %v5371
    %v5387 = vshrl.u32 1326507024, %v5372
    %v5388 = vor.u32 %v5386, %v5387
    %vm5389 = vcmp.lt.s32.totalorder %v5370, 1
    %vm5390 = vcmp.lt.s32.totalorder %v5370, 2
    %vm5391 = vcmp.lt.s32.totalorder %v5370, 3
    %vm5392 = vcmp.lt.s32.totalorder %v5370, 4
    %v5393 = vsel %vm5389, %v5373, %v5376
    %v5394 = vsel %vm5392, %v5382, 2102212464
    %v5395 = vsel %vm5391, %v5379, %v5394
    %v5396 = vsel %vm5390, %v5393, %v5395
    %v5397 = vsel %vm5389, %v5376, %v5379
    %v5398 = vsel %vm5392, %v5385, 920167782
    %v5399 = vsel %vm5391, %v5382, %v5398
    %v5400 = vsel %vm5390, %v5397, %v5399
    %v5401 = vsel %vm5389, %v5379, %v5382
    %v5402 = vsel %vm5392, %v5388, 1326507024
    %v5403 = vsel %vm5391, %v5385, %v5402
    %v5404 = vsel %vm5390, %v5401, %v5403
    %v5405 = vshll.u32 %v5365, 8
    %v5406 = vmul.u32.u64.compose %v5405, %v5404
    %v5407 = vextract.low.u32 %v5406
    %v5408 = vextract.high.u32 %v5406
    %v5409 = vmul.u32.u64.compose %v5405, %v5400
    %v5410 = vextract.low.u32 %v5409
    %v5411 = vextract.high.u32 %v5409
    %v5412 = vmul.u32 %v5405, %v5396
    %v5413 = vadd.s32 %v5408, %v5410
    %vm5414 = vc.u32 %v5408, %v5410
    %v5415 = vadd.s32 %v5411, 1
    %v5416 = vsel %vm5414, %v5415, %v5411
    %v5417 = vadd.s32 %v5412, %v5416
    %v5418 = vadd.s32 %v5417, 536870912
    %v5419 = vshrl.u32 %v5418, 30
    %v5420 = vshll.u32 %v5419, 30
    %v5421 = vsub.s32 %v5417, %v5420
    %vm5422 = vcmp.lt.s32.totalorder %v5421, 0
    %v5423 = vsub.s32 0, %v5421
    %v5424 = vsel %vm5422, %v5423, %v5421
    %v5425 = vclz %v5424
    %v5426 = vsub.s32 %v5425, 2
    %vm5427 = vcmp.gt.s32.totalorder 0, %v5426
    %v5428 = vsel %vm5427, 0, %v5426
    %v5429 = vsub.s32 32, %v5428
    %v5430 = vshll.u32 %v5421, %v5428
    %v5431 = vshrl.u32 %v5413, %v5429
    %v5432 = vor.u32 %v5430, %v5431
    %v5433 = vsub.s32 4294967266, %v5428
    %v5434 = vadd.s32 %v5433, 127
    %v5435 = vshll.u32 %v5434, 23
    %v5436 = vor.u32 4788187, %v5435
    %v5437 = vand.u32 2147483647, %v5436
    %v5439 = vcvt.s32.f32 %v5432
    %v5440 = vmul.f32 %v5439, %v5437
    %v5441 = vxor.u32 %v5440, 2147483648
    %v5442 = vsel %vm5359, %v5441, %v5440
    %v5443 = vsub.s32 4, %v5419
    %v5444 = vsel %vm5359, %v5443, %v5419
    %v5445 = vsel %vm5358, %v3893, %v5442
    %v5446 = vsel %vm5358, 0, %v5444
    %v5447 = vcosq.f32.pop %v5445
    %v5448 = vsinq.f32.pop %v5445
    %vm5449 = vweird.f32 %v3893
    %v5450 = vadd.s32 %v5446, 3
    %v5451 = vand.u32 %v5450, 3
    %vm5452 = vcmp.lt.s32.totalorder %v5451, 2
    %vm5453 = vcmp.eq.s32.totalorder %v5451, 0
    %v5454 = vxor.u32 %v5448, 2147483648
    %v5455 = vsel %vm5453, %v5447, %v5454
    %vm5456 = vcmp.eq.s32.totalorder %v5451, 2
    %v5457 = vxor.u32 %v5447, 2147483648
    %v5458 = vsel %vm5456, %v5457, %v5448
    %v5459 = vsel %vm5452, %v5455, %v5458
    %v5460 = vsel %vm5449, nan, %v5459
    %v5461 = vand.u32 2147483647, %v3898
    %vm5462 = vcmp.le.f32.partialorder %v5461, 0.7853982
    %vm5463 = vcmp.lt.s32.totalorder %v3898, 0
    %v5464 = vand.u32 %v3898, 2139095040
    %v5465 = vshrl.u32 %v5464, 23
    %v5466 = vsub.s32 %v5465, 127
    %v5467 = vand.u32 2147483647, %v3898
    %v5468 = vand.u32 %v5467, 8388607
    %v5469 = vor.u32 %v5468, 8388608
    %v5470 = vsub.s32 0, %v5469
    %v5471 = vadd.s32 %v5466, 1
    %vm5472 = vcmp.gt.s32.totalorder %v5471, 0
    %v5473 = vsel %vm5472, %v5471, 0
    %v5474 = vshrl.u32 %v5473, 5
    %v5475 = vand.u32 %v5473, 31
    %v5476 = vsub.s32 32, %v5475
    %v5477 = vshrl.u32 683565275, %v5476
    %v5478 = vshll.u32 683565275, %v5475
    %v5479 = vshrl.u32 2475754826, %v5476
    %v5480 = vor.u32 %v5478, %v5479
    %v5481 = vshll.u32 2475754826, %v5475
    %v5482 = vshrl.u32 2131351028, %v5476
    %v5483 = vor.u32 %v5481, %v5482
    %v5484 = vshll.u32 2131351028, %v5475
    %v5485 = vshrl.u32 2102212464, %v5476
    %v5486 = vor.u32 %v5484, %v5485
    %v5487 = vshll.u32 2102212464, %v5475
    %v5488 = vshrl.u32 920167782, %v5476
    %v5489 = vor.u32 %v5487, %v5488
    %v5490 = vshll.u32 920167782, %v5475
    %v5491 = vshrl.u32 1326507024, %v5476
    %v5492 = vor.u32 %v5490, %v5491
    %vm5493 = vcmp.lt.s32.totalorder %v5474, 1
    %vm5494 = vcmp.lt.s32.totalorder %v5474, 2
    %vm5495 = vcmp.lt.s32.totalorder %v5474, 3
    %vm5496 = vcmp.lt.s32.totalorder %v5474, 4
    %v5497 = vsel %vm5493, %v5477, %v5480
    %v5498 = vsel %vm5496, %v5486, 2102212464
    %v5499 = vsel %vm5495, %v5483, %v5498
    %v5500 = vsel %vm5494, %v5497, %v5499
    %v5501 = vsel %vm5493, %v5480, %v5483
    %v5502 = vsel %vm5496, %v5489, 920167782
    %v5503 = vsel %vm5495, %v5486, %v5502
    %v5504 = vsel %vm5494, %v5501, %v5503
    %v5505 = vsel %vm5493, %v5483, %v5486
    %v5506 = vsel %vm5496, %v5492, 1326507024
    %v5507 = vsel %vm5495, %v5489, %v5506
    %v5508 = vsel %vm5494, %v5505, %v5507
    %v5509 = vshll.u32 %v5469, 8
    %v5510 = vmul.u32.u64.compose %v5509, %v5508
    %v5511 = vextract.low.u32 %v5510
    %v5512 = vextract.high.u32 %v5510
    %v5513 = vmul.u32.u64.compose %v5509, %v5504
    %v5514 = vextract.low.u32 %v5513
    %v5515 = vextract.high.u32 %v5513
    %v5516 = vmul.u32 %v5509, %v5500
    %v5517 = vadd.s32 %v5512, %v5514
    %vm5518 = vc.u32 %v5512, %v5514
    %v5519 = vadd.s32 %v5515, 1
    %v5520 = vsel %vm5518, %v5519, %v5515
    %v5521 = vadd.s32 %v5516, %v5520
    %v5522 = vadd.s32 %v5521, 536870912
    %v5523 = vshrl.u32 %v5522, 30
    %v5524 = vshll.u32 %v5523, 30
    %v5525 = vsub.s32 %v5521, %v5524
    %vm5526 = vcmp.lt.s32.totalorder %v5525, 0
    %v5527 = vsub.s32 0, %v5525
    %v5528 = vsel %vm5526, %v5527, %v5525
    %v5529 = vclz %v5528
    %v5530 = vsub.s32 %v5529, 2
    %vm5531 = vcmp.gt.s32.totalorder 0, %v5530
    %v5532 = vsel %vm5531, 0, %v5530
    %v5533 = vsub.s32 32, %v5532
    %v5534 = vshll.u32 %v5525, %v5532
    %v5535 = vshrl.u32 %v5517, %v5533
    %v5536 = vor.u32 %v5534, %v5535
    %v5537 = vsub.s32 4294967266, %v5532
    %v5538 = vadd.s32 %v5537, 127
    %v5539 = vshll.u32 %v5538, 23
    %v5540 = vor.u32 4788187, %v5539
    %v5541 = vand.u32 2147483647, %v5540
    %v5543 = vcvt.s32.f32 %v5536
    %v5544 = vmul.f32 %v5543, %v5541
    %v5545 = vxor.u32 %v5544, 2147483648
    %v5546 = vsel %vm5463, %v5545, %v5544
    %v5547 = vsub.s32 4, %v5523
    %v5548 = vsel %vm5463, %v5547, %v5523
    %v5549 = vsel %vm5462, %v3898, %v5546
    %v5550 = vsel %vm5462, 0, %v5548
    %v5551 = vcosq.f32.pop %v5549
    %v5552 = vsinq.f32.pop %v5549
    %vm5553 = vweird.f32 %v3898
    %v5554 = vadd.s32 %v5550, 3
    %v5555 = vand.u32 %v5554, 3
    %vm5556 = vcmp.lt.s32.totalorder %v5555, 2
    %vm5557 = vcmp.eq.s32.totalorder %v5555, 0
    %v5558 = vxor.u32 %v5552, 2147483648
    %v5559 = vsel %vm5557, %v5551, %v5558
    %vm5560 = vcmp.eq.s32.totalorder %v5555, 2
    %v5561 = vxor.u32 %v5551, 2147483648
    %v5562 = vsel %vm5560, %v5561, %v5552
    %v5563 = vsel %vm5556, %v5559, %v5562
    %v5564 = vsel %vm5553, nan, %v5563
    %v5565 = vld [vmem:[#allocation2 + $0x108] sm:$0xff]
    %v5566 = vld [vmem:[#allocation2 + $0x110] sm:$0xff]
    %v5567 = vld [vmem:[#allocation2 + $0x118] sm:$0xff]
    %v5568 = vld [vmem:[#allocation2 + $0x120] sm:$0xff]
    %v5569 = vld [vmem:[#allocation2 + $0x128] sm:$0xff]
    %v5570 = vld [vmem:[#allocation2 + $0x130] sm:$0xff]
    %v5571 = vld [vmem:[#allocation2 + $0x138] sm:$0xff]
    %v5572 = vld [vmem:[#allocation2 + $0x140] sm:$0xff]
    %v5573 = vld [vmem:[#allocation2 + $0x148] sm:$0xff]
    %v5574 = vld [vmem:[#allocation2 + $0x150] sm:$0xff]
    %v5575 = vld [vmem:[#allocation2 + $0x158] sm:$0xff]
    %v5576 = vld [vmem:[#allocation2 + $0x160] sm:$0xff]
    %v5577 = vld [vmem:[#allocation2 + $0x168] sm:$0xff]
    %v5578 = vld [vmem:[#allocation2 + $0x170] sm:$0xff]
    %v5579 = vld [vmem:[#allocation2 + $0x178] sm:$0xff]
    %v5580 = vld [vmem:[#allocation2 + $0x180] sm:$0xff]
    %v5581 = vld [vmem:[#allocation2 + $0x18b] sm:$0x1]
    %v5582 = vlaneseq
    %v5583 = vshrl.u32 %v5582, 7
    %v5584 = vsub.s32 0, %v5583
    %v5585 = vrot.slane %v5581, %v5584
    %5586 = vmatprep.subr.mxu0 0.0
    %5587 = vmatpush1.msra.mxu0 %v5565
    %5588 = vmatprep.subr.mxu0 0.0
    %5589 = vmatpush1.msra.mxu0 %v5566
    %5590 = vmatprep.subr.mxu0 0.0
    %5591 = vmatpush1.msra.mxu0 %v5567
    %5592 = vmatprep.subr.mxu0 0.0
    %5593 = vmatpush1.msra.mxu0 %v5568
    %5594 = vmatprep.subr.mxu0 0.0
    %5595 = vmatpush1.msra.mxu0 %v5569
    %5596 = vmatprep.subr.mxu0 0.0
    %5597 = vmatpush1.msra.mxu0 %v5570
    %5598 = vmatprep.subr.mxu0 0.0
    %5599 = vmatpush1.msra.mxu0 %v5571
    %5600 = vmatprep.subr.mxu0 0.0
    %5601 = vmatpush1.msra.mxu0 %v5572
    %5602 = vmatprep.subr.mxu0 0.0
    %5603 = vmatpush1.msra.mxu0 %v5573
    %5604 = vmatprep.subr.mxu0 0.0
    %5605 = vmatpush1.msra.mxu0 %v5574
    %5606 = vmatprep.subr.mxu0 0.0
    %5607 = vmatpush1.msra.mxu0 %v5575
    %5608 = vmatprep.subr.mxu0 0.0
    %5609 = vmatpush1.msra.mxu0 %v5576
    %5610 = vmatprep.subr.mxu0 0.0
    %5611 = vmatpush1.msra.mxu0 %v5577
    %5612 = vmatprep.subr.mxu0 0.0
    %5613 = vmatpush1.msra.mxu0 %v5578
    %5614 = vmatprep.subr.mxu0 0.0
    %5615 = vmatpush1.msra.mxu0 %v5579
    %5616 = vmatprep.subr.mxu0 0.0
    %5617 = vmatpush1.msra.mxu0 %v5580
    %5618 = vmatprep.subr.mxu0 0.0
    %5619 = vmatpush1.msra.mxu0 0.0
    %5620 = vmatprep.subr.mxu0 0.0
    %5621 = vmatpush1.msra.mxu0 0.0
    %5622 = vmatprep.subr.mxu0 0.0
    %5623 = vmatpush1.msra.mxu0 0.0
    %5624 = vmatprep.subr.mxu0 0.0
    %5625 = vmatpush1.msra.mxu0 0.0
    %5626 = vmatprep.subr.mxu0 0.0
    %5627 = vmatpush1.msra.mxu0 0.0
    %5628 = vmatprep.subr.mxu0 0.0
    %5629 = vmatpush1.msra.mxu0 0.0
    %5630 = vmatprep.subr.mxu0 0.0
    %5631 = vmatpush1.msra.mxu0 0.0
    %5632 = vmatprep.subr.mxu0 0.0
    %5633 = vmatpush1.msra.mxu0 0.0
    %5634 = vmatprep.subr.mxu0 0.0
    %5635 = vmatpush1.msra.mxu0 0.0
    %5636 = vmatprep.subr.mxu0 0.0
    %5637 = vmatpush1.msra.mxu0 0.0
    %5638 = vmatprep.subr.mxu0 0.0
    %5639 = vmatpush1.msra.mxu0 0.0
    %5640 = vmatprep.subr.mxu0 0.0
    %5641 = vmatpush1.msra.mxu0 0.0
    %5642 = vmatprep.subr.mxu0 0.0
    %5643 = vmatpush1.msra.mxu0 0.0
    %5644 = vmatprep.subr.mxu0 0.0
    %5645 = vmatpush1.msra.mxu0 0.0
    %5646 = vmatprep.subr.mxu0 0.0
    %5647 = vmatpush1.msra.mxu0 0.0
    %5648 = vmatprep.subr.mxu0 0.0
    %5649 = vmatpush1.msra.mxu0 0.0
    %5650 = vmatprep.mubr.f32.mxu0 0.0
    %5651 = vmatmul.mubr.f32.gmra.mrb[0].mxu0 %v4004
    %v5652 = vpop.f32.mrb[0].mxu0
    %v5653 = vadd.f32 %v5585, %v5652
    %v5654 = vpop.f32.mrb[0].mxu0
    %5655 = vmatprep.mubr.f32.mxu0 0.0
    %5656 = vmatmul.mubr.f32.gmra.mrb[0].mxu0 %v4108
    %v5657 = vpop.f32.mrb[0].mxu0
    %v5658 = vadd.f32 %v5585, %v5657
    %v5659 = vpop.f32.mrb[0].mxu0
    %5660 = vmatprep.mubr.f32.mxu0 0.0
    %5661 = vmatmul.mubr.f32.gmra.mrb[0].mxu0 %v4212
    %v5662 = vpop.f32.mrb[0].mxu0
    %v5663 = vadd.f32 %v5585, %v5662
    %v5664 = vpop.f32.mrb[0].mxu0
    %5665 = vmatprep.mubr.f32.mxu0 0.0
    %5666 = vmatmul.mubr.f32.gmra.mrb[0].mxu0 %v4316
    %v5667 = vpop.f32.mrb[0].mxu0
    %v5668 = vadd.f32 %v5585, %v5667
    %v5669 = vpop.f32.mrb[0].mxu0
    %5670 = vmatprep.mubr.f32.mxu0 0.0
    %5671 = vmatmul.mubr.f32.gmra.mrb[0].mxu0 %v4420
    %v5672 = vpop.f32.mrb[0].mxu0
    %v5673 = vadd.f32 %v5585, %v5672
    %v5674 = vpop.f32.mrb[0].mxu0
    %5675 = vmatprep.mubr.f32.mxu0 0.0
    %5676 = vmatmul.mubr.f32.gmra.mrb[0].mxu0 %v4524
    %v5677 = vpop.f32.mrb[0].mxu0
    %v5678 = vadd.f32 %v5585, %v5677
    %v5679 = vpop.f32.mrb[0].mxu0
    %5680 = vmatprep.mubr.f32.mxu0 0.0
    %5681 = vmatmul.mubr.f32.gmra.mrb[0].mxu0 %v4628
    %v5682 = vpop.f32.mrb[0].mxu0
    %v5683 = vadd.f32 %v5585, %v5682
    %v5684 = vpop.f32.mrb[0].mxu0
    %5685 = vmatprep.mubr.f32.mxu0 0.0
    %5686 = vmatmul.mubr.f32.gmra.mrb[0].mxu0 %v4732
    %v5687 = vpop.f32.mrb[0].mxu0
    %v5688 = vadd.f32 %v5585, %v5687
    %v5689 = vpop.f32.mrb[0].mxu0
    %5690 = vmatprep.mubr.f32.mxu0 0.0
    %5691 = vmatmul.mubr.f32.gmra.mrb[0].mxu0 %v4836
    %v5692 = vpop.f32.mrb[0].mxu0
    %v5693 = vadd.f32 %v5585, %v5692
    %v5694 = vpop.f32.mrb[0].mxu0
    %5695 = vmatprep.mubr.f32.mxu0 0.0
    %5696 = vmatmul.mubr.f32.gmra.mrb[0].mxu0 %v4940
    %v5697 = vpop.f32.mrb[0].mxu0
    %v5698 = vadd.f32 %v5585, %v5697
    %v5699 = vpop.f32.mrb[0].mxu0
    %5700 = vmatprep.mubr.f32.mxu0 0.0
    %5701 = vmatmul.mubr.f32.gmra.mrb[0].mxu0 %v5044
    %v5702 = vpop.f32.mrb[0].mxu0
    %v5703 = vadd.f32 %v5585, %v5702
    %v5704 = vpop.f32.mrb[0].mxu0
    %5705 = vmatprep.mubr.f32.mxu0 0.0
    %5706 = vmatmul.mubr.f32.gmra.mrb[0].mxu0 %v5148
    %v5707 = vpop.f32.mrb[0].mxu0
    %v5708 = vadd.f32 %v5585, %v5707
    %v5709 = vpop.f32.mrb[0].mxu0
    %5710 = vmatprep.mubr.f32.mxu0 0.0
    %5711 = vmatmul.mubr.f32.gmra.mrb[0].mxu0 %v5252
    %v5712 = vpop.f32.mrb[0].mxu0
    %v5713 = vadd.f32 %v5585, %v5712
    %v5714 = vpop.f32.mrb[0].mxu0
    %5715 = vmatprep.mubr.f32.mxu0 0.0
    %5716 = vmatmul.mubr.f32.gmra.mrb[0].mxu0 %v5356
    %v5717 = vpop.f32.mrb[0].mxu0
    %v5718 = vadd.f32 %v5585, %v5717
    %v5719 = vpop.f32.mrb[0].mxu0
    %5720 = vmatprep.mubr.f32.mxu0 0.0
    %5721 = vmatmul.mubr.f32.gmra.mrb[0].mxu0 %v5460
    %v5722 = vpop.f32.mrb[0].mxu0
    %v5723 = vadd.f32 %v5585, %v5722
    %v5724 = vpop.f32.mrb[0].mxu0
    %5725 = vmatprep.mubr.f32.mxu0 0.0
    %5726 = vmatmul.mubr.f32.gmra.mrb[0].mxu0 %v5564
    %v5727 = vpop.f32.mrb[0].mxu0
    %v5728 = vadd.f32 %v5585, %v5727
    %v5729 = vpop.f32.mrb[0].mxu0
    %5730 = vdwg.mxu0
    %vm5731 = vcmask 97280
    %5732 = vst.msk [vmem:[%s2] sm:$0xff] %vm5731, %v5653
    %5733 = vst.msk [vmem:[%s2 + $0x8] sm:$0xff] %vm5731, %v5658
    %5734 = vst.msk [vmem:[%s2 + $0x10] sm:$0xff] %vm5731, %v5663
    %5735 = vst.msk [vmem:[%s2 + $0x18] sm:$0xff] %vm5731, %v5668
    %5736 = vst.msk [vmem:[%s2 + $0x20] sm:$0xff] %vm5731, %v5673
    %5737 = vst.msk [vmem:[%s2 + $0x28] sm:$0xff] %vm5731, %v5678
    %5738 = vst.msk [vmem:[%s2 + $0x30] sm:$0xff] %vm5731, %v5683
    %5739 = vst.msk [vmem:[%s2 + $0x38] sm:$0xff] %vm5731, %v5688
    %5740 = vst.msk [vmem:[%s2 + $0x40] sm:$0xff] %vm5731, %v5693
    %5741 = vst.msk [vmem:[%s2 + $0x48] sm:$0xff] %vm5731, %v5698
    %5742 = vst.msk [vmem:[%s2 + $0x50] sm:$0xff] %vm5731, %v5703
    %5743 = vst.msk [vmem:[%s2 + $0x58] sm:$0xff] %vm5731, %v5708
    %5744 = vst.msk [vmem:[%s2 + $0x60] sm:$0xff] %vm5731, %v5713
    %5745 = vst.msk [vmem:[%s2 + $0x68] sm:$0xff] %vm5731, %v5718
    %5746 = vst.msk [vmem:[%s2 + $0x70] sm:$0xff] %vm5731, %v5723
    %5747 = vst.msk [vmem:[%s2 + $0x78] sm:$0xff] %vm5731, %v5728
    // Predicated region
    $region14: #{tpu_custom_call.1} parent=1 // pred_check
      _
    $region15: #{tpu_custom_call.1} parent=1 // pred_check_branch
      %5749 = sbr.rel (0) target = $region17
    $region16: #{tpu_custom_call.1} parent=1 // pred_region
      _
    $region17: #{tpu_custom_call.1} parent=1 // pred_fallthru
      _
    // Predicated region
    $region18: #{tpu_custom_call.1} parent=1 // pred_check
      _
    $region19: #{tpu_custom_call.1} parent=1 // pred_check_branch
      %5751 = sbr.rel (0) target = $region21
    $region20: #{tpu_custom_call.1} parent=1 // pred_region
      _
    $region21: #{tpu_custom_call.1} parent=1 // pred_fallthru
      _
    %5752 = vsyncpa [#allocation3], 1

</llo_original>
